<compile_context>
chip_gen: v6e
topology: v6e:2x2x1
jax: 0.10.0
libtpu: 0.0.40
codegen_flags: <defaults>
</compile_context>

<pallas_src>
import math
import jax
import jax.numpy as jnp
from jax.experimental import pallas as pl
from jax.experimental.pallas import tpu as pltpu

# ----------------------------- configuration -------------------------------
B = 2             # batch
C = 3             # RGB channels (ViT expects 3)
IMG = 32          # image size      (224 in real ViT-B/16)
P = 16            # patch size      (same as ViT-B/16)
NP = (IMG // P) ** 2           # 4 patches
S = NP + 1                     # +class token -> 5 real tokens
SP = 8                         # padded token count (sublane aligned)
D = 128           # hidden dim      (768 in ViT-B/16)
H = 4             # attention heads (12 in ViT-B/16)
DH = D // H       # head dim
MLP = 256         # MLP dim         (3072 in ViT-B/16)
LAYERS = 2        # encoder layers  (12 in ViT-B/16)
HEAD_HID = 64     # custom-head hidden (256 in the original module)
PHASES = 8        # PHASES_NUMBER (not defined in source; picked 8)
OUT_PAD = 128     # lane-dense padded head output width
CPP = C * P * P   # flattened patch length = 768
EPS = 1e-6        # torchvision ViT LayerNorm eps
ATTN_SCALE = 1.0 / math.sqrt(DH)
NEG = -1e30


# ------------------------------- kernel -------------------------------------
def _layernorm(x, g, b):
    mu = jnp.mean(x, axis=-1, keepdims=True)
    var = jnp.mean(jnp.square(x - mu), axis=-1, keepdims=True)
    return (x - mu) * jax.lax.rsqrt(var + EPS) * g + b


def fused_vit_kernel(x_ref, emb_ref, convw_ref,
                     wqkv_ref, bqkv_ref, wo_ref,
                     w1_ref, b1_ref, w2_ref,
                     vec_ref, lnf_ref,
                     hw1_ref, hb1_ref, hw2_ref, hb2_ref,
                     o_ref):
    bf16 = jnp.bfloat16
    f32 = jnp.float32
    nb = x_ref.shape[0]          # batch elements handled this grid step (static)
    T = nb * SP                  # flattened token rows

    # --- patch embedding (Conv2d kernel=stride=patch as one matmul) ---------
    # x block rows per example: row 0 zeros (cls slot), rows 1..NP flattened
    # patches (c, ph, pw order), rows NP+1.. zeros (pad tokens).
    pix = x_ref[...].reshape(T, CPP).astype(bf16)                   # (T, CPP)
    x = jnp.dot(pix, convw_ref[...], preferred_element_type=f32)    # (T, D)
    # cls+pos on row 0, conv bias + pos on patch rows, 0 on pad rows.
    x = (x.reshape(nb, SP, D) + emb_ref[...]).reshape(T, D)
    # TODO(synk): dropout layers are identity in eval mode, so omitted.

    # attention key mask for pad tokens (built in-kernel, no extra input)
    key_ids = jax.lax.broadcasted_iota(jnp.int32, (1, 1, SP), 2)
    kmask = jnp.where(key_ids < S, 0.0, NEG).astype(f32)            # (1,1,SP)

    for l in range(LAYERS):
        vec = vec_ref[l]                                            # (6, D)
        ln1g, ln1b = vec[0:1], vec[1:2]
        ln2g, ln2b = vec[2:3], vec[3:4]
        bo, b2 = vec[4:5], vec[5:6]

        # ---- pre-LN multi-head self-attention, fused QKV projection -------
        xn = _layernorm(x, ln1g, ln1b).astype(bf16)                 # (T, D)
        qkv = jnp.dot(xn, wqkv_ref[l],
                      preferred_element_type=f32) + bqkv_ref[l]     # (T, 3D)
        q, k, v = qkv[:, :D], qkv[:, D:2 * D], qkv[:, 2 * D:]

        head_outs = []
        for h in range(H):
            sl = slice(h * DH, (h + 1) * DH)
            qh = q[:, sl].reshape(nb, SP, DH).astype(bf16)
            kh = k[:, sl].reshape(nb, SP, DH).astype(bf16)
            vh = v[:, sl].reshape(nb, SP, DH).astype(bf16)
            s = jnp.einsum('bqd,bkd->bqk', qh, kh,
                           preferred_element_type=f32) * ATTN_SCALE
            s = s + kmask                       # mask pad-token keys (f32)
            s = s - jnp.max(s, axis=-1, keepdims=True)
            p = jnp.exp(s)
            p = p * pl.reciprocal(jnp.sum(p, axis=-1, keepdims=True),
                                  approx=True)
            oh = jnp.einsum('bqk,bkd->bqd', p.astype(bf16), vh,
                            preferred_element_type=f32)             # (nb,SP,DH)
            head_outs.append(oh.reshape(T, DH))
        o_cat = jnp.concatenate(head_outs, axis=-1).astype(bf16)    # (T, D)
        x = x + jnp.dot(o_cat, wo_ref[l],
                        preferred_element_type=f32) + bo            # residual 1

        # ---- pre-LN MLP (tanh-GELU -> EUP slot) ----------------------------
        yn = _layernorm(x, ln2g, ln2b).astype(bf16)
        h1 = jnp.dot(yn, w1_ref[l], preferred_element_type=f32) + b1_ref[l]
        h1 = jax.nn.gelu(h1, approximate=True).astype(bf16)
        h2 = jnp.dot(h1, w2_ref[l], preferred_element_type=f32) + b2
        x = x + h2                                                  # residual 2

    # ---- final encoder LN + head, class-token rows only -------------------
    cls = x.reshape(nb, SP, D)[:, 0, :]                             # (nb, D)
    xf = _layernorm(cls, lnf_ref[0:1], lnf_ref[1:2]).astype(bf16)
    hh = jnp.tanh(jnp.dot(xf, hw1_ref[...], preferred_element_type=f32)
                  + hb1_ref[...]).astype(bf16)                      # (nb, 64)
    out = jnp.dot(hh, hw2_ref[...], preferred_element_type=f32) + hb2_ref[...]
    o_ref[...] = out.reshape(nb, 1, OUT_PAD)                        # lane-dense


# ----------------------------- pallas wrapper --------------------------------
def _shared_spec(shape):
    n = len(shape)
    return pl.BlockSpec(shape, lambda b, _n=n: (0,) * _n)


def _grid_steps():
    # v7x has 2 TensorCores per chip: split the batch over a "parallel" grid
    # axis there; single-TC chips (v5e/v6e) merge the whole batch into one step.
    kind = ""
    try:
        kind = jax.devices()[0].device_kind.lower()
    except Exception:
        pass
    n_tc = 2 if "v7" in kind else 1
    steps = max(1, min(B, n_tc))
    while B % steps:
        steps -= 1
    return steps


def saxs_vit_forward(x, params):
    # x: (B, C, IMG, IMG) NCHW, matching the PyTorch module's input.
    steps = _grid_steps()
    nb = B // steps                     # batch elements per grid step

    # Unfold non-overlapping patches in (c, ph, pw) order -> conv-as-matmul,
    # placed at token rows 1..NP of a sublane-padded (SP) token slab.
    xb = x.reshape(B, C, IMG // P, P, IMG // P, P)
    xb = xb.transpose(0, 2, 4, 1, 3, 5).reshape(B, NP, CPP)
    x_slab = jnp.zeros((B, SP, CPP), jnp.float32).at[:, 1:NP + 1, :].set(xb)

    # Per-row additive embedding (same for every batch element):
    #   row 0 -> cls + pos[0]; rows 1..NP -> conv bias + pos[r]; pad rows -> 0.
    emb = jnp.zeros((SP, D), jnp.float32)
    emb = emb.at[0].set(params["cls"] + params["pos"][0])
    emb = emb.at[1:NP + 1].set(params["conv_b"] + params["pos"][1:NP + 1])

    shared = [emb, params["conv_w"],
              params["wqkv"], params["bqkv"], params["wo"],
              params["w1"], params["b1"], params["w2"],
              params["vec"], params["lnf"],
              params["hw1"], params["hb1"], params["hw2"], params["hb2"]]

    out = pl.pallas_call(
        fused_vit_kernel,
        out_shape=jax.ShapeDtypeStruct((B, 1, OUT_PAD), jnp.float32),
        grid=(steps,),
        in_specs=[pl.BlockSpec((nb, SP, CPP), lambda b: (b, 0, 0))]
                 + [_shared_spec(a.shape) for a in shared],
        out_specs=pl.BlockSpec((nb, 1, OUT_PAD), lambda b: (b, 0, 0)),
        compiler_params=pltpu.CompilerParams(
            dimension_semantics=("parallel",)),
    )(x_slab, *shared)

    # class-token logits, un-padded width
    return out[:, 0, :PHASES]


# ----------------------------- parameters ------------------------------------
def init_params(key):
    ks = iter(jax.random.split(key, 12))

    def nrm(shape, scale=0.02, dtype=jnp.float32):
        w = scale * jax.random.normal(next(ks), shape, dtype=jnp.float32)
        return w.astype(dtype)

    bf16 = jnp.bfloat16
    p = {
        # patch embedding (Conv2d weight flattened (c,ph,pw) -> D), cls, pos
        "conv_w": nrm((CPP, D), dtype=bf16),
        "conv_b": jnp.zeros((D,), jnp.float32),
        "cls":    nrm((D,)),
        "pos":    nrm((S, D)),
        # encoder layers, stacked on a leading layer axis, QKV fused lane-dense
        "wqkv": nrm((LAYERS, D, 3 * D), dtype=bf16),
        "bqkv": jnp.zeros((LAYERS, 1, 3 * D), jnp.float32),
        "wo":   nrm((LAYERS, D, D), dtype=bf16),
        "w1":   nrm((LAYERS, D, MLP), dtype=bf16),
        "b1":   jnp.zeros((LAYERS, 1, MLP), jnp.float32),
        "w2":   nrm((LAYERS, MLP, D), dtype=bf16),
        # final encoder LayerNorm [gamma; beta] + custom head Linear->Tanh->Linear
        "lnf": jnp.stack([jnp.ones((D,), jnp.float32),
                          jnp.zeros((D,), jnp.float32)]),
        "hw1": nrm((D, HEAD_HID), dtype=bf16),
        "hb1": jnp.zeros((1, HEAD_HID), jnp.float32),
        "hb2": jnp.zeros((1, OUT_PAD), jnp.float32),
    }
    # packed per-layer vectors: [ln1g, ln1b, ln2g, ln2b, attn_out_bias, mlp_out_bias]
    vec = jnp.zeros((LAYERS, 6, D), jnp.float32)
    vec = vec.at[:, 0, :].set(1.0).at[:, 2, :].set(1.0)
    p["vec"] = vec
    # lane-dense padded final projection (only first PHASES columns are real)
    hw2 = nrm((HEAD_HID, PHASES))
    p["hw2"] = (jnp.zeros((HEAD_HID, OUT_PAD), jnp.float32)
                .at[:, :PHASES].set(hw2).astype(bf16))
    return p


# --------------------------------- main ---------------------------------------
if __name__ == "__main__":
    key = jax.random.PRNGKey(0)
    k_x, k_p = jax.random.split(key)
    x = jax.random.normal(k_x, (B, C, IMG, IMG), dtype=jnp.float32)
    params = init_params(k_p)

    fwd = jax.jit(saxs_vit_forward)
    out = fwd(x, params)
    jax.block_until_ready(out)
    assert out.shape == (B, PHASES) and out.dtype == jnp.float32
    assert bool(jnp.all(jnp.isfinite(out)))
    print("KERNEL_OK")
</pallas_src>

<mosaic_0001>
module attributes {stable_mosaic.version = 11 : i64} {
  func.func @fused_vit_kernel(%arg0: i32, %arg1: memref<2x8x768xf32, #tpu.memory_space<vmem>>, %arg2: memref<8x128xf32, #tpu.memory_space<vmem>>, %arg3: memref<768x128xbf16, #tpu.memory_space<vmem>>, %arg4: memref<2x128x384xbf16, #tpu.memory_space<vmem>>, %arg5: memref<2x1x384xf32, #tpu.memory_space<vmem>>, %arg6: memref<2x128x128xbf16, #tpu.memory_space<vmem>>, %arg7: memref<2x128x256xbf16, #tpu.memory_space<vmem>>, %arg8: memref<2x1x256xf32, #tpu.memory_space<vmem>>, %arg9: memref<2x256x128xbf16, #tpu.memory_space<vmem>>, %arg10: memref<2x6x128xf32, #tpu.memory_space<vmem>>, %arg11: memref<2x128xf32, #tpu.memory_space<vmem>>, %arg12: memref<128x64xbf16, #tpu.memory_space<vmem>>, %arg13: memref<1x64xf32, #tpu.memory_space<vmem>>, %arg14: memref<64x128xbf16, #tpu.memory_space<vmem>>, %arg15: memref<1x128xf32, #tpu.memory_space<vmem>>, %arg16: memref<2x1x128xf32, #tpu.memory_space<vmem>>) attributes {dimension_semantics = [#tpu.dimension_semantics<parallel>], iteration_bounds = array<i64: 1>, scalar_prefetch = 0 : i64, scratch_operands = 0 : i64, tpu.core_type = #tpu.core_type<tc>, window_params = [{transform_indices = @transform_0, window_bounds = array<i64: 2, 8, 768>}, {pipeline_mode = #tpu.pipeline_mode<synchronous>, transform_indices = @transform_1, window_bounds = array<i64: 8, 128>}, {pipeline_mode = #tpu.pipeline_mode<synchronous>, transform_indices = @transform_2, window_bounds = array<i64: 768, 128>}, {pipeline_mode = #tpu.pipeline_mode<synchronous>, transform_indices = @transform_3, window_bounds = array<i64: 2, 128, 384>}, {pipeline_mode = #tpu.pipeline_mode<synchronous>, transform_indices = @transform_4, window_bounds = array<i64: 2, 1, 384>}, {pipeline_mode = #tpu.pipeline_mode<synchronous>, transform_indices = @transform_5, window_bounds = array<i64: 2, 128, 128>}, {pipeline_mode = #tpu.pipeline_mode<synchronous>, transform_indices = @transform_6, window_bounds = array<i64: 2, 128, 256>}, {pipeline_mode = #tpu.pipeline_mode<synchronous>, transform_indices = @transform_7, window_bounds = array<i64: 2, 1, 256>}, {pipeline_mode = #tpu.pipeline_mode<synchronous>, transform_indices = @transform_8, window_bounds = array<i64: 2, 256, 128>}, {pipeline_mode = #tpu.pipeline_mode<synchronous>, transform_indices = @transform_9, window_bounds = array<i64: 2, 6, 128>}, {pipeline_mode = #tpu.pipeline_mode<synchronous>, transform_indices = @transform_10, window_bounds = array<i64: 2, 128>}, {pipeline_mode = #tpu.pipeline_mode<synchronous>, transform_indices = @transform_11, window_bounds = array<i64: 128, 64>}, {pipeline_mode = #tpu.pipeline_mode<synchronous>, transform_indices = @transform_12, window_bounds = array<i64: 1, 64>}, {pipeline_mode = #tpu.pipeline_mode<synchronous>, transform_indices = @transform_13, window_bounds = array<i64: 64, 128>}, {pipeline_mode = #tpu.pipeline_mode<synchronous>, transform_indices = @transform_14, window_bounds = array<i64: 1, 128>}, {transform_indices = @transform_15, window_bounds = array<i64: 2, 1, 128>}]} {
    %c0 = arith.constant 0 : index
    %c0_0 = arith.constant 0 : index
    %c0_1 = arith.constant 0 : index
    %0 = vector.load %arg1[%c0, %c0_0, %c0_1] : memref<2x8x768xf32, #tpu.memory_space<vmem>>, vector<2x8x768xf32>
    %1 = vector.shape_cast %0 : vector<2x8x768xf32> to vector<16x768xf32>
    %2 = arith.truncf %1 : vector<16x768xf32> to vector<16x768xbf16>
    %c0_2 = arith.constant 0 : index
    %c0_3 = arith.constant 0 : index
    %3 = vector.load %arg3[%c0_2, %c0_3] : memref<768x128xbf16, #tpu.memory_space<vmem>>, vector<768x128xbf16>
    %cst = arith.constant dense<0.000000e+00> : vector<16x128xf32>
    %4 = tpu.matmul %2, %3, %cst {dimension_numbers = #tpu.dot_dimension_numbers<[1], [0], [0], [1], [0, 0, 1, 1], [], []>} : vector<16x768xbf16>, vector<768x128xbf16>, vector<16x128xf32> -> vector<16x128xf32>
    %5 = vector.shape_cast %4 : vector<16x128xf32> to vector<2x8x128xf32>
    %c0_4 = arith.constant 0 : index
    %c0_5 = arith.constant 0 : index
    %6 = vector.load %arg2[%c0_4, %c0_5] : memref<8x128xf32, #tpu.memory_space<vmem>>, vector<8x128xf32>
    %7 = vector.shape_cast %6 : vector<8x128xf32> to vector<1x8x128xf32>
    %8 = vector.broadcast %7 : vector<1x8x128xf32> to vector<2x8x128xf32>
    %9 = arith.addf %5, %8 : vector<2x8x128xf32>
    %10 = vector.shape_cast %9 : vector<2x8x128xf32> to vector<16x128xf32>
    %11 = tpu.iota {dimensions = array<i32: 2>} : vector<1x1x8xi32>
    %c5_i32 = arith.constant 5 : i32
    %12 = vector.broadcast %c5_i32 : i32 to vector<1x1x8xi32>
    %13 = arith.cmpi slt, %11, %12 : vector<1x1x8xi32>
    %cst_6 = arith.constant 0.000000e+00 : f32
    %cst_7 = arith.constant -1.000000e+30 : f32
    %14 = vector.broadcast %cst_6 : f32 to vector<1x1x8xf32>
    %15 = vector.broadcast %cst_7 : f32 to vector<1x1x8xf32>
    %16 = arith.select %13, %14, %15 : vector<1x1x8xi1>, vector<1x1x8xf32>
    %c0_8 = arith.constant 0 : index
    %c0_9 = arith.constant 0 : index
    %c0_10 = arith.constant 0 : index
    %17 = vector.load %arg10[%c0_8, %c0_9, %c0_10] : memref<2x6x128xf32, #tpu.memory_space<vmem>>, vector<1x6x128xf32>
    %18 = vector.shape_cast %17 : vector<1x6x128xf32> to vector<6x128xf32>
    %19 = vector.extract_strided_slice %18 {offsets = [0, 0], sizes = [1, 128], strides = [1, 1]} : vector<6x128xf32> to vector<1x128xf32>
    %20 = vector.extract_strided_slice %18 {offsets = [1, 0], sizes = [1, 128], strides = [1, 1]} : vector<6x128xf32> to vector<1x128xf32>
    %21 = vector.extract_strided_slice %18 {offsets = [2, 0], sizes = [1, 128], strides = [1, 1]} : vector<6x128xf32> to vector<1x128xf32>
    %22 = vector.extract_strided_slice %18 {offsets = [3, 0], sizes = [1, 128], strides = [1, 1]} : vector<6x128xf32> to vector<1x128xf32>
    %23 = vector.extract_strided_slice %18 {offsets = [4, 0], sizes = [1, 128], strides = [1, 1]} : vector<6x128xf32> to vector<1x128xf32>
    %24 = vector.extract_strided_slice %18 {offsets = [5, 0], sizes = [1, 128], strides = [1, 1]} : vector<6x128xf32> to vector<1x128xf32>
    %cst_11 = arith.constant dense<0.000000e+00> : vector<16xf32>
    %25 = vector.multi_reduction <add>, %10, %cst_11 [1] : vector<16x128xf32> to vector<16xf32>
    %26 = vector.shape_cast %25 : vector<16xf32> to vector<16x1xf32>
    %cst_12 = arith.constant 1.280000e+02 : f32
    %27 = vector.broadcast %cst_12 : f32 to vector<16x1xf32>
    %28 = arith.divf %26, %27 : vector<16x1xf32>
    %29 = vector.broadcast %28 : vector<16x1xf32> to vector<16x128xf32>
    %30 = arith.subf %10, %29 : vector<16x128xf32>
    %31 = arith.mulf %30, %30 : vector<16x128xf32>
    %cst_13 = arith.constant dense<0.000000e+00> : vector<16xf32>
    %32 = vector.multi_reduction <add>, %31, %cst_13 [1] : vector<16x128xf32> to vector<16xf32>
    %33 = vector.shape_cast %32 : vector<16xf32> to vector<16x1xf32>
    %cst_14 = arith.constant 1.280000e+02 : f32
    %34 = vector.broadcast %cst_14 : f32 to vector<16x1xf32>
    %35 = arith.divf %33, %34 : vector<16x1xf32>
    %36 = vector.broadcast %28 : vector<16x1xf32> to vector<16x128xf32>
    %37 = arith.subf %10, %36 : vector<16x128xf32>
    %cst_15 = arith.constant 9.99999997E-7 : f32
    %38 = vector.broadcast %cst_15 : f32 to vector<16x1xf32>
    %39 = arith.addf %35, %38 : vector<16x1xf32>
    %40 = math.rsqrt %39 : vector<16x1xf32>
    %41 = vector.broadcast %40 : vector<16x1xf32> to vector<16x128xf32>
    %42 = arith.mulf %37, %41 : vector<16x128xf32>
    %43 = vector.broadcast %19 : vector<1x128xf32> to vector<16x128xf32>
    %44 = arith.mulf %42, %43 : vector<16x128xf32>
    %45 = vector.broadcast %20 : vector<1x128xf32> to vector<16x128xf32>
    %46 = arith.addf %44, %45 : vector<16x128xf32>
    %47 = arith.truncf %46 : vector<16x128xf32> to vector<16x128xbf16>
    %c0_16 = arith.constant 0 : index
    %c0_17 = arith.constant 0 : index
    %c0_18 = arith.constant 0 : index
    %48 = vector.load %arg4[%c0_16, %c0_17, %c0_18] : memref<2x128x384xbf16, #tpu.memory_space<vmem>>, vector<1x128x384xbf16>
    %49 = vector.shape_cast %48 : vector<1x128x384xbf16> to vector<128x384xbf16>
    %cst_19 = arith.constant dense<0.000000e+00> : vector<16x384xf32>
    %50 = tpu.matmul %47, %49, %cst_19 {dimension_numbers = #tpu.dot_dimension_numbers<[1], [0], [0], [1], [0, 0, 1, 1], [], []>} : vector<16x128xbf16>, vector<128x384xbf16>, vector<16x384xf32> -> vector<16x384xf32>
    %c0_20 = arith.constant 0 : index
    %c0_21 = arith.constant 0 : index
    %c0_22 = arith.constant 0 : index
    %51 = vector.load %arg5[%c0_20, %c0_21, %c0_22] : memref<2x1x384xf32, #tpu.memory_space<vmem>>, vector<1x1x384xf32>
    %52 = vector.shape_cast %51 : vector<1x1x384xf32> to vector<1x384xf32>
    %53 = vector.broadcast %52 : vector<1x384xf32> to vector<16x384xf32>
    %54 = arith.addf %50, %53 : vector<16x384xf32>
    %55 = vector.extract_strided_slice %54 {offsets = [0, 0], sizes = [16, 128], strides = [1, 1]} : vector<16x384xf32> to vector<16x128xf32>
    %56 = vector.extract_strided_slice %54 {offsets = [0, 128], sizes = [16, 128], strides = [1, 1]} : vector<16x384xf32> to vector<16x128xf32>
    %57 = vector.extract_strided_slice %54 {offsets = [0, 256], sizes = [16, 128], strides = [1, 1]} : vector<16x384xf32> to vector<16x128xf32>
    %58 = vector.extract_strided_slice %55 {offsets = [0, 0], sizes = [16, 32], strides = [1, 1]} : vector<16x128xf32> to vector<16x32xf32>
    %59 = vector.shape_cast %58 : vector<16x32xf32> to vector<2x8x32xf32>
    %60 = arith.truncf %59 : vector<2x8x32xf32> to vector<2x8x32xbf16>
    %61 = vector.extract_strided_slice %56 {offsets = [0, 0], sizes = [16, 32], strides = [1, 1]} : vector<16x128xf32> to vector<16x32xf32>
    %62 = vector.shape_cast %61 : vector<16x32xf32> to vector<2x8x32xf32>
    %63 = arith.truncf %62 : vector<2x8x32xf32> to vector<2x8x32xbf16>
    %64 = vector.extract_strided_slice %57 {offsets = [0, 0], sizes = [16, 32], strides = [1, 1]} : vector<16x128xf32> to vector<16x32xf32>
    %65 = vector.shape_cast %64 : vector<16x32xf32> to vector<2x8x32xf32>
    %66 = arith.truncf %65 : vector<2x8x32xf32> to vector<2x8x32xbf16>
    "tpu.trace_start"() <{level = 10 : i32, message = "bqd,bkd->bqk"}> : () -> ()
    %cst_23 = arith.constant dense<0.000000e+00> : vector<2x8x8xf32>
    %67 = tpu.matmul %60, %63, %cst_23 {dimension_numbers = #tpu.dot_dimension_numbers<[2], [2], [1], [1], [0, 0, 0, 1, 1, 1], [0], [0]>} : vector<2x8x32xbf16>, vector<2x8x32xbf16>, vector<2x8x8xf32> -> vector<2x8x8xf32>
    "tpu.trace_stop"() : () -> ()
    %cst_24 = arith.constant 0.176776692 : f32
    %68 = vector.broadcast %cst_24 : f32 to vector<2x8x8xf32>
    %69 = arith.mulf %67, %68 : vector<2x8x8xf32>
    %70 = vector.broadcast %16 : vector<1x1x8xf32> to vector<2x8x8xf32>
    %71 = arith.addf %69, %70 : vector<2x8x8xf32>
    %cst_25 = arith.constant dense<0xFF800000> : vector<2x8xf32>
    %72 = vector.multi_reduction <maximumf>, %71, %cst_25 [2] : vector<2x8x8xf32> to vector<2x8xf32>
    %73 = vector.shape_cast %72 : vector<2x8xf32> to vector<2x8x1xf32>
    %74 = vector.broadcast %73 : vector<2x8x1xf32> to vector<2x8x8xf32>
    %75 = arith.subf %71, %74 : vector<2x8x8xf32>
    %76 = math.exp %75 : vector<2x8x8xf32>
    %cst_26 = arith.constant dense<0.000000e+00> : vector<2x8xf32>
    %77 = vector.multi_reduction <add>, %76, %cst_26 [2] : vector<2x8x8xf32> to vector<2x8xf32>
    %78 = vector.shape_cast %77 : vector<2x8xf32> to vector<2x8x1xf32>
    %79 = tpu.reciprocal %78 {approx = true} : vector<2x8x1xf32> -> vector<2x8x1xf32>
    %80 = vector.broadcast %79 : vector<2x8x1xf32> to vector<2x8x8xf32>
    %81 = arith.mulf %76, %80 : vector<2x8x8xf32>
    %82 = arith.truncf %81 : vector<2x8x8xf32> to vector<2x8x8xbf16>
    "tpu.trace_start"() <{level = 10 : i32, message = "bqk,bkd->bqd"}> : () -> ()
    %cst_27 = arith.constant dense<0.000000e+00> : vector<2x8x32xf32>
    %83 = tpu.matmul %82, %66, %cst_27 {dimension_numbers = #tpu.dot_dimension_numbers<[2], [1], [1], [2], [0, 0, 0, 1, 1, 2], [0], [0]>} : vector<2x8x8xbf16>, vector<2x8x32xbf16>, vector<2x8x32xf32> -> vector<2x8x32xf32>
    "tpu.trace_stop"() : () -> ()
    %84 = vector.shape_cast %83 : vector<2x8x32xf32> to vector<16x32xf32>
    %85 = vector.extract_strided_slice %55 {offsets = [0, 32], sizes = [16, 32], strides = [1, 1]} : vector<16x128xf32> to vector<16x32xf32>
    %86 = vector.shape_cast %85 : vector<16x32xf32> to vector<2x8x32xf32>
    %87 = arith.truncf %86 : vector<2x8x32xf32> to vector<2x8x32xbf16>
    %88 = vector.extract_strided_slice %56 {offsets = [0, 32], sizes = [16, 32], strides = [1, 1]} : vector<16x128xf32> to vector<16x32xf32>
    %89 = vector.shape_cast %88 : vector<16x32xf32> to vector<2x8x32xf32>
    %90 = arith.truncf %89 : vector<2x8x32xf32> to vector<2x8x32xbf16>
    %91 = vector.extract_strided_slice %57 {offsets = [0, 32], sizes = [16, 32], strides = [1, 1]} : vector<16x128xf32> to vector<16x32xf32>
    %92 = vector.shape_cast %91 : vector<16x32xf32> to vector<2x8x32xf32>
    %93 = arith.truncf %92 : vector<2x8x32xf32> to vector<2x8x32xbf16>
    "tpu.trace_start"() <{level = 10 : i32, message = "bqd,bkd->bqk"}> : () -> ()
    %cst_28 = arith.constant dense<0.000000e+00> : vector<2x8x8xf32>
    %94 = tpu.matmul %87, %90, %cst_28 {dimension_numbers = #tpu.dot_dimension_numbers<[2], [2], [1], [1], [0, 0, 0, 1, 1, 1], [0], [0]>} : vector<2x8x32xbf16>, vector<2x8x32xbf16>, vector<2x8x8xf32> -> vector<2x8x8xf32>
    "tpu.trace_stop"() : () -> ()
    %cst_29 = arith.constant 0.176776692 : f32
    %95 = vector.broadcast %cst_29 : f32 to vector<2x8x8xf32>
    %96 = arith.mulf %94, %95 : vector<2x8x8xf32>
    %97 = vector.broadcast %16 : vector<1x1x8xf32> to vector<2x8x8xf32>
    %98 = arith.addf %96, %97 : vector<2x8x8xf32>
    %cst_30 = arith.constant dense<0xFF800000> : vector<2x8xf32>
    %99 = vector.multi_reduction <maximumf>, %98, %cst_30 [2] : vector<2x8x8xf32> to vector<2x8xf32>
    %100 = vector.shape_cast %99 : vector<2x8xf32> to vector<2x8x1xf32>
    %101 = vector.broadcast %100 : vector<2x8x1xf32> to vector<2x8x8xf32>
    %102 = arith.subf %98, %101 : vector<2x8x8xf32>
    %103 = math.exp %102 : vector<2x8x8xf32>
    %cst_31 = arith.constant dense<0.000000e+00> : vector<2x8xf32>
    %104 = vector.multi_reduction <add>, %103, %cst_31 [2] : vector<2x8x8xf32> to vector<2x8xf32>
    %105 = vector.shape_cast %104 : vector<2x8xf32> to vector<2x8x1xf32>
    %106 = tpu.reciprocal %105 {approx = true} : vector<2x8x1xf32> -> vector<2x8x1xf32>
    %107 = vector.broadcast %106 : vector<2x8x1xf32> to vector<2x8x8xf32>
    %108 = arith.mulf %103, %107 : vector<2x8x8xf32>
    %109 = arith.truncf %108 : vector<2x8x8xf32> to vector<2x8x8xbf16>
    "tpu.trace_start"() <{level = 10 : i32, message = "bqk,bkd->bqd"}> : () -> ()
    %cst_32 = arith.constant dense<0.000000e+00> : vector<2x8x32xf32>
    %110 = tpu.matmul %109, %93, %cst_32 {dimension_numbers = #tpu.dot_dimension_numbers<[2], [1], [1], [2], [0, 0, 0, 1, 1, 2], [0], [0]>} : vector<2x8x8xbf16>, vector<2x8x32xbf16>, vector<2x8x32xf32> -> vector<2x8x32xf32>
    "tpu.trace_stop"() : () -> ()
    %111 = vector.shape_cast %110 : vector<2x8x32xf32> to vector<16x32xf32>
    %112 = vector.extract_strided_slice %55 {offsets = [0, 64], sizes = [16, 32], strides = [1, 1]} : vector<16x128xf32> to vector<16x32xf32>
    %113 = vector.shape_cast %112 : vector<16x32xf32> to vector<2x8x32xf32>
    %114 = arith.truncf %113 : vector<2x8x32xf32> to vector<2x8x32xbf16>
    %115 = vector.extract_strided_slice %56 {offsets = [0, 64], sizes = [16, 32], strides = [1, 1]} : vector<16x128xf32> to vector<16x32xf32>
    %116 = vector.shape_cast %115 : vector<16x32xf32> to vector<2x8x32xf32>
    %117 = arith.truncf %116 : vector<2x8x32xf32> to vector<2x8x32xbf16>
    %118 = vector.extract_strided_slice %57 {offsets = [0, 64], sizes = [16, 32], strides = [1, 1]} : vector<16x128xf32> to vector<16x32xf32>
    %119 = vector.shape_cast %118 : vector<16x32xf32> to vector<2x8x32xf32>
    %120 = arith.truncf %119 : vector<2x8x32xf32> to vector<2x8x32xbf16>
    "tpu.trace_start"() <{level = 10 : i32, message = "bqd,bkd->bqk"}> : () -> ()
    %cst_33 = arith.constant dense<0.000000e+00> : vector<2x8x8xf32>
    %121 = tpu.matmul %114, %117, %cst_33 {dimension_numbers = #tpu.dot_dimension_numbers<[2], [2], [1], [1], [0, 0, 0, 1, 1, 1], [0], [0]>} : vector<2x8x32xbf16>, vector<2x8x32xbf16>, vector<2x8x8xf32> -> vector<2x8x8xf32>
    "tpu.trace_stop"() : () -> ()
    %cst_34 = arith.constant 0.176776692 : f32
    %122 = vector.broadcast %cst_34 : f32 to vector<2x8x8xf32>
    %123 = arith.mulf %121, %122 : vector<2x8x8xf32>
    %124 = vector.broadcast %16 : vector<1x1x8xf32> to vector<2x8x8xf32>
    %125 = arith.addf %123, %124 : vector<2x8x8xf32>
    %cst_35 = arith.constant dense<0xFF800000> : vector<2x8xf32>
    %126 = vector.multi_reduction <maximumf>, %125, %cst_35 [2] : vector<2x8x8xf32> to vector<2x8xf32>
    %127 = vector.shape_cast %126 : vector<2x8xf32> to vector<2x8x1xf32>
    %128 = vector.broadcast %127 : vector<2x8x1xf32> to vector<2x8x8xf32>
    %129 = arith.subf %125, %128 : vector<2x8x8xf32>
    %130 = math.exp %129 : vector<2x8x8xf32>
    %cst_36 = arith.constant dense<0.000000e+00> : vector<2x8xf32>
    %131 = vector.multi_reduction <add>, %130, %cst_36 [2] : vector<2x8x8xf32> to vector<2x8xf32>
    %132 = vector.shape_cast %131 : vector<2x8xf32> to vector<2x8x1xf32>
    %133 = tpu.reciprocal %132 {approx = true} : vector<2x8x1xf32> -> vector<2x8x1xf32>
    %134 = vector.broadcast %133 : vector<2x8x1xf32> to vector<2x8x8xf32>
    %135 = arith.mulf %130, %134 : vector<2x8x8xf32>
    %136 = arith.truncf %135 : vector<2x8x8xf32> to vector<2x8x8xbf16>
    "tpu.trace_start"() <{level = 10 : i32, message = "bqk,bkd->bqd"}> : () -> ()
    %cst_37 = arith.constant dense<0.000000e+00> : vector<2x8x32xf32>
    %137 = tpu.matmul %136, %120, %cst_37 {dimension_numbers = #tpu.dot_dimension_numbers<[2], [1], [1], [2], [0, 0, 0, 1, 1, 2], [0], [0]>} : vector<2x8x8xbf16>, vector<2x8x32xbf16>, vector<2x8x32xf32> -> vector<2x8x32xf32>
    "tpu.trace_stop"() : () -> ()
    %138 = vector.shape_cast %137 : vector<2x8x32xf32> to vector<16x32xf32>
    %139 = vector.extract_strided_slice %55 {offsets = [0, 96], sizes = [16, 32], strides = [1, 1]} : vector<16x128xf32> to vector<16x32xf32>
    %140 = vector.shape_cast %139 : vector<16x32xf32> to vector<2x8x32xf32>
    %141 = arith.truncf %140 : vector<2x8x32xf32> to vector<2x8x32xbf16>
    %142 = vector.extract_strided_slice %56 {offsets = [0, 96], sizes = [16, 32], strides = [1, 1]} : vector<16x128xf32> to vector<16x32xf32>
    %143 = vector.shape_cast %142 : vector<16x32xf32> to vector<2x8x32xf32>
    %144 = arith.truncf %143 : vector<2x8x32xf32> to vector<2x8x32xbf16>
    %145 = vector.extract_strided_slice %57 {offsets = [0, 96], sizes = [16, 32], strides = [1, 1]} : vector<16x128xf32> to vector<16x32xf32>
    %146 = vector.shape_cast %145 : vector<16x32xf32> to vector<2x8x32xf32>
    %147 = arith.truncf %146 : vector<2x8x32xf32> to vector<2x8x32xbf16>
    "tpu.trace_start"() <{level = 10 : i32, message = "bqd,bkd->bqk"}> : () -> ()
    %cst_38 = arith.constant dense<0.000000e+00> : vector<2x8x8xf32>
    %148 = tpu.matmul %141, %144, %cst_38 {dimension_numbers = #tpu.dot_dimension_numbers<[2], [2], [1], [1], [0, 0, 0, 1, 1, 1], [0], [0]>} : vector<2x8x32xbf16>, vector<2x8x32xbf16>, vector<2x8x8xf32> -> vector<2x8x8xf32>
    "tpu.trace_stop"() : () -> ()
    %cst_39 = arith.constant 0.176776692 : f32
    %149 = vector.broadcast %cst_39 : f32 to vector<2x8x8xf32>
    %150 = arith.mulf %148, %149 : vector<2x8x8xf32>
    %151 = vector.broadcast %16 : vector<1x1x8xf32> to vector<2x8x8xf32>
    %152 = arith.addf %150, %151 : vector<2x8x8xf32>
    %cst_40 = arith.constant dense<0xFF800000> : vector<2x8xf32>
    %153 = vector.multi_reduction <maximumf>, %152, %cst_40 [2] : vector<2x8x8xf32> to vector<2x8xf32>
    %154 = vector.shape_cast %153 : vector<2x8xf32> to vector<2x8x1xf32>
    %155 = vector.broadcast %154 : vector<2x8x1xf32> to vector<2x8x8xf32>
    %156 = arith.subf %152, %155 : vector<2x8x8xf32>
    %157 = math.exp %156 : vector<2x8x8xf32>
    %cst_41 = arith.constant dense<0.000000e+00> : vector<2x8xf32>
    %158 = vector.multi_reduction <add>, %157, %cst_41 [2] : vector<2x8x8xf32> to vector<2x8xf32>
    %159 = vector.shape_cast %158 : vector<2x8xf32> to vector<2x8x1xf32>
    %160 = tpu.reciprocal %159 {approx = true} : vector<2x8x1xf32> -> vector<2x8x1xf32>
    %161 = vector.broadcast %160 : vector<2x8x1xf32> to vector<2x8x8xf32>
    %162 = arith.mulf %157, %161 : vector<2x8x8xf32>
    %163 = arith.truncf %162 : vector<2x8x8xf32> to vector<2x8x8xbf16>
    "tpu.trace_start"() <{level = 10 : i32, message = "bqk,bkd->bqd"}> : () -> ()
    %cst_42 = arith.constant dense<0.000000e+00> : vector<2x8x32xf32>
    %164 = tpu.matmul %163, %147, %cst_42 {dimension_numbers = #tpu.dot_dimension_numbers<[2], [1], [1], [2], [0, 0, 0, 1, 1, 2], [0], [0]>} : vector<2x8x8xbf16>, vector<2x8x32xbf16>, vector<2x8x32xf32> -> vector<2x8x32xf32>
    "tpu.trace_stop"() : () -> ()
    %165 = vector.shape_cast %164 : vector<2x8x32xf32> to vector<16x32xf32>
    %166 = tpu.concatenate %84, %111, %138, %165 in 1 : vector<16x32xf32>, vector<16x32xf32>, vector<16x32xf32>, vector<16x32xf32> -> vector<16x128xf32>
    %167 = arith.truncf %166 : vector<16x128xf32> to vector<16x128xbf16>
    %c0_43 = arith.constant 0 : index
    %c0_44 = arith.constant 0 : index
    %c0_45 = arith.constant 0 : index
    %168 = vector.load %arg6[%c0_43, %c0_44, %c0_45] : memref<2x128x128xbf16, #tpu.memory_space<vmem>>, vector<1x128x128xbf16>
    %169 = vector.shape_cast %168 : vector<1x128x128xbf16> to vector<128x128xbf16>
    %cst_46 = arith.constant dense<0.000000e+00> : vector<16x128xf32>
    %170 = tpu.matmul %167, %169, %cst_46 {dimension_numbers = #tpu.dot_dimension_numbers<[1], [0], [0], [1], [0, 0, 1, 1], [], []>} : vector<16x128xbf16>, vector<128x128xbf16>, vector<16x128xf32> -> vector<16x128xf32>
    %171 = arith.addf %10, %170 : vector<16x128xf32>
    %172 = vector.broadcast %23 : vector<1x128xf32> to vector<16x128xf32>
    %173 = arith.addf %171, %172 : vector<16x128xf32>
    %cst_47 = arith.constant dense<0.000000e+00> : vector<16xf32>
    %174 = vector.multi_reduction <add>, %173, %cst_47 [1] : vector<16x128xf32> to vector<16xf32>
    %175 = vector.shape_cast %174 : vector<16xf32> to vector<16x1xf32>
    %cst_48 = arith.constant 1.280000e+02 : f32
    %176 = vector.broadcast %cst_48 : f32 to vector<16x1xf32>
    %177 = arith.divf %175, %176 : vector<16x1xf32>
    %178 = vector.broadcast %177 : vector<16x1xf32> to vector<16x128xf32>
    %179 = arith.subf %173, %178 : vector<16x128xf32>
    %180 = arith.mulf %179, %179 : vector<16x128xf32>
    %cst_49 = arith.constant dense<0.000000e+00> : vector<16xf32>
    %181 = vector.multi_reduction <add>, %180, %cst_49 [1] : vector<16x128xf32> to vector<16xf32>
    %182 = vector.shape_cast %181 : vector<16xf32> to vector<16x1xf32>
    %cst_50 = arith.constant 1.280000e+02 : f32
    %183 = vector.broadcast %cst_50 : f32 to vector<16x1xf32>
    %184 = arith.divf %182, %183 : vector<16x1xf32>
    %185 = vector.broadcast %177 : vector<16x1xf32> to vector<16x128xf32>
    %186 = arith.subf %173, %185 : vector<16x128xf32>
    %cst_51 = arith.constant 9.99999997E-7 : f32
    %187 = vector.broadcast %cst_51 : f32 to vector<16x1xf32>
    %188 = arith.addf %184, %187 : vector<16x1xf32>
    %189 = math.rsqrt %188 : vector<16x1xf32>
    %190 = vector.broadcast %189 : vector<16x1xf32> to vector<16x128xf32>
    %191 = arith.mulf %186, %190 : vector<16x128xf32>
    %192 = vector.broadcast %21 : vector<1x128xf32> to vector<16x128xf32>
    %193 = arith.mulf %191, %192 : vector<16x128xf32>
    %194 = vector.broadcast %22 : vector<1x128xf32> to vector<16x128xf32>
    %195 = arith.addf %193, %194 : vector<16x128xf32>
    %196 = arith.truncf %195 : vector<16x128xf32> to vector<16x128xbf16>
    %c0_52 = arith.constant 0 : index
    %c0_53 = arith.constant 0 : index
    %c0_54 = arith.constant 0 : index
    %197 = vector.load %arg7[%c0_52, %c0_53, %c0_54] : memref<2x128x256xbf16, #tpu.memory_space<vmem>>, vector<1x128x256xbf16>
    %198 = vector.shape_cast %197 : vector<1x128x256xbf16> to vector<128x256xbf16>
    %cst_55 = arith.constant dense<0.000000e+00> : vector<16x256xf32>
    %199 = tpu.matmul %196, %198, %cst_55 {dimension_numbers = #tpu.dot_dimension_numbers<[1], [0], [0], [1], [0, 0, 1, 1], [], []>} : vector<16x128xbf16>, vector<128x256xbf16>, vector<16x256xf32> -> vector<16x256xf32>
    %c0_56 = arith.constant 0 : index
    %c0_57 = arith.constant 0 : index
    %c0_58 = arith.constant 0 : index
    %200 = vector.load %arg8[%c0_56, %c0_57, %c0_58] : memref<2x1x256xf32, #tpu.memory_space<vmem>>, vector<1x1x256xf32>
    %201 = vector.shape_cast %200 : vector<1x1x256xf32> to vector<1x256xf32>
    %202 = vector.broadcast %201 : vector<1x256xf32> to vector<16x256xf32>
    %203 = arith.addf %199, %202 : vector<16x256xf32>
    %204 = arith.mulf %203, %203 : vector<16x256xf32>
    %205 = arith.mulf %203, %204 : vector<16x256xf32>
    %cst_59 = arith.constant 4.471500e-02 : f32
    %206 = vector.broadcast %cst_59 : f32 to vector<16x256xf32>
    %207 = arith.mulf %206, %205 : vector<16x256xf32>
    %208 = arith.addf %203, %207 : vector<16x256xf32>
    %cst_60 = arith.constant 0.797884583 : f32
    %209 = vector.broadcast %cst_60 : f32 to vector<16x256xf32>
    %210 = arith.mulf %209, %208 : vector<16x256xf32>
    %211 = math.tanh %210 : vector<16x256xf32>
    %cst_61 = arith.constant 1.000000e+00 : f32
    %212 = vector.broadcast %cst_61 : f32 to vector<16x256xf32>
    %213 = arith.addf %212, %211 : vector<16x256xf32>
    %cst_62 = arith.constant 5.000000e-01 : f32
    %214 = vector.broadcast %cst_62 : f32 to vector<16x256xf32>
    %215 = arith.mulf %214, %213 : vector<16x256xf32>
    %216 = arith.mulf %203, %215 : vector<16x256xf32>
    %217 = arith.truncf %216 : vector<16x256xf32> to vector<16x256xbf16>
    %c0_63 = arith.constant 0 : index
    %c0_64 = arith.constant 0 : index
    %c0_65 = arith.constant 0 : index
    %218 = vector.load %arg9[%c0_63, %c0_64, %c0_65] : memref<2x256x128xbf16, #tpu.memory_space<vmem>>, vector<1x256x128xbf16>
    %219 = vector.shape_cast %218 : vector<1x256x128xbf16> to vector<256x128xbf16>
    %cst_66 = arith.constant dense<0.000000e+00> : vector<16x128xf32>
    %220 = tpu.matmul %217, %219, %cst_66 {dimension_numbers = #tpu.dot_dimension_numbers<[1], [0], [0], [1], [0, 0, 1, 1], [], []>} : vector<16x256xbf16>, vector<256x128xbf16>, vector<16x128xf32> -> vector<16x128xf32>
    %221 = vector.broadcast %24 : vector<1x128xf32> to vector<16x128xf32>
    %222 = arith.addf %220, %221 : vector<16x128xf32>
    %223 = arith.addf %173, %222 : vector<16x128xf32>
    %c1 = arith.constant 1 : index
    %c0_67 = arith.constant 0 : index
    %c0_68 = arith.constant 0 : index
    %224 = vector.load %arg10[%c1, %c0_67, %c0_68] : memref<2x6x128xf32, #tpu.memory_space<vmem>>, vector<1x6x128xf32>
    %225 = vector.shape_cast %224 : vector<1x6x128xf32> to vector<6x128xf32>
    %226 = vector.extract_strided_slice %225 {offsets = [0, 0], sizes = [1, 128], strides = [1, 1]} : vector<6x128xf32> to vector<1x128xf32>
    %227 = vector.extract_strided_slice %225 {offsets = [1, 0], sizes = [1, 128], strides = [1, 1]} : vector<6x128xf32> to vector<1x128xf32>
    %228 = vector.extract_strided_slice %225 {offsets = [2, 0], sizes = [1, 128], strides = [1, 1]} : vector<6x128xf32> to vector<1x128xf32>
    %229 = vector.extract_strided_slice %225 {offsets = [3, 0], sizes = [1, 128], strides = [1, 1]} : vector<6x128xf32> to vector<1x128xf32>
    %230 = vector.extract_strided_slice %225 {offsets = [4, 0], sizes = [1, 128], strides = [1, 1]} : vector<6x128xf32> to vector<1x128xf32>
    %231 = vector.extract_strided_slice %225 {offsets = [5, 0], sizes = [1, 128], strides = [1, 1]} : vector<6x128xf32> to vector<1x128xf32>
    %cst_69 = arith.constant dense<0.000000e+00> : vector<16xf32>
    %232 = vector.multi_reduction <add>, %223, %cst_69 [1] : vector<16x128xf32> to vector<16xf32>
    %233 = vector.shape_cast %232 : vector<16xf32> to vector<16x1xf32>
    %cst_70 = arith.constant 1.280000e+02 : f32
    %234 = vector.broadcast %cst_70 : f32 to vector<16x1xf32>
    %235 = arith.divf %233, %234 : vector<16x1xf32>
    %236 = vector.broadcast %235 : vector<16x1xf32> to vector<16x128xf32>
    %237 = arith.subf %223, %236 : vector<16x128xf32>
    %238 = arith.mulf %237, %237 : vector<16x128xf32>
    %cst_71 = arith.constant dense<0.000000e+00> : vector<16xf32>
    %239 = vector.multi_reduction <add>, %238, %cst_71 [1] : vector<16x128xf32> to vector<16xf32>
    %240 = vector.shape_cast %239 : vector<16xf32> to vector<16x1xf32>
    %cst_72 = arith.constant 1.280000e+02 : f32
    %241 = vector.broadcast %cst_72 : f32 to vector<16x1xf32>
    %242 = arith.divf %240, %241 : vector<16x1xf32>
    %243 = vector.broadcast %235 : vector<16x1xf32> to vector<16x128xf32>
    %244 = arith.subf %223, %243 : vector<16x128xf32>
    %cst_73 = arith.constant 9.99999997E-7 : f32
    %245 = vector.broadcast %cst_73 : f32 to vector<16x1xf32>
    %246 = arith.addf %242, %245 : vector<16x1xf32>
    %247 = math.rsqrt %246 : vector<16x1xf32>
    %248 = vector.broadcast %247 : vector<16x1xf32> to vector<16x128xf32>
    %249 = arith.mulf %244, %248 : vector<16x128xf32>
    %250 = vector.broadcast %226 : vector<1x128xf32> to vector<16x128xf32>
    %251 = arith.mulf %249, %250 : vector<16x128xf32>
    %252 = vector.broadcast %227 : vector<1x128xf32> to vector<16x128xf32>
    %253 = arith.addf %251, %252 : vector<16x128xf32>
    %254 = arith.truncf %253 : vector<16x128xf32> to vector<16x128xbf16>
    %c1_74 = arith.constant 1 : index
    %c0_75 = arith.constant 0 : index
    %c0_76 = arith.constant 0 : index
    %255 = vector.load %arg4[%c1_74, %c0_75, %c0_76] : memref<2x128x384xbf16, #tpu.memory_space<vmem>>, vector<1x128x384xbf16>
    %256 = vector.shape_cast %255 : vector<1x128x384xbf16> to vector<128x384xbf16>
    %cst_77 = arith.constant dense<0.000000e+00> : vector<16x384xf32>
    %257 = tpu.matmul %254, %256, %cst_77 {dimension_numbers = #tpu.dot_dimension_numbers<[1], [0], [0], [1], [0, 0, 1, 1], [], []>} : vector<16x128xbf16>, vector<128x384xbf16>, vector<16x384xf32> -> vector<16x384xf32>
    %c1_78 = arith.constant 1 : index
    %c0_79 = arith.constant 0 : index
    %c0_80 = arith.constant 0 : index
    %258 = vector.load %arg5[%c1_78, %c0_79, %c0_80] : memref<2x1x384xf32, #tpu.memory_space<vmem>>, vector<1x1x384xf32>
    %259 = vector.shape_cast %258 : vector<1x1x384xf32> to vector<1x384xf32>
    %260 = vector.broadcast %259 : vector<1x384xf32> to vector<16x384xf32>
    %261 = arith.addf %257, %260 : vector<16x384xf32>
    %262 = vector.extract_strided_slice %261 {offsets = [0, 0], sizes = [16, 128], strides = [1, 1]} : vector<16x384xf32> to vector<16x128xf32>
    %263 = vector.extract_strided_slice %261 {offsets = [0, 128], sizes = [16, 128], strides = [1, 1]} : vector<16x384xf32> to vector<16x128xf32>
    %264 = vector.extract_strided_slice %261 {offsets = [0, 256], sizes = [16, 128], strides = [1, 1]} : vector<16x384xf32> to vector<16x128xf32>
    %265 = vector.extract_strided_slice %262 {offsets = [0, 0], sizes = [16, 32], strides = [1, 1]} : vector<16x128xf32> to vector<16x32xf32>
    %266 = vector.shape_cast %265 : vector<16x32xf32> to vector<2x8x32xf32>
    %267 = arith.truncf %266 : vector<2x8x32xf32> to vector<2x8x32xbf16>
    %268 = vector.extract_strided_slice %263 {offsets = [0, 0], sizes = [16, 32], strides = [1, 1]} : vector<16x128xf32> to vector<16x32xf32>
    %269 = vector.shape_cast %268 : vector<16x32xf32> to vector<2x8x32xf32>
    %270 = arith.truncf %269 : vector<2x8x32xf32> to vector<2x8x32xbf16>
    %271 = vector.extract_strided_slice %264 {offsets = [0, 0], sizes = [16, 32], strides = [1, 1]} : vector<16x128xf32> to vector<16x32xf32>
    %272 = vector.shape_cast %271 : vector<16x32xf32> to vector<2x8x32xf32>
    %273 = arith.truncf %272 : vector<2x8x32xf32> to vector<2x8x32xbf16>
    "tpu.trace_start"() <{level = 10 : i32, message = "bqd,bkd->bqk"}> : () -> ()
    %cst_81 = arith.constant dense<0.000000e+00> : vector<2x8x8xf32>
    %274 = tpu.matmul %267, %270, %cst_81 {dimension_numbers = #tpu.dot_dimension_numbers<[2], [2], [1], [1], [0, 0, 0, 1, 1, 1], [0], [0]>} : vector<2x8x32xbf16>, vector<2x8x32xbf16>, vector<2x8x8xf32> -> vector<2x8x8xf32>
    "tpu.trace_stop"() : () -> ()
    %cst_82 = arith.constant 0.176776692 : f32
    %275 = vector.broadcast %cst_82 : f32 to vector<2x8x8xf32>
    %276 = arith.mulf %274, %275 : vector<2x8x8xf32>
    %277 = vector.broadcast %16 : vector<1x1x8xf32> to vector<2x8x8xf32>
    %278 = arith.addf %276, %277 : vector<2x8x8xf32>
    %cst_83 = arith.constant dense<0xFF800000> : vector<2x8xf32>
    %279 = vector.multi_reduction <maximumf>, %278, %cst_83 [2] : vector<2x8x8xf32> to vector<2x8xf32>
    %280 = vector.shape_cast %279 : vector<2x8xf32> to vector<2x8x1xf32>
    %281 = vector.broadcast %280 : vector<2x8x1xf32> to vector<2x8x8xf32>
    %282 = arith.subf %278, %281 : vector<2x8x8xf32>
    %283 = math.exp %282 : vector<2x8x8xf32>
    %cst_84 = arith.constant dense<0.000000e+00> : vector<2x8xf32>
    %284 = vector.multi_reduction <add>, %283, %cst_84 [2] : vector<2x8x8xf32> to vector<2x8xf32>
    %285 = vector.shape_cast %284 : vector<2x8xf32> to vector<2x8x1xf32>
    %286 = tpu.reciprocal %285 {approx = true} : vector<2x8x1xf32> -> vector<2x8x1xf32>
    %287 = vector.broadcast %286 : vector<2x8x1xf32> to vector<2x8x8xf32>
    %288 = arith.mulf %283, %287 : vector<2x8x8xf32>
    %289 = arith.truncf %288 : vector<2x8x8xf32> to vector<2x8x8xbf16>
    "tpu.trace_start"() <{level = 10 : i32, message = "bqk,bkd->bqd"}> : () -> ()
    %cst_85 = arith.constant dense<0.000000e+00> : vector<2x8x32xf32>
    %290 = tpu.matmul %289, %273, %cst_85 {dimension_numbers = #tpu.dot_dimension_numbers<[2], [1], [1], [2], [0, 0, 0, 1, 1, 2], [0], [0]>} : vector<2x8x8xbf16>, vector<2x8x32xbf16>, vector<2x8x32xf32> -> vector<2x8x32xf32>
    "tpu.trace_stop"() : () -> ()
    %291 = vector.shape_cast %290 : vector<2x8x32xf32> to vector<16x32xf32>
    %292 = vector.extract_strided_slice %262 {offsets = [0, 32], sizes = [16, 32], strides = [1, 1]} : vector<16x128xf32> to vector<16x32xf32>
    %293 = vector.shape_cast %292 : vector<16x32xf32> to vector<2x8x32xf32>
    %294 = arith.truncf %293 : vector<2x8x32xf32> to vector<2x8x32xbf16>
    %295 = vector.extract_strided_slice %263 {offsets = [0, 32], sizes = [16, 32], strides = [1, 1]} : vector<16x128xf32> to vector<16x32xf32>
    %296 = vector.shape_cast %295 : vector<16x32xf32> to vector<2x8x32xf32>
    %297 = arith.truncf %296 : vector<2x8x32xf32> to vector<2x8x32xbf16>
    %298 = vector.extract_strided_slice %264 {offsets = [0, 32], sizes = [16, 32], strides = [1, 1]} : vector<16x128xf32> to vector<16x32xf32>
    %299 = vector.shape_cast %298 : vector<16x32xf32> to vector<2x8x32xf32>
    %300 = arith.truncf %299 : vector<2x8x32xf32> to vector<2x8x32xbf16>
    "tpu.trace_start"() <{level = 10 : i32, message = "bqd,bkd->bqk"}> : () -> ()
    %cst_86 = arith.constant dense<0.000000e+00> : vector<2x8x8xf32>
    %301 = tpu.matmul %294, %297, %cst_86 {dimension_numbers = #tpu.dot_dimension_numbers<[2], [2], [1], [1], [0, 0, 0, 1, 1, 1], [0], [0]>} : vector<2x8x32xbf16>, vector<2x8x32xbf16>, vector<2x8x8xf32> -> vector<2x8x8xf32>
    "tpu.trace_stop"() : () -> ()
    %cst_87 = arith.constant 0.176776692 : f32
    %302 = vector.broadcast %cst_87 : f32 to vector<2x8x8xf32>
    %303 = arith.mulf %301, %302 : vector<2x8x8xf32>
    %304 = vector.broadcast %16 : vector<1x1x8xf32> to vector<2x8x8xf32>
    %305 = arith.addf %303, %304 : vector<2x8x8xf32>
    %cst_88 = arith.constant dense<0xFF800000> : vector<2x8xf32>
    %306 = vector.multi_reduction <maximumf>, %305, %cst_88 [2] : vector<2x8x8xf32> to vector<2x8xf32>
    %307 = vector.shape_cast %306 : vector<2x8xf32> to vector<2x8x1xf32>
    %308 = vector.broadcast %307 : vector<2x8x1xf32> to vector<2x8x8xf32>
    %309 = arith.subf %305, %308 : vector<2x8x8xf32>
    %310 = math.exp %309 : vector<2x8x8xf32>
    %cst_89 = arith.constant dense<0.000000e+00> : vector<2x8xf32>
    %311 = vector.multi_reduction <add>, %310, %cst_89 [2] : vector<2x8x8xf32> to vector<2x8xf32>
    %312 = vector.shape_cast %311 : vector<2x8xf32> to vector<2x8x1xf32>
    %313 = tpu.reciprocal %312 {approx = true} : vector<2x8x1xf32> -> vector<2x8x1xf32>
    %314 = vector.broadcast %313 : vector<2x8x1xf32> to vector<2x8x8xf32>
    %315 = arith.mulf %310, %314 : vector<2x8x8xf32>
    %316 = arith.truncf %315 : vector<2x8x8xf32> to vector<2x8x8xbf16>
    "tpu.trace_start"() <{level = 10 : i32, message = "bqk,bkd->bqd"}> : () -> ()
    %cst_90 = arith.constant dense<0.000000e+00> : vector<2x8x32xf32>
    %317 = tpu.matmul %316, %300, %cst_90 {dimension_numbers = #tpu.dot_dimension_numbers<[2], [1], [1], [2], [0, 0, 0, 1, 1, 2], [0], [0]>} : vector<2x8x8xbf16>, vector<2x8x32xbf16>, vector<2x8x32xf32> -> vector<2x8x32xf32>
    "tpu.trace_stop"() : () -> ()
    %318 = vector.shape_cast %317 : vector<2x8x32xf32> to vector<16x32xf32>
    %319 = vector.extract_strided_slice %262 {offsets = [0, 64], sizes = [16, 32], strides = [1, 1]} : vector<16x128xf32> to vector<16x32xf32>
    %320 = vector.shape_cast %319 : vector<16x32xf32> to vector<2x8x32xf32>
    %321 = arith.truncf %320 : vector<2x8x32xf32> to vector<2x8x32xbf16>
    %322 = vector.extract_strided_slice %263 {offsets = [0, 64], sizes = [16, 32], strides = [1, 1]} : vector<16x128xf32> to vector<16x32xf32>
    %323 = vector.shape_cast %322 : vector<16x32xf32> to vector<2x8x32xf32>
    %324 = arith.truncf %323 : vector<2x8x32xf32> to vector<2x8x32xbf16>
    %325 = vector.extract_strided_slice %264 {offsets = [0, 64], sizes = [16, 32], strides = [1, 1]} : vector<16x128xf32> to vector<16x32xf32>
    %326 = vector.shape_cast %325 : vector<16x32xf32> to vector<2x8x32xf32>
    %327 = arith.truncf %326 : vector<2x8x32xf32> to vector<2x8x32xbf16>
    "tpu.trace_start"() <{level = 10 : i32, message = "bqd,bkd->bqk"}> : () -> ()
    %cst_91 = arith.constant dense<0.000000e+00> : vector<2x8x8xf32>
    %328 = tpu.matmul %321, %324, %cst_91 {dimension_numbers = #tpu.dot_dimension_numbers<[2], [2], [1], [1], [0, 0, 0, 1, 1, 1], [0], [0]>} : vector<2x8x32xbf16>, vector<2x8x32xbf16>, vector<2x8x8xf32> -> vector<2x8x8xf32>
    "tpu.trace_stop"() : () -> ()
    %cst_92 = arith.constant 0.176776692 : f32
    %329 = vector.broadcast %cst_92 : f32 to vector<2x8x8xf32>
    %330 = arith.mulf %328, %329 : vector<2x8x8xf32>
    %331 = vector.broadcast %16 : vector<1x1x8xf32> to vector<2x8x8xf32>
    %332 = arith.addf %330, %331 : vector<2x8x8xf32>
    %cst_93 = arith.constant dense<0xFF800000> : vector<2x8xf32>
    %333 = vector.multi_reduction <maximumf>, %332, %cst_93 [2] : vector<2x8x8xf32> to vector<2x8xf32>
    %334 = vector.shape_cast %333 : vector<2x8xf32> to vector<2x8x1xf32>
    %335 = vector.broadcast %334 : vector<2x8x1xf32> to vector<2x8x8xf32>
    %336 = arith.subf %332, %335 : vector<2x8x8xf32>
    %337 = math.exp %336 : vector<2x8x8xf32>
    %cst_94 = arith.constant dense<0.000000e+00> : vector<2x8xf32>
    %338 = vector.multi_reduction <add>, %337, %cst_94 [2] : vector<2x8x8xf32> to vector<2x8xf32>
    %339 = vector.shape_cast %338 : vector<2x8xf32> to vector<2x8x1xf32>
    %340 = tpu.reciprocal %339 {approx = true} : vector<2x8x1xf32> -> vector<2x8x1xf32>
    %341 = vector.broadcast %340 : vector<2x8x1xf32> to vector<2x8x8xf32>
    %342 = arith.mulf %337, %341 : vector<2x8x8xf32>
    %343 = arith.truncf %342 : vector<2x8x8xf32> to vector<2x8x8xbf16>
    "tpu.trace_start"() <{level = 10 : i32, message = "bqk,bkd->bqd"}> : () -> ()
    %cst_95 = arith.constant dense<0.000000e+00> : vector<2x8x32xf32>
    %344 = tpu.matmul %343, %327, %cst_95 {dimension_numbers = #tpu.dot_dimension_numbers<[2], [1], [1], [2], [0, 0, 0, 1, 1, 2], [0], [0]>} : vector<2x8x8xbf16>, vector<2x8x32xbf16>, vector<2x8x32xf32> -> vector<2x8x32xf32>
    "tpu.trace_stop"() : () -> ()
    %345 = vector.shape_cast %344 : vector<2x8x32xf32> to vector<16x32xf32>
    %346 = vector.extract_strided_slice %262 {offsets = [0, 96], sizes = [16, 32], strides = [1, 1]} : vector<16x128xf32> to vector<16x32xf32>
    %347 = vector.shape_cast %346 : vector<16x32xf32> to vector<2x8x32xf32>
    %348 = arith.truncf %347 : vector<2x8x32xf32> to vector<2x8x32xbf16>
    %349 = vector.extract_strided_slice %263 {offsets = [0, 96], sizes = [16, 32], strides = [1, 1]} : vector<16x128xf32> to vector<16x32xf32>
    %350 = vector.shape_cast %349 : vector<16x32xf32> to vector<2x8x32xf32>
    %351 = arith.truncf %350 : vector<2x8x32xf32> to vector<2x8x32xbf16>
    %352 = vector.extract_strided_slice %264 {offsets = [0, 96], sizes = [16, 32], strides = [1, 1]} : vector<16x128xf32> to vector<16x32xf32>
    %353 = vector.shape_cast %352 : vector<16x32xf32> to vector<2x8x32xf32>
    %354 = arith.truncf %353 : vector<2x8x32xf32> to vector<2x8x32xbf16>
    "tpu.trace_start"() <{level = 10 : i32, message = "bqd,bkd->bqk"}> : () -> ()
    %cst_96 = arith.constant dense<0.000000e+00> : vector<2x8x8xf32>
    %355 = tpu.matmul %348, %351, %cst_96 {dimension_numbers = #tpu.dot_dimension_numbers<[2], [2], [1], [1], [0, 0, 0, 1, 1, 1], [0], [0]>} : vector<2x8x32xbf16>, vector<2x8x32xbf16>, vector<2x8x8xf32> -> vector<2x8x8xf32>
    "tpu.trace_stop"() : () -> ()
    %cst_97 = arith.constant 0.176776692 : f32
    %356 = vector.broadcast %cst_97 : f32 to vector<2x8x8xf32>
    %357 = arith.mulf %355, %356 : vector<2x8x8xf32>
    %358 = vector.broadcast %16 : vector<1x1x8xf32> to vector<2x8x8xf32>
    %359 = arith.addf %357, %358 : vector<2x8x8xf32>
    %cst_98 = arith.constant dense<0xFF800000> : vector<2x8xf32>
    %360 = vector.multi_reduction <maximumf>, %359, %cst_98 [2] : vector<2x8x8xf32> to vector<2x8xf32>
    %361 = vector.shape_cast %360 : vector<2x8xf32> to vector<2x8x1xf32>
    %362 = vector.broadcast %361 : vector<2x8x1xf32> to vector<2x8x8xf32>
    %363 = arith.subf %359, %362 : vector<2x8x8xf32>
    %364 = math.exp %363 : vector<2x8x8xf32>
    %cst_99 = arith.constant dense<0.000000e+00> : vector<2x8xf32>
    %365 = vector.multi_reduction <add>, %364, %cst_99 [2] : vector<2x8x8xf32> to vector<2x8xf32>
    %366 = vector.shape_cast %365 : vector<2x8xf32> to vector<2x8x1xf32>
    %367 = tpu.reciprocal %366 {approx = true} : vector<2x8x1xf32> -> vector<2x8x1xf32>
    %368 = vector.broadcast %367 : vector<2x8x1xf32> to vector<2x8x8xf32>
    %369 = arith.mulf %364, %368 : vector<2x8x8xf32>
    %370 = arith.truncf %369 : vector<2x8x8xf32> to vector<2x8x8xbf16>
    "tpu.trace_start"() <{level = 10 : i32, message = "bqk,bkd->bqd"}> : () -> ()
    %cst_100 = arith.constant dense<0.000000e+00> : vector<2x8x32xf32>
    %371 = tpu.matmul %370, %354, %cst_100 {dimension_numbers = #tpu.dot_dimension_numbers<[2], [1], [1], [2], [0, 0, 0, 1, 1, 2], [0], [0]>} : vector<2x8x8xbf16>, vector<2x8x32xbf16>, vector<2x8x32xf32> -> vector<2x8x32xf32>
    "tpu.trace_stop"() : () -> ()
    %372 = vector.shape_cast %371 : vector<2x8x32xf32> to vector<16x32xf32>
    %373 = tpu.concatenate %291, %318, %345, %372 in 1 : vector<16x32xf32>, vector<16x32xf32>, vector<16x32xf32>, vector<16x32xf32> -> vector<16x128xf32>
    %374 = arith.truncf %373 : vector<16x128xf32> to vector<16x128xbf16>
    %c1_101 = arith.constant 1 : index
    %c0_102 = arith.constant 0 : index
    %c0_103 = arith.constant 0 : index
    %375 = vector.load %arg6[%c1_101, %c0_102, %c0_103] : memref<2x128x128xbf16, #tpu.memory_space<vmem>>, vector<1x128x128xbf16>
    %376 = vector.shape_cast %375 : vector<1x128x128xbf16> to vector<128x128xbf16>
    %cst_104 = arith.constant dense<0.000000e+00> : vector<16x128xf32>
    %377 = tpu.matmul %374, %376, %cst_104 {dimension_numbers = #tpu.dot_dimension_numbers<[1], [0], [0], [1], [0, 0, 1, 1], [], []>} : vector<16x128xbf16>, vector<128x128xbf16>, vector<16x128xf32> -> vector<16x128xf32>
    %378 = arith.addf %223, %377 : vector<16x128xf32>
    %379 = vector.broadcast %230 : vector<1x128xf32> to vector<16x128xf32>
    %380 = arith.addf %378, %379 : vector<16x128xf32>
    %cst_105 = arith.constant dense<0.000000e+00> : vector<16xf32>
    %381 = vector.multi_reduction <add>, %380, %cst_105 [1] : vector<16x128xf32> to vector<16xf32>
    %382 = vector.shape_cast %381 : vector<16xf32> to vector<16x1xf32>
    %cst_106 = arith.constant 1.280000e+02 : f32
    %383 = vector.broadcast %cst_106 : f32 to vector<16x1xf32>
    %384 = arith.divf %382, %383 : vector<16x1xf32>
    %385 = vector.broadcast %384 : vector<16x1xf32> to vector<16x128xf32>
    %386 = arith.subf %380, %385 : vector<16x128xf32>
    %387 = arith.mulf %386, %386 : vector<16x128xf32>
    %cst_107 = arith.constant dense<0.000000e+00> : vector<16xf32>
    %388 = vector.multi_reduction <add>, %387, %cst_107 [1] : vector<16x128xf32> to vector<16xf32>
    %389 = vector.shape_cast %388 : vector<16xf32> to vector<16x1xf32>
    %cst_108 = arith.constant 1.280000e+02 : f32
    %390 = vector.broadcast %cst_108 : f32 to vector<16x1xf32>
    %391 = arith.divf %389, %390 : vector<16x1xf32>
    %392 = vector.broadcast %384 : vector<16x1xf32> to vector<16x128xf32>
    %393 = arith.subf %380, %392 : vector<16x128xf32>
    %cst_109 = arith.constant 9.99999997E-7 : f32
    %394 = vector.broadcast %cst_109 : f32 to vector<16x1xf32>
    %395 = arith.addf %391, %394 : vector<16x1xf32>
    %396 = math.rsqrt %395 : vector<16x1xf32>
    %397 = vector.broadcast %396 : vector<16x1xf32> to vector<16x128xf32>
    %398 = arith.mulf %393, %397 : vector<16x128xf32>
    %399 = vector.broadcast %228 : vector<1x128xf32> to vector<16x128xf32>
    %400 = arith.mulf %398, %399 : vector<16x128xf32>
    %401 = vector.broadcast %229 : vector<1x128xf32> to vector<16x128xf32>
    %402 = arith.addf %400, %401 : vector<16x128xf32>
    %403 = arith.truncf %402 : vector<16x128xf32> to vector<16x128xbf16>
    %c1_110 = arith.constant 1 : index
    %c0_111 = arith.constant 0 : index
    %c0_112 = arith.constant 0 : index
    %404 = vector.load %arg7[%c1_110, %c0_111, %c0_112] : memref<2x128x256xbf16, #tpu.memory_space<vmem>>, vector<1x128x256xbf16>
    %405 = vector.shape_cast %404 : vector<1x128x256xbf16> to vector<128x256xbf16>
    %cst_113 = arith.constant dense<0.000000e+00> : vector<16x256xf32>
    %406 = tpu.matmul %403, %405, %cst_113 {dimension_numbers = #tpu.dot_dimension_numbers<[1], [0], [0], [1], [0, 0, 1, 1], [], []>} : vector<16x128xbf16>, vector<128x256xbf16>, vector<16x256xf32> -> vector<16x256xf32>
    %c1_114 = arith.constant 1 : index
    %c0_115 = arith.constant 0 : index
    %c0_116 = arith.constant 0 : index
    %407 = vector.load %arg8[%c1_114, %c0_115, %c0_116] : memref<2x1x256xf32, #tpu.memory_space<vmem>>, vector<1x1x256xf32>
    %408 = vector.shape_cast %407 : vector<1x1x256xf32> to vector<1x256xf32>
    %409 = vector.broadcast %408 : vector<1x256xf32> to vector<16x256xf32>
    %410 = arith.addf %406, %409 : vector<16x256xf32>
    %411 = arith.mulf %410, %410 : vector<16x256xf32>
    %412 = arith.mulf %410, %411 : vector<16x256xf32>
    %cst_117 = arith.constant 4.471500e-02 : f32
    %413 = vector.broadcast %cst_117 : f32 to vector<16x256xf32>
    %414 = arith.mulf %413, %412 : vector<16x256xf32>
    %415 = arith.addf %410, %414 : vector<16x256xf32>
    %cst_118 = arith.constant 0.797884583 : f32
    %416 = vector.broadcast %cst_118 : f32 to vector<16x256xf32>
    %417 = arith.mulf %416, %415 : vector<16x256xf32>
    %418 = math.tanh %417 : vector<16x256xf32>
    %cst_119 = arith.constant 1.000000e+00 : f32
    %419 = vector.broadcast %cst_119 : f32 to vector<16x256xf32>
    %420 = arith.addf %419, %418 : vector<16x256xf32>
    %cst_120 = arith.constant 5.000000e-01 : f32
    %421 = vector.broadcast %cst_120 : f32 to vector<16x256xf32>
    %422 = arith.mulf %421, %420 : vector<16x256xf32>
    %423 = arith.mulf %410, %422 : vector<16x256xf32>
    %424 = arith.truncf %423 : vector<16x256xf32> to vector<16x256xbf16>
    %c1_121 = arith.constant 1 : index
    %c0_122 = arith.constant 0 : index
    %c0_123 = arith.constant 0 : index
    %425 = vector.load %arg9[%c1_121, %c0_122, %c0_123] : memref<2x256x128xbf16, #tpu.memory_space<vmem>>, vector<1x256x128xbf16>
    %426 = vector.shape_cast %425 : vector<1x256x128xbf16> to vector<256x128xbf16>
    %cst_124 = arith.constant dense<0.000000e+00> : vector<16x128xf32>
    %427 = tpu.matmul %424, %426, %cst_124 {dimension_numbers = #tpu.dot_dimension_numbers<[1], [0], [0], [1], [0, 0, 1, 1], [], []>} : vector<16x256xbf16>, vector<256x128xbf16>, vector<16x128xf32> -> vector<16x128xf32>
    %428 = vector.broadcast %231 : vector<1x128xf32> to vector<16x128xf32>
    %429 = arith.addf %427, %428 : vector<16x128xf32>
    %430 = arith.addf %380, %429 : vector<16x128xf32>
    %431 = vector.shape_cast %430 : vector<16x128xf32> to vector<2x8x128xf32>
    %432 = vector.extract_strided_slice %431 {offsets = [0, 0, 0], sizes = [2, 1, 128], strides = [1, 1, 1]} : vector<2x8x128xf32> to vector<2x1x128xf32>
    %433 = vector.shape_cast %432 : vector<2x1x128xf32> to vector<2x128xf32>
    %c0_125 = arith.constant 0 : index
    %c0_126 = arith.constant 0 : index
    %434 = vector.load %arg11[%c0_125, %c0_126] : memref<2x128xf32, #tpu.memory_space<vmem>>, vector<1x128xf32>
    %c1_127 = arith.constant 1 : index
    %c0_128 = arith.constant 0 : index
    %435 = vector.load %arg11[%c1_127, %c0_128] : memref<2x128xf32, #tpu.memory_space<vmem>>, vector<1x128xf32>
    %cst_129 = arith.constant dense<0.000000e+00> : vector<2xf32>
    %436 = vector.multi_reduction <add>, %433, %cst_129 [1] : vector<2x128xf32> to vector<2xf32>
    %437 = vector.shape_cast %436 : vector<2xf32> to vector<2x1xf32>
    %cst_130 = arith.constant 1.280000e+02 : f32
    %438 = vector.broadcast %cst_130 : f32 to vector<2x1xf32>
    %439 = arith.divf %437, %438 : vector<2x1xf32>
    %440 = vector.broadcast %439 : vector<2x1xf32> to vector<2x128xf32>
    %441 = arith.subf %433, %440 : vector<2x128xf32>
    %442 = arith.mulf %441, %441 : vector<2x128xf32>
    %cst_131 = arith.constant dense<0.000000e+00> : vector<2xf32>
    %443 = vector.multi_reduction <add>, %442, %cst_131 [1] : vector<2x128xf32> to vector<2xf32>
    %444 = vector.shape_cast %443 : vector<2xf32> to vector<2x1xf32>
    %cst_132 = arith.constant 1.280000e+02 : f32
    %445 = vector.broadcast %cst_132 : f32 to vector<2x1xf32>
    %446 = arith.divf %444, %445 : vector<2x1xf32>
    %447 = vector.broadcast %439 : vector<2x1xf32> to vector<2x128xf32>
    %448 = arith.subf %433, %447 : vector<2x128xf32>
    %cst_133 = arith.constant 9.99999997E-7 : f32
    %449 = vector.broadcast %cst_133 : f32 to vector<2x1xf32>
    %450 = arith.addf %446, %449 : vector<2x1xf32>
    %451 = math.rsqrt %450 : vector<2x1xf32>
    %452 = vector.broadcast %451 : vector<2x1xf32> to vector<2x128xf32>
    %453 = arith.mulf %448, %452 : vector<2x128xf32>
    %454 = vector.broadcast %434 : vector<1x128xf32> to vector<2x128xf32>
    %455 = arith.mulf %453, %454 : vector<2x128xf32>
    %456 = vector.broadcast %435 : vector<1x128xf32> to vector<2x128xf32>
    %457 = arith.addf %455, %456 : vector<2x128xf32>
    %458 = arith.truncf %457 : vector<2x128xf32> to vector<2x128xbf16>
    %c0_134 = arith.constant 0 : index
    %c0_135 = arith.constant 0 : index
    %459 = vector.load %arg12[%c0_134, %c0_135] : memref<128x64xbf16, #tpu.memory_space<vmem>>, vector<128x64xbf16>
    %cst_136 = arith.constant dense<0.000000e+00> : vector<2x64xf32>
    %460 = tpu.matmul %458, %459, %cst_136 {dimension_numbers = #tpu.dot_dimension_numbers<[1], [0], [0], [1], [0, 0, 1, 1], [], []>} : vector<2x128xbf16>, vector<128x64xbf16>, vector<2x64xf32> -> vector<2x64xf32>
    %c0_137 = arith.constant 0 : index
    %c0_138 = arith.constant 0 : index
    %461 = vector.load %arg13[%c0_137, %c0_138] : memref<1x64xf32, #tpu.memory_space<vmem>>, vector<1x64xf32>
    %462 = vector.broadcast %461 : vector<1x64xf32> to vector<2x64xf32>
    %463 = arith.addf %460, %462 : vector<2x64xf32>
    %464 = math.tanh %463 : vector<2x64xf32>
    %465 = arith.truncf %464 : vector<2x64xf32> to vector<2x64xbf16>
    %c0_139 = arith.constant 0 : index
    %c0_140 = arith.constant 0 : index
    %466 = vector.load %arg14[%c0_139, %c0_140] : memref<64x128xbf16, #tpu.memory_space<vmem>>, vector<64x128xbf16>
    %cst_141 = arith.constant dense<0.000000e+00> : vector<2x128xf32>
    %467 = tpu.matmul %465, %466, %cst_141 {dimension_numbers = #tpu.dot_dimension_numbers<[1], [0], [0], [1], [0, 0, 1, 1], [], []>} : vector<2x64xbf16>, vector<64x128xbf16>, vector<2x128xf32> -> vector<2x128xf32>
    %c0_142 = arith.constant 0 : index
    %c0_143 = arith.constant 0 : index
    %468 = vector.load %arg15[%c0_142, %c0_143] : memref<1x128xf32, #tpu.memory_space<vmem>>, vector<1x128xf32>
    %469 = vector.broadcast %468 : vector<1x128xf32> to vector<2x128xf32>
    %470 = arith.addf %467, %469 : vector<2x128xf32>
    %471 = vector.shape_cast %470 : vector<2x128xf32> to vector<2x1x128xf32>
    %c0_144 = arith.constant 0 : index
    %c0_145 = arith.constant 0 : index
    %c0_146 = arith.constant 0 : index
    %472 = vector.load %arg16[%c0_144, %c0_145, %c0_146] : memref<2x1x128xf32, #tpu.memory_space<vmem>>, vector<2x1x128xf32>
    tpu.vector_store %arg16[%c0_144, %c0_145, %c0_146], %471 {strides = array<i32>} : memref<2x1x128xf32, #tpu.memory_space<vmem>>, vector<2x1x128xf32>,
    return
  }
  func.func @transform_0(%arg0: i32) -> (i32, i32, i32) {
    %c0_i32 = arith.constant 0 : i32
    %c0_i32_0 = arith.constant 0 : i32
    %c0_i32_1 = arith.constant 0 : i32
    return %arg0, %c0_i32, %c0_i32_0 : i32, i32, i32
  }
  func.func @transform_1(%arg0: i32) -> (i32, i32) {
    %c0_i32 = arith.constant 0 : i32
    %c0_i32_0 = arith.constant 0 : i32
    %c0_i32_1 = arith.constant 0 : i32
    return %c0_i32, %c0_i32_0 : i32, i32
  }
  func.func @transform_2(%arg0: i32) -> (i32, i32) {
    %c0_i32 = arith.constant 0 : i32
    %c0_i32_0 = arith.constant 0 : i32
    %c0_i32_1 = arith.constant 0 : i32
    return %c0_i32, %c0_i32_0 : i32, i32
  }
  func.func @transform_3(%arg0: i32) -> (i32, i32, i32) {
    %c0_i32 = arith.constant 0 : i32
    %c0_i32_0 = arith.constant 0 : i32
    %c0_i32_1 = arith.constant 0 : i32
    %c0_i32_2 = arith.constant 0 : i32
    return %c0_i32, %c0_i32_0, %c0_i32_1 : i32, i32, i32
  }
  func.func @transform_4(%arg0: i32) -> (i32, i32, i32) {
    %c0_i32 = arith.constant 0 : i32
    %c0_i32_0 = arith.constant 0 : i32
    %c0_i32_1 = arith.constant 0 : i32
    %c0_i32_2 = arith.constant 0 : i32
    return %c0_i32, %c0_i32_0, %c0_i32_1 : i32, i32, i32
  }
  func.func @transform_5(%arg0: i32) -> (i32, i32, i32) {
    %c0_i32 = arith.constant 0 : i32
    %c0_i32_0 = arith.constant 0 : i32
    %c0_i32_1 = arith.constant 0 : i32
    %c0_i32_2 = arith.constant 0 : i32
    return %c0_i32, %c0_i32_0, %c0_i32_1 : i32, i32, i32
  }
  func.func @transform_6(%arg0: i32) -> (i32, i32, i32) {
    %c0_i32 = arith.constant 0 : i32
    %c0_i32_0 = arith.constant 0 : i32
    %c0_i32_1 = arith.constant 0 : i32
    %c0_i32_2 = arith.constant 0 : i32
    return %c0_i32, %c0_i32_0, %c0_i32_1 : i32, i32, i32
  }
  func.func @transform_7(%arg0: i32) -> (i32, i32, i32) {
    %c0_i32 = arith.constant 0 : i32
    %c0_i32_0 = arith.constant 0 : i32
    %c0_i32_1 = arith.constant 0 : i32
    %c0_i32_2 = arith.constant 0 : i32
    return %c0_i32, %c0_i32_0, %c0_i32_1 : i32, i32, i32
  }
  func.func @transform_8(%arg0: i32) -> (i32, i32, i32) {
    %c0_i32 = arith.constant 0 : i32
    %c0_i32_0 = arith.constant 0 : i32
    %c0_i32_1 = arith.constant 0 : i32
    %c0_i32_2 = arith.constant 0 : i32
    return %c0_i32, %c0_i32_0, %c0_i32_1 : i32, i32, i32
  }
  func.func @transform_9(%arg0: i32) -> (i32, i32, i32) {
    %c0_i32 = arith.constant 0 : i32
    %c0_i32_0 = arith.constant 0 : i32
    %c0_i32_1 = arith.constant 0 : i32
    %c0_i32_2 = arith.constant 0 : i32
    return %c0_i32, %c0_i32_0, %c0_i32_1 : i32, i32, i32
  }
  func.func @transform_10(%arg0: i32) -> (i32, i32) {
    %c0_i32 = arith.constant 0 : i32
    %c0_i32_0 = arith.constant 0 : i32
    %c0_i32_1 = arith.constant 0 : i32
    return %c0_i32, %c0_i32_0 : i32, i32
  }
  func.func @transform_11(%arg0: i32) -> (i32, i32) {
    %c0_i32 = arith.constant 0 : i32
    %c0_i32_0 = arith.constant 0 : i32
    %c0_i32_1 = arith.constant 0 : i32
    return %c0_i32, %c0_i32_0 : i32, i32
  }
  func.func @transform_12(%arg0: i32) -> (i32, i32) {
    %c0_i32 = arith.constant 0 : i32
    %c0_i32_0 = arith.constant 0 : i32
    %c0_i32_1 = arith.constant 0 : i32
    return %c0_i32, %c0_i32_0 : i32, i32
  }
  func.func @transform_13(%arg0: i32) -> (i32, i32) {
    %c0_i32 = arith.constant 0 : i32
    %c0_i32_0 = arith.constant 0 : i32
    %c0_i32_1 = arith.constant 0 : i32
    return %c0_i32, %c0_i32_0 : i32, i32
  }
  func.func @transform_14(%arg0: i32) -> (i32, i32) {
    %c0_i32 = arith.constant 0 : i32
    %c0_i32_0 = arith.constant 0 : i32
    %c0_i32_1 = arith.constant 0 : i32
    return %c0_i32, %c0_i32_0 : i32, i32
  }
  func.func @transform_15(%arg0: i32) -> (i32, i32, i32) {
    %c0_i32 = arith.constant 0 : i32
    %c0_i32_0 = arith.constant 0 : i32
    %c0_i32_1 = arith.constant 0 : i32
    return %arg0, %c0_i32, %c0_i32_0 : i32, i32, i32
  }
}

</mosaic_0001>

<llo_original>
// kernel: saxs_vit_forward.1
$region0: #{saxs_vit_forward.1}
  #allocation0 [shape = 'u32[]', space=smem, size = 0x4, offset = 0x4, fixed_abs, tag = 'smem constant byte address 0x4 - core index']
  #allocation1 [shape = 'u32[144,128]{1,0:T(1,128)}', space=vmem, size = 0x12000, scoped, tag = 'internal scratch']
  %s0 = inlined_call_operand.vmem [shape: f32[2,8,768], index: 0, kind: input, shape index: {}]
  %s1 = inlined_call_operand.vmem [shape: f32[8,128], index: 1, kind: input, shape index: {}]
  %s2 = inlined_call_operand.vmem [shape: bf16[768,128], index: 2, kind: input, shape index: {}]
  %s3 = inlined_call_operand.vmem [shape: bf16[2,128,384], index: 3, kind: input, shape index: {}]
  %s4 = inlined_call_operand.vmem [shape: f32[2,1,384], index: 4, kind: input, shape index: {}]
  %s5 = inlined_call_operand.vmem [shape: bf16[2,128,128], index: 5, kind: input, shape index: {}]
  %s6 = inlined_call_operand.vmem [shape: bf16[2,128,256], index: 6, kind: input, shape index: {}]
  %s7 = inlined_call_operand.vmem [shape: f32[2,1,256], index: 7, kind: input, shape index: {}]
  %s8 = inlined_call_operand.vmem [shape: bf16[2,256,128], index: 8, kind: input, shape index: {}]
  %s9 = inlined_call_operand.vmem [shape: f32[2,6,128], index: 9, kind: input, shape index: {}]
  %s10 = inlined_call_operand.vmem [shape: f32[2,128], index: 10, kind: input, shape index: {}]
  %s11 = inlined_call_operand.vmem [shape: bf16[128,64], index: 11, kind: input, shape index: {}]
  %s12 = inlined_call_operand.vmem [shape: f32[1,64], index: 12, kind: input, shape index: {}]
  %s13 = inlined_call_operand.vmem [shape: bf16[64,128], index: 13, kind: input, shape index: {}]
  %s14 = inlined_call_operand.vmem [shape: f32[1,128], index: 14, kind: input, shape index: {}]
  %s15 = inlined_call_operand.hbm [shape: f32[2,1,128], index: 15, kind: output, shape index: {}]
  %s16 = sld [smem:[#allocation0]]
  $region70: #{saxs_vit_forward.1} parent=0
    _
  %s18 = ssub.s32 1, %s16
  %s19 = scalar_select 0, %s18, %s16
  $region1: #{saxs_vit_forward.1} parent=0
    #allocation2 [shape = 'u8[1024]{0}', space=vmem, size = 0x400, scoped, tag = 'output window, operand 0, single buffered']
    #allocation3 [shape = 's32[1]{0}', space=sflag, size = 0x4, scoped, tag = 'scoped memory for saxs_vit_forward.1']
    %20 = vsyncpa [#allocation3], 0
    // Predicated region
    $region2: #{saxs_vit_forward.1} parent=1 // pred_check
      _
    $region3: #{saxs_vit_forward.1} parent=1 // pred_check_branch
      %22 = sbr.rel (0) target = $region5
    $region4: #{saxs_vit_forward.1} parent=1 // pred_region
      _
    $region5: #{saxs_vit_forward.1} parent=1 // pred_fallthru
      _
    // Predicated region
    $region6: #{saxs_vit_forward.1} parent=1 // pred_check
      _
    $region7: #{saxs_vit_forward.1} parent=1 // pred_check_branch
      %24 = sbr.rel (0) target = $region9
    $region8: #{saxs_vit_forward.1} parent=1 // pred_region
      _
    $region9: #{saxs_vit_forward.1} parent=1 // pred_fallthru
      _
    // Predicated region
    $region10: #{saxs_vit_forward.1} parent=1 // pred_check
      _
    $region11: #{saxs_vit_forward.1} parent=1 // pred_check_branch
      %26 = sbr.rel (0) target = $region13
    $region12: #{saxs_vit_forward.1} parent=1 // pred_region
      _
    $region13: #{saxs_vit_forward.1} parent=1 // pred_fallthru
      _
    // Predicated region
    $region14: #{saxs_vit_forward.1} parent=1 // pred_check
      _
    $region15: #{saxs_vit_forward.1} parent=1 // pred_check_branch
      %28 = sbr.rel (0) target = $region17
    $region16: #{saxs_vit_forward.1} parent=1 // pred_region
      _
    $region17: #{saxs_vit_forward.1} parent=1 // pred_fallthru
      _
    // Predicated region
    $region18: #{saxs_vit_forward.1} parent=1 // pred_check
      _
    $region19: #{saxs_vit_forward.1} parent=1 // pred_check_branch
      %30 = sbr.rel (0) target = $region21
    $region20: #{saxs_vit_forward.1} parent=1 // pred_region
      _
    $region21: #{saxs_vit_forward.1} parent=1 // pred_fallthru
      _
    // Predicated region
    $region22: #{saxs_vit_forward.1} parent=1 // pred_check
      _
    $region23: #{saxs_vit_forward.1} parent=1 // pred_check_branch
      %32 = sbr.rel (0) target = $region25
    $region24: #{saxs_vit_forward.1} parent=1 // pred_region
      _
    $region25: #{saxs_vit_forward.1} parent=1 // pred_fallthru
      _
    // Predicated region
    $region26: #{saxs_vit_forward.1} parent=1 // pred_check
      _
    $region27: #{saxs_vit_forward.1} parent=1 // pred_check_branch
      %34 = sbr.rel (0) target = $region29
    $region28: #{saxs_vit_forward.1} parent=1 // pred_region
      _
    $region29: #{saxs_vit_forward.1} parent=1 // pred_fallthru
      _
    // Predicated region
    $region30: #{saxs_vit_forward.1} parent=1 // pred_check
      _
    $region31: #{saxs_vit_forward.1} parent=1 // pred_check_branch
      %36 = sbr.rel (0) target = $region33
    $region32: #{saxs_vit_forward.1} parent=1 // pred_region
      _
    $region33: #{saxs_vit_forward.1} parent=1 // pred_fallthru
      _
    // Predicated region
    $region34: #{saxs_vit_forward.1} parent=1 // pred_check
      _
    $region35: #{saxs_vit_forward.1} parent=1 // pred_check_branch
      %38 = sbr.rel (0) target = $region37
    $region36: #{saxs_vit_forward.1} parent=1 // pred_region
      _
    $region37: #{saxs_vit_forward.1} parent=1 // pred_fallthru
      _
    // Predicated region
    $region38: #{saxs_vit_forward.1} parent=1 // pred_check
      _
    $region39: #{saxs_vit_forward.1} parent=1 // pred_check_branch
      %40 = sbr.rel (0) target = $region41
    $region40: #{saxs_vit_forward.1} parent=1 // pred_region
      _
    $region41: #{saxs_vit_forward.1} parent=1 // pred_fallthru
      _
    // Predicated region
    $region42: #{saxs_vit_forward.1} parent=1 // pred_check
      _
    $region43: #{saxs_vit_forward.1} parent=1 // pred_check_branch
      %42 = sbr.rel (0) target = $region45
    $region44: #{saxs_vit_forward.1} parent=1 // pred_region
      _
    $region45: #{saxs_vit_forward.1} parent=1 // pred_fallthru
      _
    // Predicated region
    $region46: #{saxs_vit_forward.1} parent=1 // pred_check
      _
    $region47: #{saxs_vit_forward.1} parent=1 // pred_check_branch
      %44 = sbr.rel (0) target = $region49
    $region48: #{saxs_vit_forward.1} parent=1 // pred_region
      _
    $region49: #{saxs_vit_forward.1} parent=1 // pred_fallthru
      _
    // Predicated region
    $region50: #{saxs_vit_forward.1} parent=1 // pred_check
      _
    $region51: #{saxs_vit_forward.1} parent=1 // pred_check_branch
      %46 = sbr.rel (0) target = $region53
    $region52: #{saxs_vit_forward.1} parent=1 // pred_region
      _
    $region53: #{saxs_vit_forward.1} parent=1 // pred_fallthru
      _
    // Predicated region
    $region54: #{saxs_vit_forward.1} parent=1 // pred_check
      _
    $region55: #{saxs_vit_forward.1} parent=1 // pred_check_branch
      %48 = sbr.rel (0) target = $region57
    $region56: #{saxs_vit_forward.1} parent=1 // pred_region
      _
    $region57: #{saxs_vit_forward.1} parent=1 // pred_fallthru
      _
    // Predicated region
    $region58: #{saxs_vit_forward.1} parent=1 // pred_check
      _
    $region59: #{saxs_vit_forward.1} parent=1 // pred_check_branch
      %50 = sbr.rel (0) target = $region61
    $region60: #{saxs_vit_forward.1} parent=1 // pred_region
      _
    $region61: #{saxs_vit_forward.1} parent=1 // pred_fallthru
      _
    %v52 = vld [vmem:[%s0] sm:$0xff]
    %v53 = vld [vmem:[%s0 + $0x8] sm:$0xff]
    %v54 = vld [vmem:[%s0 + $0x10] sm:$0xff]
    %v55 = vld [vmem:[%s0 + $0x18] sm:$0xff]
    %v56 = vld [vmem:[%s0 + $0x20] sm:$0xff]
    %v57 = vld [vmem:[%s0 + $0x28] sm:$0xff]
    %v58 = vld [vmem:[%s0 + $0x30] sm:$0xff]
    %v59 = vld [vmem:[%s0 + $0x38] sm:$0xff]
    %v60 = vld [vmem:[%s0 + $0x40] sm:$0xff]
    %v61 = vld [vmem:[%s0 + $0x48] sm:$0xff]
    %v62 = vld [vmem:[%s0 + $0x50] sm:$0xff]
    %v63 = vld [vmem:[%s0 + $0x58] sm:$0xff]
    %v64 = vpack.c.bf16 %v58, %v52
    %v65 = vpack.c.bf16 %v59, %v53
    %v66 = vpack.c.bf16 %v60, %v54
    %v67 = vpack.c.bf16 %v61, %v55
    %v68 = vpack.c.bf16 %v62, %v56
    %v69 = vpack.c.bf16 %v63, %v57
    %v70 = vld [vmem:[%s2] sm:$0xf]
    %v71 = vld [vmem:[%s2 + $0x4] sm:$0xf]
    %v72 = vld [vmem:[%s2 + $0x8] sm:$0xf]
    %v73 = vld [vmem:[%s2 + $0xc] sm:$0xf]
    %v74 = vld [vmem:[%s2 + $0x10] sm:$0xf]
    %v75 = vld [vmem:[%s2 + $0x14] sm:$0xf]
    %v76 = vld [vmem:[%s2 + $0x18] sm:$0xf]
    %v77 = vld [vmem:[%s2 + $0x1c] sm:$0xf]
    %v78 = vld [vmem:[%s2 + $0x20] sm:$0xf]
    %v79 = vld [vmem:[%s2 + $0x24] sm:$0xf]
    %v80 = vld [vmem:[%s2 + $0x28] sm:$0xf]
    %v81 = vld [vmem:[%s2 + $0x2c] sm:$0xf]
    %v82 = vld [vmem:[%s2 + $0x30] sm:$0xf]
    %v83 = vld [vmem:[%s2 + $0x34] sm:$0xf]
    %v84 = vld [vmem:[%s2 + $0x38] sm:$0xf]
    %v85 = vld [vmem:[%s2 + $0x3c] sm:$0xf]
    %v86 = vld [vmem:[%s2 + $0x40] sm:$0xf]
    %v87 = vld [vmem:[%s2 + $0x44] sm:$0xf]
    %v88 = vld [vmem:[%s2 + $0x48] sm:$0xf]
    %v89 = vld [vmem:[%s2 + $0x4c] sm:$0xf]
    %v90 = vld [vmem:[%s2 + $0x50] sm:$0xf]
    %v91 = vld [vmem:[%s2 + $0x54] sm:$0xf]
    %v92 = vld [vmem:[%s2 + $0x58] sm:$0xf]
    %v93 = vld [vmem:[%s2 + $0x5c] sm:$0xf]
    %v94 = vld [vmem:[%s2 + $0x60] sm:$0xf]
    %v95 = vld [vmem:[%s2 + $0x64] sm:$0xf]
    %v96 = vld [vmem:[%s2 + $0x68] sm:$0xf]
    %v97 = vld [vmem:[%s2 + $0x6c] sm:$0xf]
    %v98 = vld [vmem:[%s2 + $0x70] sm:$0xf]
    %v99 = vld [vmem:[%s2 + $0x74] sm:$0xf]
    %v100 = vld [vmem:[%s2 + $0x78] sm:$0xf]
    %v101 = vld [vmem:[%s2 + $0x7c] sm:$0xf]
    %v102 = vld [vmem:[%s2 + $0x80] sm:$0xf]
    %v103 = vld [vmem:[%s2 + $0x84] sm:$0xf]
    %v104 = vld [vmem:[%s2 + $0x88] sm:$0xf]
    %v105 = vld [vmem:[%s2 + $0x8c] sm:$0xf]
    %v106 = vld [vmem:[%s2 + $0x90] sm:$0xf]
    %v107 = vld [vmem:[%s2 + $0x94] sm:$0xf]
    %v108 = vld [vmem:[%s2 + $0x98] sm:$0xf]
    %v109 = vld [vmem:[%s2 + $0x9c] sm:$0xf]
    %v110 = vld [vmem:[%s2 + $0xa0] sm:$0xf]
    %v111 = vld [vmem:[%s2 + $0xa4] sm:$0xf]
    %v112 = vld [vmem:[%s2 + $0xa8] sm:$0xf]
    %v113 = vld [vmem:[%s2 + $0xac] sm:$0xf]
    %v114 = vld [vmem:[%s2 + $0xb0] sm:$0xf]
    %v115 = vld [vmem:[%s2 + $0xb4] sm:$0xf]
    %v116 = vld [vmem:[%s2 + $0xb8] sm:$0xf]
    %v117 = vld [vmem:[%s2 + $0xbc] sm:$0xf]
    %v118 = vld [vmem:[%s2 + $0xc0] sm:$0xf]
    %v119 = vld [vmem:[%s2 + $0xc4] sm:$0xf]
    %v120 = vld [vmem:[%s2 + $0xc8] sm:$0xf]
    %v121 = vld [vmem:[%s2 + $0xcc] sm:$0xf]
    %v122 = vld [vmem:[%s2 + $0xd0] sm:$0xf]
    %v123 = vld [vmem:[%s2 + $0xd4] sm:$0xf]
    %v124 = vld [vmem:[%s2 + $0xd8] sm:$0xf]
    %v125 = vld [vmem:[%s2 + $0xdc] sm:$0xf]
    %v126 = vld [vmem:[%s2 + $0xe0] sm:$0xf]
    %v127 = vld [vmem:[%s2 + $0xe4] sm:$0xf]
    %v128 = vld [vmem:[%s2 + $0xe8] sm:$0xf]
    %v129 = vld [vmem:[%s2 + $0xec] sm:$0xf]
    %v130 = vld [vmem:[%s2 + $0xf0] sm:$0xf]
    %v131 = vld [vmem:[%s2 + $0xf4] sm:$0xf]
    %v132 = vld [vmem:[%s2 + $0xf8] sm:$0xf]
    %v133 = vld [vmem:[%s2 + $0xfc] sm:$0xf]
    %v134 = vld [vmem:[%s2 + $0x100] sm:$0xf]
    %v135 = vld [vmem:[%s2 + $0x104] sm:$0xf]
    %v136 = vld [vmem:[%s2 + $0x108] sm:$0xf]
    %v137 = vld [vmem:[%s2 + $0x10c] sm:$0xf]
    %v138 = vld [vmem:[%s2 + $0x110] sm:$0xf]
    %v139 = vld [vmem:[%s2 + $0x114] sm:$0xf]
    %v140 = vld [vmem:[%s2 + $0x118] sm:$0xf]
    %v141 = vld [vmem:[%s2 + $0x11c] sm:$0xf]
    %v142 = vld [vmem:[%s2 + $0x120] sm:$0xf]
    %v143 = vld [vmem:[%s2 + $0x124] sm:$0xf]
    %v144 = vld [vmem:[%s2 + $0x128] sm:$0xf]
    %v145 = vld [vmem:[%s2 + $0x12c] sm:$0xf]
    %v146 = vld [vmem:[%s2 + $0x130] sm:$0xf]
    %v147 = vld [vmem:[%s2 + $0x134] sm:$0xf]
    %v148 = vld [vmem:[%s2 + $0x138] sm:$0xf]
    %v149 = vld [vmem:[%s2 + $0x13c] sm:$0xf]
    %v150 = vld [vmem:[%s2 + $0x140] sm:$0xf]
    %v151 = vld [vmem:[%s2 + $0x144] sm:$0xf]
    %v152 = vld [vmem:[%s2 + $0x148] sm:$0xf]
    %v153 = vld [vmem:[%s2 + $0x14c] sm:$0xf]
    %v154 = vld [vmem:[%s2 + $0x150] sm:$0xf]
    %v155 = vld [vmem:[%s2 + $0x154] sm:$0xf]
    %v156 = vld [vmem:[%s2 + $0x158] sm:$0xf]
    %v157 = vld [vmem:[%s2 + $0x15c] sm:$0xf]
    %v158 = vld [vmem:[%s2 + $0x160] sm:$0xf]
    %v159 = vld [vmem:[%s2 + $0x164] sm:$0xf]
    %v160 = vld [vmem:[%s2 + $0x168] sm:$0xf]
    %v161 = vld [vmem:[%s2 + $0x16c] sm:$0xf]
    %v162 = vld [vmem:[%s2 + $0x170] sm:$0xf]
    %v163 = vld [vmem:[%s2 + $0x174] sm:$0xf]
    %v164 = vld [vmem:[%s2 + $0x178] sm:$0xf]
    %v165 = vld [vmem:[%s2 + $0x17c] sm:$0xf]
    %v262 = vunpack.c.l.b16 %v70
    %v263 = vunpack.c.l.b16 %v71
    %v264 = vunpack.c.l.b16 %v72
    %v265 = vunpack.c.l.b16 %v73
    %v266 = vunpack.c.l.b16 %v74
    %v267 = vunpack.c.l.b16 %v75
    %v268 = vunpack.c.l.b16 %v76
    %v269 = vunpack.c.l.b16 %v77
    %v270 = vunpack.c.l.b16 %v78
    %v271 = vunpack.c.l.b16 %v79
    %v272 = vunpack.c.l.b16 %v80
    %v273 = vunpack.c.l.b16 %v81
    %v274 = vunpack.c.l.b16 %v82
    %v275 = vunpack.c.l.b16 %v83
    %v276 = vunpack.c.l.b16 %v84
    %v277 = vunpack.c.l.b16 %v85
    %v278 = vunpack.c.l.b16 %v86
    %v279 = vunpack.c.l.b16 %v87
    %v280 = vunpack.c.l.b16 %v88
    %v281 = vunpack.c.l.b16 %v89
    %v282 = vunpack.c.l.b16 %v90
    %v283 = vunpack.c.l.b16 %v91
    %v284 = vunpack.c.l.b16 %v92
    %v285 = vunpack.c.l.b16 %v93
    %v286 = vunpack.c.l.b16 %v94
    %v287 = vunpack.c.l.b16 %v95
    %v288 = vunpack.c.l.b16 %v96
    %v289 = vunpack.c.l.b16 %v97
    %v290 = vunpack.c.l.b16 %v98
    %v291 = vunpack.c.l.b16 %v99
    %v292 = vunpack.c.l.b16 %v100
    %v293 = vunpack.c.l.b16 %v101
    %v294 = vunpack.c.l.b16 %v102
    %v295 = vunpack.c.l.b16 %v103
    %v296 = vunpack.c.l.b16 %v104
    %v297 = vunpack.c.l.b16 %v105
    %v298 = vunpack.c.l.b16 %v106
    %v299 = vunpack.c.l.b16 %v107
    %v300 = vunpack.c.l.b16 %v108
    %v301 = vunpack.c.l.b16 %v109
    %v302 = vunpack.c.l.b16 %v110
    %v303 = vunpack.c.l.b16 %v111
    %v304 = vunpack.c.l.b16 %v112
    %v305 = vunpack.c.l.b16 %v113
    %v306 = vunpack.c.l.b16 %v114
    %v307 = vunpack.c.l.b16 %v115
    %v308 = vunpack.c.l.b16 %v116
    %v309 = vunpack.c.l.b16 %v117
    %v310 = vunpack.c.l.b16 %v118
    %v311 = vunpack.c.l.b16 %v119
    %v312 = vunpack.c.l.b16 %v120
    %v313 = vunpack.c.l.b16 %v121
    %v314 = vunpack.c.l.b16 %v122
    %v315 = vunpack.c.l.b16 %v123
    %v316 = vunpack.c.l.b16 %v124
    %v317 = vunpack.c.l.b16 %v125
    %v318 = vunpack.c.l.b16 %v126
    %v319 = vunpack.c.l.b16 %v127
    %v320 = vunpack.c.l.b16 %v128
    %v321 = vunpack.c.l.b16 %v129
    %v322 = vunpack.c.l.b16 %v130
    %v323 = vunpack.c.l.b16 %v131
    %v324 = vunpack.c.l.b16 %v132
    %v325 = vunpack.c.l.b16 %v133
    %v326 = vunpack.c.l.b16 %v134
    %v327 = vunpack.c.l.b16 %v135
    %v328 = vunpack.c.l.b16 %v136
    %v329 = vunpack.c.l.b16 %v137
    %v330 = vunpack.c.l.b16 %v138
    %v331 = vunpack.c.l.b16 %v139
    %v332 = vunpack.c.l.b16 %v140
    %v333 = vunpack.c.l.b16 %v141
    %v334 = vunpack.c.l.b16 %v142
    %v335 = vunpack.c.l.b16 %v143
    %v336 = vunpack.c.l.b16 %v144
    %v337 = vunpack.c.l.b16 %v145
    %v338 = vunpack.c.l.b16 %v146
    %v339 = vunpack.c.l.b16 %v147
    %v340 = vunpack.c.l.b16 %v148
    %v341 = vunpack.c.l.b16 %v149
    %v342 = vunpack.c.l.b16 %v150
    %v343 = vunpack.c.l.b16 %v151
    %v344 = vunpack.c.l.b16 %v152
    %v345 = vunpack.c.l.b16 %v153
    %v346 = vunpack.c.l.b16 %v154
    %v347 = vunpack.c.l.b16 %v155
    %v348 = vunpack.c.l.b16 %v156
    %v349 = vunpack.c.l.b16 %v157
    %v350 = vunpack.c.l.b16 %v158
    %v351 = vunpack.c.l.b16 %v159
    %v352 = vunpack.c.l.b16 %v160
    %v353 = vunpack.c.l.b16 %v161
    %v354 = vunpack.c.l.b16 %v162
    %v355 = vunpack.c.l.b16 %v163
    %v356 = vunpack.c.l.b16 %v164
    %v357 = vunpack.c.l.b16 %v165
    %v358 = vpack.c.b16 %v263, %v262
    %v359 = vpack.c.b16 %v265, %v264
    %v360 = vpack.c.b16 %v267, %v266
    %v361 = vpack.c.b16 %v269, %v268
    %v362 = vpack.c.b16 %v271, %v270
    %v363 = vpack.c.b16 %v273, %v272
    %v364 = vpack.c.b16 %v275, %v274
    %v365 = vpack.c.b16 %v277, %v276
    %v366 = vpack.c.b16 %v279, %v278
    %v367 = vpack.c.b16 %v281, %v280
    %v368 = vpack.c.b16 %v283, %v282
    %v369 = vpack.c.b16 %v285, %v284
    %v370 = vpack.c.b16 %v287, %v286
    %v371 = vpack.c.b16 %v289, %v288
    %v372 = vpack.c.b16 %v291, %v290
    %v373 = vpack.c.b16 %v293, %v292
    %v374 = vpack.c.b16 %v295, %v294
    %v375 = vpack.c.b16 %v297, %v296
    %v376 = vpack.c.b16 %v299, %v298
    %v377 = vpack.c.b16 %v301, %v300
    %v378 = vpack.c.b16 %v303, %v302
    %v379 = vpack.c.b16 %v305, %v304
    %v380 = vpack.c.b16 %v307, %v306
    %v381 = vpack.c.b16 %v309, %v308
    %v382 = vpack.c.b16 %v311, %v310
    %v383 = vpack.c.b16 %v313, %v312
    %v384 = vpack.c.b16 %v315, %v314
    %v385 = vpack.c.b16 %v317, %v316
    %v386 = vpack.c.b16 %v319, %v318
    %v387 = vpack.c.b16 %v321, %v320
    %v388 = vpack.c.b16 %v323, %v322
    %v389 = vpack.c.b16 %v325, %v324
    %v390 = vpack.c.b16 %v327, %v326
    %v391 = vpack.c.b16 %v329, %v328
    %v392 = vpack.c.b16 %v331, %v330
    %v393 = vpack.c.b16 %v333, %v332
    %v394 = vpack.c.b16 %v335, %v334
    %v395 = vpack.c.b16 %v337, %v336
    %v396 = vpack.c.b16 %v339, %v338
    %v397 = vpack.c.b16 %v341, %v340
    %v398 = vpack.c.b16 %v343, %v342
    %v399 = vpack.c.b16 %v345, %v344
    %v400 = vpack.c.b16 %v347, %v346
    %v401 = vpack.c.b16 %v349, %v348
    %v402 = vpack.c.b16 %v351, %v350
    %v403 = vpack.c.b16 %v353, %v352
    %v404 = vpack.c.b16 %v355, %v354
    %v405 = vpack.c.b16 %v357, %v356
    %454 = vmatprep.subr.bf16.mxu0 0
    %455 = vmatpush1.bf16.msra.mxu0 %v365
    %456 = vmatprep.subr.bf16.mxu0 0
    %457 = vmatpush1.bf16.msra.mxu0 %v364
    %458 = vmatprep.subr.bf16.mxu0 0
    %459 = vmatpush1.bf16.msra.mxu0 %v363
    %460 = vmatprep.subr.bf16.mxu0 0
    %461 = vmatpush1.bf16.msra.mxu0 %v362
    %462 = vmatprep.subr.bf16.mxu0 0
    %463 = vmatpush1.bf16.msra.mxu0 %v361
    %464 = vmatprep.subr.bf16.mxu0 0
    %465 = vmatpush1.bf16.msra.mxu0 %v360
    %466 = vmatprep.subr.bf16.mxu0 0
    %467 = vmatpush1.bf16.msra.mxu0 %v359
    %468 = vmatprep.subr.bf16.mxu0 0
    %469 = vmatpush1.bf16.msra.mxu0 %v358
    %470 = vmatprep.subr.bf16.mxu0 0
    %471 = vmatpush2.bf16.msra.mxu0 %v373
    %472 = vmatprep.subr.bf16.mxu0 0
    %473 = vmatpush2.bf16.msra.mxu0 %v372
    %474 = vmatprep.subr.bf16.mxu0 0
    %475 = vmatpush2.bf16.msra.mxu0 %v371
    %476 = vmatprep.subr.bf16.mxu0 0
    %477 = vmatpush2.bf16.msra.mxu0 %v370
    %478 = vmatprep.subr.bf16.mxu0 0
    %479 = vmatpush2.bf16.msra.mxu0 %v369
    %480 = vmatprep.subr.bf16.mxu0 0
    %481 = vmatpush2.bf16.msra.mxu0 %v368
    %482 = vmatprep.subr.bf16.mxu0 0
    %483 = vmatpush2.bf16.msra.mxu0 %v367
    %484 = vmatprep.subr.bf16.mxu0 0
    %485 = vmatpush2.bf16.msra.mxu0 %v366
    %486 = vmatprep.mubr.bf16.mxu0 %v65
    %487 = vmatmul.mubr.bf16.gmra.mxu0 %v64
    %v488 = vpop.f32.mrf.mxu0
    %v489 = vadd.f32 0.0, %v488
    %v490 = vpop.f32.mrf.mxu0
    %v491 = vpop.f32.mrf.mxu0
    %v492 = vadd.f32 0.0, %v491
    %v493 = vpop.f32.mrf.mxu0
    %494 = vdwg.mxu0
    %495 = vmatprep.subr.bf16.mxu0 0
    %496 = vmatpush1.bf16.msra.mxu0 %v381
    %497 = vmatprep.subr.bf16.mxu0 0
    %498 = vmatpush1.bf16.msra.mxu0 %v380
    %499 = vmatprep.subr.bf16.mxu0 0
    %500 = vmatpush1.bf16.msra.mxu0 %v379
    %501 = vmatprep.subr.bf16.mxu0 0
    %502 = vmatpush1.bf16.msra.mxu0 %v378
    %503 = vmatprep.subr.bf16.mxu0 0
    %504 = vmatpush1.bf16.msra.mxu0 %v377
    %505 = vmatprep.subr.bf16.mxu0 0
    %506 = vmatpush1.bf16.msra.mxu0 %v376
    %507 = vmatprep.subr.bf16.mxu0 0
    %508 = vmatpush1.bf16.msra.mxu0 %v375
    %509 = vmatprep.subr.bf16.mxu0 0
    %510 = vmatpush1.bf16.msra.mxu0 %v374
    %511 = vmatprep.subr.bf16.mxu0 0
    %512 = vmatpush2.bf16.msra.mxu0 %v389
    %513 = vmatprep.subr.bf16.mxu0 0
    %514 = vmatpush2.bf16.msra.mxu0 %v388
    %515 = vmatprep.subr.bf16.mxu0 0
    %516 = vmatpush2.bf16.msra.mxu0 %v387
    %517 = vmatprep.subr.bf16.mxu0 0
    %518 = vmatpush2.bf16.msra.mxu0 %v386
    %519 = vmatprep.subr.bf16.mxu0 0
    %520 = vmatpush2.bf16.msra.mxu0 %v385
    %521 = vmatprep.subr.bf16.mxu0 0
    %522 = vmatpush2.bf16.msra.mxu0 %v384
    %523 = vmatprep.subr.bf16.mxu0 0
    %524 = vmatpush2.bf16.msra.mxu0 %v383
    %525 = vmatprep.subr.bf16.mxu0 0
    %526 = vmatpush2.bf16.msra.mxu0 %v382
    %527 = vmatprep.mubr.bf16.mxu0 %v67
    %528 = vmatmul.mubr.bf16.gmra.mxu0 %v66
    %v529 = vpop.f32.mrf.mxu0
    %v530 = vadd.f32 %v489, %v529
    %v531 = vpop.f32.mrf.mxu0
    %v532 = vpop.f32.mrf.mxu0
    %v533 = vadd.f32 %v492, %v532
    %v534 = vpop.f32.mrf.mxu0
    %535 = vdwg.mxu0
    %536 = vmatprep.subr.bf16.mxu0 0
    %537 = vmatpush1.bf16.msra.mxu0 %v397
    %538 = vmatprep.subr.bf16.mxu0 0
    %539 = vmatpush1.bf16.msra.mxu0 %v396
    %540 = vmatprep.subr.bf16.mxu0 0
    %541 = vmatpush1.bf16.msra.mxu0 %v395
    %542 = vmatprep.subr.bf16.mxu0 0
    %543 = vmatpush1.bf16.msra.mxu0 %v394
    %544 = vmatprep.subr.bf16.mxu0 0
    %545 = vmatpush1.bf16.msra.mxu0 %v393
    %546 = vmatprep.subr.bf16.mxu0 0
    %547 = vmatpush1.bf16.msra.mxu0 %v392
    %548 = vmatprep.subr.bf16.mxu0 0
    %549 = vmatpush1.bf16.msra.mxu0 %v391
    %550 = vmatprep.subr.bf16.mxu0 0
    %551 = vmatpush1.bf16.msra.mxu0 %v390
    %552 = vmatprep.subr.bf16.mxu0 0
    %553 = vmatpush2.bf16.msra.mxu0 %v405
    %554 = vmatprep.subr.bf16.mxu0 0
    %555 = vmatpush2.bf16.msra.mxu0 %v404
    %556 = vmatprep.subr.bf16.mxu0 0
    %557 = vmatpush2.bf16.msra.mxu0 %v403
    %558 = vmatprep.subr.bf16.mxu0 0
    %559 = vmatpush2.bf16.msra.mxu0 %v402
    %560 = vmatprep.subr.bf16.mxu0 0
    %561 = vmatpush2.bf16.msra.mxu0 %v401
    %562 = vmatprep.subr.bf16.mxu0 0
    %563 = vmatpush2.bf16.msra.mxu0 %v400
    %564 = vmatprep.subr.bf16.mxu0 0
    %565 = vmatpush2.bf16.msra.mxu0 %v399
    %566 = vmatprep.subr.bf16.mxu0 0
    %567 = vmatpush2.bf16.msra.mxu0 %v398
    %568 = vmatprep.mubr.bf16.mxu0 %v69
    %569 = vmatmul.mubr.bf16.gmra.mxu0 %v68
    %v570 = vpop.f32.mrf.mxu0
    %v571 = vadd.f32 %v530, %v570
    %v572 = vpop.f32.mrf.mxu0
    %v573 = vpop.f32.mrf.mxu0
    %v574 = vadd.f32 %v533, %v573
    %v575 = vpop.f32.mrf.mxu0
    %576 = vdwg.mxu0
    %v577 = vld [vmem:[%s1] sm:$0xff]
    %v578 = vadd.f32 %v571, %v577
    %v579 = vadd.f32 %v574, %v577
    %v580 = vlaneseq
    %v581 = vand.u32 %v580, 127
    %vm582 = vcmp.lt.s32.totalorder %v581, 5
    %v583 = vsel %vm582, 0.0, -1e+30
    %v584 = vld [vmem:[%s9] sm:$0x3f]
    %585 = vadd.xlane.f32.xlu0 %v578
    %v586 = vpop.xlane.xlu0 %585
    %587 = vadd.xlane.f32.xlu0 %v579
    %v588 = vpop.xlane.xlu0 %587
    %v589 = vrcp.pop 128.0
    %v590 = vmul.f32 %v586, %v589
    %v591 = vmul.f32 %v588, %v589
    %v592 = vsub.f32 %v578, %v590
    %v593 = vsub.f32 %v579, %v591
    %v594 = vmul.f32 %v592, %v592
    %v595 = vmul.f32 %v593, %v593
    %596 = vadd.xlane.f32.xlu0 %v594
    %v597 = vpop.xlane.xlu0 %596
    %598 = vadd.xlane.f32.xlu0 %v595
    %v599 = vpop.xlane.xlu0 %598
    %v600 = vmul.f32 %v597, %v589
    %v601 = vmul.f32 %v599, %v589
    %v602 = vadd.f32 %v600, 1e-06
    %v603 = vadd.f32 %v601, 1e-06
    %v604 = vrsqrt.pop %v602
    %v605 = vrsqrt.pop %v603
    %v606 = vmul.f32 %v592, %v604
    %v607 = vmul.f32 %v593, %v605
    %v608 = vlaneseq
    %v609 = vshrl.u32 %v608, 7
    %v610 = vsub.s32 0, %v609
    %v611 = vrot.slane %v584, %v610
    %v612 = vmul.f32 %v606, %v611
    %v613 = vmul.f32 %v607, %v611
    %v614 = vlaneseq
    %v615 = vshrl.u32 %v614, 7
    %v616 = vsub.s32 1, %v615
    %v617 = vrot.slane %v584, %v616
    %v618 = vadd.f32 %v612, %v617
    %v619 = vadd.f32 %v613, %v617
    %v620 = vpack.c.bf16 %v619, %v618
    %v621 = vld [vmem:[%s3] sm:$0xff]
    %v622 = vld [vmem:[%s3 + $0x8] sm:$0xf]
    %v623 = vld [vmem:[%s3 + $0xc] sm:$0xff]
    %v624 = vld [vmem:[%s3 + $0x14] sm:$0xf]
    %v625 = vld [vmem:[%s3 + $0x18] sm:$0xff]
    %v626 = vld [vmem:[%s3 + $0x20] sm:$0xf]
    %v627 = vld [vmem:[%s3 + $0x24] sm:$0xff]
    %v628 = vld [vmem:[%s3 + $0x2c] sm:$0xf]
    %v629 = vld [vmem:[%s3 + $0x30] sm:$0xff]
    %v630 = vld [vmem:[%s3 + $0x38] sm:$0xf]
    %v631 = vld [vmem:[%s3 + $0x3c] sm:$0xff]
    %v632 = vld [vmem:[%s3 + $0x44] sm:$0xf]
    %v633 = vld [vmem:[%s3 + $0x48] sm:$0xff]
    %v634 = vld [vmem:[%s3 + $0x50] sm:$0xf]
    %v635 = vld [vmem:[%s3 + $0x54] sm:$0xff]
    %v636 = vld [vmem:[%s3 + $0x5c] sm:$0xf]
    %v637 = vld [vmem:[%s3 + $0x60] sm:$0xff]
    %v638 = vld [vmem:[%s3 + $0x68] sm:$0xf]
    %v639 = vld [vmem:[%s3 + $0x6c] sm:$0xff]
    %v640 = vld [vmem:[%s3 + $0x74] sm:$0xf]
    %v641 = vld [vmem:[%s3 + $0x78] sm:$0xff]
    %v642 = vld [vmem:[%s3 + $0x80] sm:$0xf]
    %v643 = vld [vmem:[%s3 + $0x84] sm:$0xff]
    %v644 = vld [vmem:[%s3 + $0x8c] sm:$0xf]
    %v645 = vld [vmem:[%s3 + $0x90] sm:$0xff]
    %v646 = vld [vmem:[%s3 + $0x98] sm:$0xf]
    %v647 = vld [vmem:[%s3 + $0x9c] sm:$0xff]
    %v648 = vld [vmem:[%s3 + $0xa4] sm:$0xf]
    %v649 = vld [vmem:[%s3 + $0xa8] sm:$0xff]
    %v650 = vld [vmem:[%s3 + $0xb0] sm:$0xf]
    %v651 = vld [vmem:[%s3 + $0xb4] sm:$0xff]
    %v652 = vld [vmem:[%s3 + $0xbc] sm:$0xf]
    %v653 = vld [vmem:[%s4] sm:$0x7]
    %v655 = vlaneseq
    %v656 = vshrl.u32 %v655, 7
    %v657 = vsub.s32 0, %v656
    %v658 = vrot.slane %v653, %v657
    %v659 = vlaneseq
    %v660 = vshrl.u32 %v659, 7
    %v661 = vsub.s32 1, %v660
    %v662 = vrot.slane %v653, %v661
    %v663 = vlaneseq
    %v664 = vshrl.u32 %v663, 7
    %v665 = vsub.s32 2, %v664
    %v666 = vrot.slane %v653, %v665
    %v702 = vunpack.c.l.b16 %v621
    %v703 = vunpack.c.h.b16 %v621
    %v704 = vunpack.c.l.b16 %v622
    %v705 = vunpack.c.l.b16 %v623
    %v706 = vunpack.c.h.b16 %v623
    %v707 = vunpack.c.l.b16 %v624
    %v708 = vunpack.c.l.b16 %v625
    %v709 = vunpack.c.h.b16 %v625
    %v710 = vunpack.c.l.b16 %v626
    %v711 = vunpack.c.l.b16 %v627
    %v712 = vunpack.c.h.b16 %v627
    %v713 = vunpack.c.l.b16 %v628
    %v714 = vunpack.c.l.b16 %v629
    %v715 = vunpack.c.h.b16 %v629
    %v716 = vunpack.c.l.b16 %v630
    %v717 = vunpack.c.l.b16 %v631
    %v718 = vunpack.c.h.b16 %v631
    %v719 = vunpack.c.l.b16 %v632
    %v720 = vunpack.c.l.b16 %v633
    %v721 = vunpack.c.h.b16 %v633
    %v722 = vunpack.c.l.b16 %v634
    %v723 = vunpack.c.l.b16 %v635
    %v724 = vunpack.c.h.b16 %v635
    %v725 = vunpack.c.l.b16 %v636
    %v726 = vunpack.c.l.b16 %v637
    %v727 = vunpack.c.h.b16 %v637
    %v728 = vunpack.c.l.b16 %v638
    %v729 = vunpack.c.l.b16 %v639
    %v730 = vunpack.c.h.b16 %v639
    %v731 = vunpack.c.l.b16 %v640
    %v732 = vunpack.c.l.b16 %v641
    %v733 = vunpack.c.h.b16 %v641
    %v734 = vunpack.c.l.b16 %v642
    %v735 = vunpack.c.l.b16 %v643
    %v736 = vunpack.c.h.b16 %v643
    %v737 = vunpack.c.l.b16 %v644
    %v738 = vunpack.c.l.b16 %v645
    %v739 = vunpack.c.h.b16 %v645
    %v740 = vunpack.c.l.b16 %v646
    %v741 = vunpack.c.l.b16 %v647
    %v742 = vunpack.c.h.b16 %v647
    %v743 = vunpack.c.l.b16 %v648
    %v744 = vunpack.c.l.b16 %v649
    %v745 = vunpack.c.h.b16 %v649
    %v746 = vunpack.c.l.b16 %v650
    %v747 = vunpack.c.l.b16 %v651
    %v748 = vunpack.c.h.b16 %v651
    %v749 = vunpack.c.l.b16 %v652
    %v750 = vpack.c.b16 %v705, %v702
    %v751 = vpack.c.b16 %v706, %v703
    %v752 = vpack.c.b16 %v707, %v704
    %v753 = vpack.c.b16 %v711, %v708
    %v754 = vpack.c.b16 %v712, %v709
    %v755 = vpack.c.b16 %v713, %v710
    %v756 = vpack.c.b16 %v717, %v714
    %v757 = vpack.c.b16 %v718, %v715
    %v758 = vpack.c.b16 %v719, %v716
    %v759 = vpack.c.b16 %v723, %v720
    %v760 = vpack.c.b16 %v724, %v721
    %v761 = vpack.c.b16 %v725, %v722
    %v762 = vpack.c.b16 %v729, %v726
    %v763 = vpack.c.b16 %v730, %v727
    %v764 = vpack.c.b16 %v731, %v728
    %v765 = vpack.c.b16 %v735, %v732
    %v766 = vpack.c.b16 %v736, %v733
    %v767 = vpack.c.b16 %v737, %v734
    %v768 = vpack.c.b16 %v741, %v738
    %v769 = vpack.c.b16 %v742, %v739
    %v770 = vpack.c.b16 %v743, %v740
    %v771 = vpack.c.b16 %v747, %v744
    %v772 = vpack.c.b16 %v748, %v745
    %v773 = vpack.c.b16 %v749, %v746
    %798 = vmatprep.subr.bf16.mxu0 %v772
    %799 = vmatpush1.bf16.msra.mxu0 %v771
    %800 = vmatprep.subr.bf16.mxu0 %v769
    %801 = vmatpush1.bf16.msra.mxu0 %v768
    %802 = vmatprep.subr.bf16.mxu0 %v766
    %803 = vmatpush1.bf16.msra.mxu0 %v765
    %804 = vmatprep.subr.bf16.mxu0 %v763
    %805 = vmatpush1.bf16.msra.mxu0 %v762
    %806 = vmatprep.subr.bf16.mxu0 %v760
    %807 = vmatpush1.bf16.msra.mxu0 %v759
    %808 = vmatprep.subr.bf16.mxu0 %v757
    %809 = vmatpush1.bf16.msra.mxu0 %v756
    %810 = vmatprep.subr.bf16.mxu0 %v754
    %811 = vmatpush1.bf16.msra.mxu0 %v753
    %812 = vmatprep.subr.bf16.mxu0 %v751
    %813 = vmatpush1.bf16.msra.mxu0 %v750
    %814 = vmatprep.subr.bf16.mxu0 0
    %815 = vmatpush2.bf16.msra.mxu0 0
    %816 = vmatprep.subr.bf16.mxu0 0
    %817 = vmatpush2.bf16.msra.mxu0 0
    %818 = vmatprep.subr.bf16.mxu0 0
    %819 = vmatpush2.bf16.msra.mxu0 0
    %820 = vmatprep.subr.bf16.mxu0 0
    %821 = vmatpush2.bf16.msra.mxu0 0
    %822 = vmatprep.subr.bf16.mxu0 0
    %823 = vmatpush2.bf16.msra.mxu0 0
    %824 = vmatprep.subr.bf16.mxu0 0
    %825 = vmatpush2.bf16.msra.mxu0 0
    %826 = vmatprep.subr.bf16.mxu0 0
    %827 = vmatpush2.bf16.msra.mxu0 0
    %828 = vmatprep.subr.bf16.mxu0 0
    %829 = vmatpush2.bf16.msra.mxu0 0
    %830 = vmatprep.mubr.bf16.mxu0 0
    %831 = vmatmul.mubr.bf16.gmra.mxu0 %v620
    %v832 = vpop.f32.mrf.mxu0
    %v833 = vadd.f32 %v658, %v832
    %v834 = vpop.f32.mrf.mxu0
    %v835 = vadd.f32 %v662, %v834
    %v836 = vpop.f32.mrf.mxu0
    %v837 = vadd.f32 %v658, %v836
    %v838 = vpop.f32.mrf.mxu0
    %v839 = vadd.f32 %v662, %v838
    %840 = vdwg.mxu0
    %841 = vmatprep.subr.bf16.mxu0 0
    %842 = vmatpush1.bf16.msra.mxu0 %v773
    %843 = vmatprep.subr.bf16.mxu0 0
    %844 = vmatpush1.bf16.msra.mxu0 %v770
    %845 = vmatprep.subr.bf16.mxu0 0
    %846 = vmatpush1.bf16.msra.mxu0 %v767
    %847 = vmatprep.subr.bf16.mxu0 0
    %848 = vmatpush1.bf16.msra.mxu0 %v764
    %849 = vmatprep.subr.bf16.mxu0 0
    %850 = vmatpush1.bf16.msra.mxu0 %v761
    %851 = vmatprep.subr.bf16.mxu0 0
    %852 = vmatpush1.bf16.msra.mxu0 %v758
    %853 = vmatprep.subr.bf16.mxu0 0
    %854 = vmatpush1.bf16.msra.mxu0 %v755
    %855 = vmatprep.subr.bf16.mxu0 0
    %856 = vmatpush1.bf16.msra.mxu0 %v752
    %857 = vmatprep.subr.bf16.mxu0 0
    %858 = vmatpush2.bf16.msra.mxu0 0
    %859 = vmatprep.subr.bf16.mxu0 0
    %860 = vmatpush2.bf16.msra.mxu0 0
    %861 = vmatprep.subr.bf16.mxu0 0
    %862 = vmatpush2.bf16.msra.mxu0 0
    %863 = vmatprep.subr.bf16.mxu0 0
    %864 = vmatpush2.bf16.msra.mxu0 0
    %865 = vmatprep.subr.bf16.mxu0 0
    %866 = vmatpush2.bf16.msra.mxu0 0
    %867 = vmatprep.subr.bf16.mxu0 0
    %868 = vmatpush2.bf16.msra.mxu0 0
    %869 = vmatprep.subr.bf16.mxu0 0
    %870 = vmatpush2.bf16.msra.mxu0 0
    %871 = vmatprep.subr.bf16.mxu0 0
    %872 = vmatpush2.bf16.msra.mxu0 0
    %873 = vmatprep.mubr.bf16.mxu0 0
    %874 = vmatmul.mubr.bf16.gmra.mxu0 %v620
    %v875 = vpop.f32.mrf.mxu0
    %v876 = vadd.f32 %v666, %v875
    %v877 = vpop.f32.mrf.mxu0
    %v878 = vpop.f32.mrf.mxu0
    %v879 = vadd.f32 %v666, %v878
    %v880 = vpop.f32.mrf.mxu0
    %881 = vdwg.mxu0
    %v882 = vpack.c.bf16 %v833, %v833
    %v883 = vpack.c.bf16 %v837, %v837
    %v884 = vpack.c.bf16 %v835, %v835
    %v885 = vpack.c.bf16 %v839, %v839
    %v886 = vpack.c.bf16 %v876, %v876
    %v887 = vpack.c.bf16 %v879, %v879
    %vm888 = vcmask 261120
    %v890 = vsel %vm888, %v882, 0
    %v893 = vsel %vm888, %v884, 0
    %895 = vmatprep.subr.bf16.mxu0 0
    %896 = vmatpush1.bf16.xpose.msra.mxu0 0
    %897 = vmatprep.subr.bf16.mxu0 0
    %898 = vmatpush1.bf16.xpose.msra.mxu0 0
    %899 = vmatprep.subr.bf16.mxu0 0
    %900 = vmatpush1.bf16.xpose.msra.mxu0 0
    %901 = vmatprep.subr.bf16.mxu0 0
    %902 = vmatpush1.bf16.xpose.msra.mxu0 0
    %903 = vmatprep.subr.bf16.mxu0 0
    %904 = vmatpush1.bf16.xpose.msra.mxu0 0
    %905 = vmatprep.subr.bf16.mxu0 0
    %906 = vmatpush1.bf16.xpose.msra.mxu0 0
    %907 = vmatprep.subr.bf16.mxu0 0
    %908 = vmatpush1.bf16.xpose.msra.mxu0 0
    %909 = vmatprep.subr.bf16.mxu0 0
    %910 = vmatpush1.bf16.xpose.msra.mxu0 %v893
    %911 = vmatprep.subr.bf16.mxu0 0
    %912 = vmatpush2.bf16.xpose.msra.mxu0 0
    %913 = vmatprep.subr.bf16.mxu0 0
    %914 = vmatpush2.bf16.xpose.msra.mxu0 0
    %915 = vmatprep.subr.bf16.mxu0 0
    %916 = vmatpush2.bf16.xpose.msra.mxu0 0
    %917 = vmatprep.subr.bf16.mxu0 0
    %918 = vmatpush2.bf16.xpose.msra.mxu0 0
    %919 = vmatprep.subr.bf16.mxu0 0
    %920 = vmatpush2.bf16.xpose.msra.mxu0 0
    %921 = vmatprep.subr.bf16.mxu0 0
    %922 = vmatpush2.bf16.xpose.msra.mxu0 0
    %923 = vmatprep.subr.bf16.mxu0 0
    %924 = vmatpush2.bf16.xpose.msra.mxu0 0
    %925 = vmatprep.subr.bf16.mxu0 0
    %926 = vmatpush2.bf16.xpose.msra.mxu0 0
    %927 = vmatprep.mubr.bf16.mxu0 0
    %928 = vmatmul.mubr.bf16.gmra.mxu0 %v890
    %v929 = vpop.f32.mrf.mxu0
    %v930 = vadd.f32 0.0, %v929
    %v931 = vpop.f32.mrf.mxu0
    %v932 = vpop.f32.mrf.mxu0
    %v933 = vpop.f32.mrf.mxu0
    %934 = vdwg.mxu0
    %v936 = vsel %vm888, %v883, 0
    %v939 = vsel %vm888, %v885, 0
    %941 = vmatprep.subr.bf16.mxu0 0
    %942 = vmatpush1.bf16.xpose.msra.mxu0 0
    %943 = vmatprep.subr.bf16.mxu0 0
    %944 = vmatpush1.bf16.xpose.msra.mxu0 0
    %945 = vmatprep.subr.bf16.mxu0 0
    %946 = vmatpush1.bf16.xpose.msra.mxu0 0
    %947 = vmatprep.subr.bf16.mxu0 0
    %948 = vmatpush1.bf16.xpose.msra.mxu0 0
    %949 = vmatprep.subr.bf16.mxu0 0
    %950 = vmatpush1.bf16.xpose.msra.mxu0 0
    %951 = vmatprep.subr.bf16.mxu0 0
    %952 = vmatpush1.bf16.xpose.msra.mxu0 0
    %953 = vmatprep.subr.bf16.mxu0 0
    %954 = vmatpush1.bf16.xpose.msra.mxu0 0
    %955 = vmatprep.subr.bf16.mxu0 0
    %956 = vmatpush1.bf16.xpose.msra.mxu0 %v939
    %957 = vmatprep.subr.bf16.mxu0 0
    %958 = vmatpush2.bf16.xpose.msra.mxu0 0
    %959 = vmatprep.subr.bf16.mxu0 0
    %960 = vmatpush2.bf16.xpose.msra.mxu0 0
    %961 = vmatprep.subr.bf16.mxu0 0
    %962 = vmatpush2.bf16.xpose.msra.mxu0 0
    %963 = vmatprep.subr.bf16.mxu0 0
    %964 = vmatpush2.bf16.xpose.msra.mxu0 0
    %965 = vmatprep.subr.bf16.mxu0 0
    %966 = vmatpush2.bf16.xpose.msra.mxu0 0
    %967 = vmatprep.subr.bf16.mxu0 0
    %968 = vmatpush2.bf16.xpose.msra.mxu0 0
    %969 = vmatprep.subr.bf16.mxu0 0
    %970 = vmatpush2.bf16.xpose.msra.mxu0 0
    %971 = vmatprep.subr.bf16.mxu0 0
    %972 = vmatpush2.bf16.xpose.msra.mxu0 0
    %973 = vmatprep.mubr.bf16.mxu0 0
    %974 = vmatmul.mubr.bf16.gmra.mxu0 %v936
    %v975 = vpop.f32.mrf.mxu0
    %v976 = vadd.f32 0.0, %v975
    %v977 = vpop.f32.mrf.mxu0
    %v978 = vpop.f32.mrf.mxu0
    %v979 = vpop.f32.mrf.mxu0
    %980 = vdwg.mxu0
    %v981 = vmul.f32 %v930, 0.17677669
    %v982 = vmul.f32 %v976, 0.17677669
    %v983 = vadd.f32 %v981, %v583
    %v984 = vadd.f32 %v982, %v583
    %vm985 = vcmask 64512
    %v986 = vsel %vm985, %v983, -inf
    %987 = vmax.xlane.f32.xlu0 %v986
    %v988 = vpop.xlane.xlu0 %987
    %v989 = vsel %vm985, %v984, -inf
    %990 = vmax.xlane.f32.xlu0 %v989
    %v991 = vpop.xlane.xlu0 %990
    %v992 = vsub.f32 %v983, %v988
    %v993 = vsub.f32 %v984, %v991
    %v994 = vmul.f32 %v992, 1.442695
    %v995 = vpow.pop %v994
    %v996 = vmul.f32 %v993, 1.442695
    %v997 = vpow.pop %v996
    %v998 = vsel %vm985, %v995, 0.0
    %999 = vadd.xlane.f32.xlu0 %v998
    %v1000 = vpop.xlane.xlu0 %999
    %v1001 = vsel %vm985, %v997, 0.0
    %1002 = vadd.xlane.f32.xlu0 %v1001
    %v1003 = vpop.xlane.xlu0 %1002
    %v1004 = vrcp.pop %v1000
    %v1005 = vrcp.pop %v1003
    %v1006 = vmul.f32 %v995, %v1004
    %v1007 = vmul.f32 %v997, %v1005
    %v1008 = vpack.c.bf16 %v1006, %v1006
    %v1009 = vpack.c.bf16 %v1007, %v1007
    %v1011 = vsel %vm985, %v1008, 0
    %vm1013 = vcmask 1043456
    %v1015 = vsel %vm1013, %v886, 0
    %1017 = vmatprep.subr.bf16.mxu0 0
    %1018 = vmatpush1.bf16.msra.mxu0 0
    %1019 = vmatprep.subr.bf16.mxu0 0
    %1020 = vmatpush1.bf16.msra.mxu0 0
    %1021 = vmatprep.subr.bf16.mxu0 0
    %1022 = vmatpush1.bf16.msra.mxu0 0
    %1023 = vmatprep.subr.bf16.mxu0 0
    %1024 = vmatpush1.bf16.msra.mxu0 0
    %1025 = vmatprep.subr.bf16.mxu0 0
    %1026 = vmatpush1.bf16.msra.mxu0 0
    %1027 = vmatprep.subr.bf16.mxu0 0
    %1028 = vmatpush1.bf16.msra.mxu0 0
    %1029 = vmatprep.subr.bf16.mxu0 0
    %1030 = vmatpush1.bf16.msra.mxu0 0
    %1031 = vmatprep.subr.bf16.mxu0 0
    %1032 = vmatpush1.bf16.msra.mxu0 %v1015
    %1033 = vmatprep.subr.bf16.mxu0 0
    %1034 = vmatpush2.bf16.msra.mxu0 0
    %1035 = vmatprep.subr.bf16.mxu0 0
    %1036 = vmatpush2.bf16.msra.mxu0 0
    %1037 = vmatprep.subr.bf16.mxu0 0
    %1038 = vmatpush2.bf16.msra.mxu0 0
    %1039 = vmatprep.subr.bf16.mxu0 0
    %1040 = vmatpush2.bf16.msra.mxu0 0
    %1041 = vmatprep.subr.bf16.mxu0 0
    %1042 = vmatpush2.bf16.msra.mxu0 0
    %1043 = vmatprep.subr.bf16.mxu0 0
    %1044 = vmatpush2.bf16.msra.mxu0 0
    %1045 = vmatprep.subr.bf16.mxu0 0
    %1046 = vmatpush2.bf16.msra.mxu0 0
    %1047 = vmatprep.subr.bf16.mxu0 0
    %1048 = vmatpush2.bf16.msra.mxu0 0
    %1049 = vmatprep.mubr.bf16.mxu0 0
    %1050 = vmatmul.mubr.bf16.gmra.mxu0 %v1011
    %v1051 = vpop.f32.mrf.mxu0
    %v1052 = vadd.f32 0.0, %v1051
    %v1053 = vpop.f32.mrf.mxu0
    %v1054 = vpop.f32.mrf.mxu0
    %v1055 = vpop.f32.mrf.mxu0
    %1056 = vdwg.mxu0
    %v1058 = vsel %vm985, %v1009, 0
    %v1061 = vsel %vm1013, %v887, 0
    %1063 = vmatprep.subr.bf16.mxu0 0
    %1064 = vmatpush1.bf16.msra.mxu0 0
    %1065 = vmatprep.subr.bf16.mxu0 0
    %1066 = vmatpush1.bf16.msra.mxu0 0
    %1067 = vmatprep.subr.bf16.mxu0 0
    %1068 = vmatpush1.bf16.msra.mxu0 0
    %1069 = vmatprep.subr.bf16.mxu0 0
    %1070 = vmatpush1.bf16.msra.mxu0 0
    %1071 = vmatprep.subr.bf16.mxu0 0
    %1072 = vmatpush1.bf16.msra.mxu0 0
    %1073 = vmatprep.subr.bf16.mxu0 0
    %1074 = vmatpush1.bf16.msra.mxu0 0
    %1075 = vmatprep.subr.bf16.mxu0 0
    %1076 = vmatpush1.bf16.msra.mxu0 0
    %1077 = vmatprep.subr.bf16.mxu0 0
    %1078 = vmatpush1.bf16.msra.mxu0 %v1061
    %1079 = vmatprep.subr.bf16.mxu0 0
    %1080 = vmatpush2.bf16.msra.mxu0 0
    %1081 = vmatprep.subr.bf16.mxu0 0
    %1082 = vmatpush2.bf16.msra.mxu0 0
    %1083 = vmatprep.subr.bf16.mxu0 0
    %1084 = vmatpush2.bf16.msra.mxu0 0
    %1085 = vmatprep.subr.bf16.mxu0 0
    %1086 = vmatpush2.bf16.msra.mxu0 0
    %1087 = vmatprep.subr.bf16.mxu0 0
    %1088 = vmatpush2.bf16.msra.mxu0 0
    %1089 = vmatprep.subr.bf16.mxu0 0
    %1090 = vmatpush2.bf16.msra.mxu0 0
    %1091 = vmatprep.subr.bf16.mxu0 0
    %1092 = vmatpush2.bf16.msra.mxu0 0
    %1093 = vmatprep.subr.bf16.mxu0 0
    %1094 = vmatpush2.bf16.msra.mxu0 0
    %1095 = vmatprep.mubr.bf16.mxu0 0
    %1096 = vmatmul.mubr.bf16.gmra.mxu0 %v1058
    %v1097 = vpop.f32.mrf.mxu0
    %v1098 = vadd.f32 0.0, %v1097
    %v1099 = vpop.f32.mrf.mxu0
    %v1100 = vpop.f32.mrf.mxu0
    %v1101 = vpop.f32.mrf.mxu0
    %1102 = vdwg.mxu0
    %1104 = vrot.lane.b32.xlu0 %v882, 96
    %v1105 = vpop.permute.xlu0 %1104
    %1107 = vrot.lane.b32.xlu0 %v884, 96
    %v1108 = vpop.permute.xlu0 %1107
    %v1110 = vsel %vm888, %v1105, 0
    %v1113 = vsel %vm888, %v1108, 0
    %1115 = vmatprep.subr.bf16.mxu0 0
    %1116 = vmatpush1.bf16.xpose.msra.mxu0 0
    %1117 = vmatprep.subr.bf16.mxu0 0
    %1118 = vmatpush1.bf16.xpose.msra.mxu0 0
    %1119 = vmatprep.subr.bf16.mxu0 0
    %1120 = vmatpush1.bf16.xpose.msra.mxu0 0
    %1121 = vmatprep.subr.bf16.mxu0 0
    %1122 = vmatpush1.bf16.xpose.msra.mxu0 0
    %1123 = vmatprep.subr.bf16.mxu0 0
    %1124 = vmatpush1.bf16.xpose.msra.mxu0 0
    %1125 = vmatprep.subr.bf16.mxu0 0
    %1126 = vmatpush1.bf16.xpose.msra.mxu0 0
    %1127 = vmatprep.subr.bf16.mxu0 0
    %1128 = vmatpush1.bf16.xpose.msra.mxu0 0
    %1129 = vmatprep.subr.bf16.mxu0 0
    %1130 = vmatpush1.bf16.xpose.msra.mxu0 %v1113
    %1131 = vmatprep.subr.bf16.mxu0 0
    %1132 = vmatpush2.bf16.xpose.msra.mxu0 0
    %1133 = vmatprep.subr.bf16.mxu0 0
    %1134 = vmatpush2.bf16.xpose.msra.mxu0 0
    %1135 = vmatprep.subr.bf16.mxu0 0
    %1136 = vmatpush2.bf16.xpose.msra.mxu0 0
    %1137 = vmatprep.subr.bf16.mxu0 0
    %1138 = vmatpush2.bf16.xpose.msra.mxu0 0
    %1139 = vmatprep.subr.bf16.mxu0 0
    %1140 = vmatpush2.bf16.xpose.msra.mxu0 0
    %1141 = vmatprep.subr.bf16.mxu0 0
    %1142 = vmatpush2.bf16.xpose.msra.mxu0 0
    %1143 = vmatprep.subr.bf16.mxu0 0
    %1144 = vmatpush2.bf16.xpose.msra.mxu0 0
    %1145 = vmatprep.subr.bf16.mxu0 0
    %1146 = vmatpush2.bf16.xpose.msra.mxu0 0
    %1147 = vmatprep.mubr.bf16.mxu0 0
    %1148 = vmatmul.mubr.bf16.gmra.mxu0 %v1110
    %v1149 = vpop.f32.mrf.mxu0
    %v1150 = vadd.f32 0.0, %v1149
    %v1151 = vpop.f32.mrf.mxu0
    %v1152 = vpop.f32.mrf.mxu0
    %v1153 = vpop.f32.mrf.mxu0
    %1154 = vdwg.mxu0
    %1156 = vrot.lane.b32.xlu0 %v883, 96
    %v1157 = vpop.permute.xlu0 %1156
    %1159 = vrot.lane.b32.xlu0 %v885, 96
    %v1160 = vpop.permute.xlu0 %1159
    %v1162 = vsel %vm888, %v1157, 0
    %v1165 = vsel %vm888, %v1160, 0
    %1167 = vmatprep.subr.bf16.mxu0 0
    %1168 = vmatpush1.bf16.xpose.msra.mxu0 0
    %1169 = vmatprep.subr.bf16.mxu0 0
    %1170 = vmatpush1.bf16.xpose.msra.mxu0 0
    %1171 = vmatprep.subr.bf16.mxu0 0
    %1172 = vmatpush1.bf16.xpose.msra.mxu0 0
    %1173 = vmatprep.subr.bf16.mxu0 0
    %1174 = vmatpush1.bf16.xpose.msra.mxu0 0
    %1175 = vmatprep.subr.bf16.mxu0 0
    %1176 = vmatpush1.bf16.xpose.msra.mxu0 0
    %1177 = vmatprep.subr.bf16.mxu0 0
    %1178 = vmatpush1.bf16.xpose.msra.mxu0 0
    %1179 = vmatprep.subr.bf16.mxu0 0
    %1180 = vmatpush1.bf16.xpose.msra.mxu0 0
    %1181 = vmatprep.subr.bf16.mxu0 0
    %1182 = vmatpush1.bf16.xpose.msra.mxu0 %v1165
    %1183 = vmatprep.subr.bf16.mxu0 0
    %1184 = vmatpush2.bf16.xpose.msra.mxu0 0
    %1185 = vmatprep.subr.bf16.mxu0 0
    %1186 = vmatpush2.bf16.xpose.msra.mxu0 0
    %1187 = vmatprep.subr.bf16.mxu0 0
    %1188 = vmatpush2.bf16.xpose.msra.mxu0 0
    %1189 = vmatprep.subr.bf16.mxu0 0
    %1190 = vmatpush2.bf16.xpose.msra.mxu0 0
    %1191 = vmatprep.subr.bf16.mxu0 0
    %1192 = vmatpush2.bf16.xpose.msra.mxu0 0
    %1193 = vmatprep.subr.bf16.mxu0 0
    %1194 = vmatpush2.bf16.xpose.msra.mxu0 0
    %1195 = vmatprep.subr.bf16.mxu0 0
    %1196 = vmatpush2.bf16.xpose.msra.mxu0 0
    %1197 = vmatprep.subr.bf16.mxu0 0
    %1198 = vmatpush2.bf16.xpose.msra.mxu0 0
    %1199 = vmatprep.mubr.bf16.mxu0 0
    %1200 = vmatmul.mubr.bf16.gmra.mxu0 %v1162
    %v1201 = vpop.f32.mrf.mxu0
    %v1202 = vadd.f32 0.0, %v1201
    %v1203 = vpop.f32.mrf.mxu0
    %v1204 = vpop.f32.mrf.mxu0
    %v1205 = vpop.f32.mrf.mxu0
    %1206 = vdwg.mxu0
    %v1207 = vmul.f32 %v1150, 0.17677669
    %v1208 = vmul.f32 %v1202, 0.17677669
    %v1209 = vadd.f32 %v1207, %v583
    %v1210 = vadd.f32 %v1208, %v583
    %v1211 = vsel %vm985, %v1209, -inf
    %1212 = vmax.xlane.f32.xlu0 %v1211
    %v1213 = vpop.xlane.xlu0 %1212
    %v1214 = vsel %vm985, %v1210, -inf
    %1215 = vmax.xlane.f32.xlu0 %v1214
    %v1216 = vpop.xlane.xlu0 %1215
    %v1217 = vsub.f32 %v1209, %v1213
    %v1218 = vsub.f32 %v1210, %v1216
    %v1219 = vmul.f32 %v1217, 1.442695
    %v1220 = vpow.pop %v1219
    %v1221 = vmul.f32 %v1218, 1.442695
    %v1222 = vpow.pop %v1221
    %v1223 = vsel %vm985, %v1220, 0.0
    %1224 = vadd.xlane.f32.xlu0 %v1223
    %v1225 = vpop.xlane.xlu0 %1224
    %v1226 = vsel %vm985, %v1222, 0.0
    %1227 = vadd.xlane.f32.xlu0 %v1226
    %v1228 = vpop.xlane.xlu0 %1227
    %v1229 = vrcp.pop %v1225
    %v1230 = vrcp.pop %v1228
    %v1231 = vmul.f32 %v1220, %v1229
    %v1232 = vmul.f32 %v1222, %v1230
    %v1233 = vpack.c.bf16 %v1231, %v1231
    %v1234 = vpack.c.bf16 %v1232, %v1232
    %1236 = vrot.lane.b32.xlu0 %v886, 96
    %v1237 = vpop.permute.xlu0 %1236
    %v1239 = vsel %vm985, %v1233, 0
    %v1242 = vsel %vm1013, %v1237, 0
    %1244 = vmatprep.subr.bf16.mxu0 0
    %1245 = vmatpush1.bf16.msra.mxu0 0
    %1246 = vmatprep.subr.bf16.mxu0 0
    %1247 = vmatpush1.bf16.msra.mxu0 0
    %1248 = vmatprep.subr.bf16.mxu0 0
    %1249 = vmatpush1.bf16.msra.mxu0 0
    %1250 = vmatprep.subr.bf16.mxu0 0
    %1251 = vmatpush1.bf16.msra.mxu0 0
    %1252 = vmatprep.subr.bf16.mxu0 0
    %1253 = vmatpush1.bf16.msra.mxu0 0
    %1254 = vmatprep.subr.bf16.mxu0 0
    %1255 = vmatpush1.bf16.msra.mxu0 0
    %1256 = vmatprep.subr.bf16.mxu0 0
    %1257 = vmatpush1.bf16.msra.mxu0 0
    %1258 = vmatprep.subr.bf16.mxu0 0
    %1259 = vmatpush1.bf16.msra.mxu0 %v1242
    %1260 = vmatprep.subr.bf16.mxu0 0
    %1261 = vmatpush2.bf16.msra.mxu0 0
    %1262 = vmatprep.subr.bf16.mxu0 0
    %1263 = vmatpush2.bf16.msra.mxu0 0
    %1264 = vmatprep.subr.bf16.mxu0 0
    %1265 = vmatpush2.bf16.msra.mxu0 0
    %1266 = vmatprep.subr.bf16.mxu0 0
    %1267 = vmatpush2.bf16.msra.mxu0 0
    %1268 = vmatprep.subr.bf16.mxu0 0
    %1269 = vmatpush2.bf16.msra.mxu0 0
    %1270 = vmatprep.subr.bf16.mxu0 0
    %1271 = vmatpush2.bf16.msra.mxu0 0
    %1272 = vmatprep.subr.bf16.mxu0 0
    %1273 = vmatpush2.bf16.msra.mxu0 0
    %1274 = vmatprep.subr.bf16.mxu0 0
    %1275 = vmatpush2.bf16.msra.mxu0 0
    %1276 = vmatprep.mubr.bf16.mxu0 0
    %1277 = vmatmul.mubr.bf16.gmra.mxu0 %v1239
    %v1278 = vpop.f32.mrf.mxu0
    %v1279 = vadd.f32 0.0, %v1278
    %v1280 = vpop.f32.mrf.mxu0
    %v1281 = vpop.f32.mrf.mxu0
    %v1282 = vpop.f32.mrf.mxu0
    %1283 = vdwg.mxu0
    %1285 = vrot.lane.b32.xlu0 %v887, 96
    %v1286 = vpop.permute.xlu0 %1285
    %v1288 = vsel %vm985, %v1234, 0
    %v1291 = vsel %vm1013, %v1286, 0
    %1293 = vmatprep.subr.bf16.mxu0 0
    %1294 = vmatpush1.bf16.msra.mxu0 0
    %1295 = vmatprep.subr.bf16.mxu0 0
    %1296 = vmatpush1.bf16.msra.mxu0 0
    %1297 = vmatprep.subr.bf16.mxu0 0
    %1298 = vmatpush1.bf16.msra.mxu0 0
    %1299 = vmatprep.subr.bf16.mxu0 0
    %1300 = vmatpush1.bf16.msra.mxu0 0
    %1301 = vmatprep.subr.bf16.mxu0 0
    %1302 = vmatpush1.bf16.msra.mxu0 0
    %1303 = vmatprep.subr.bf16.mxu0 0
    %1304 = vmatpush1.bf16.msra.mxu0 0
    %1305 = vmatprep.subr.bf16.mxu0 0
    %1306 = vmatpush1.bf16.msra.mxu0 0
    %1307 = vmatprep.subr.bf16.mxu0 0
    %1308 = vmatpush1.bf16.msra.mxu0 %v1291
    %1309 = vmatprep.subr.bf16.mxu0 0
    %1310 = vmatpush2.bf16.msra.mxu0 0
    %1311 = vmatprep.subr.bf16.mxu0 0
    %1312 = vmatpush2.bf16.msra.mxu0 0
    %1313 = vmatprep.subr.bf16.mxu0 0
    %1314 = vmatpush2.bf16.msra.mxu0 0
    %1315 = vmatprep.subr.bf16.mxu0 0
    %1316 = vmatpush2.bf16.msra.mxu0 0
    %1317 = vmatprep.subr.bf16.mxu0 0
    %1318 = vmatpush2.bf16.msra.mxu0 0
    %1319 = vmatprep.subr.bf16.mxu0 0
    %1320 = vmatpush2.bf16.msra.mxu0 0
    %1321 = vmatprep.subr.bf16.mxu0 0
    %1322 = vmatpush2.bf16.msra.mxu0 0
    %1323 = vmatprep.subr.bf16.mxu0 0
    %1324 = vmatpush2.bf16.msra.mxu0 0
    %1325 = vmatprep.mubr.bf16.mxu0 0
    %1326 = vmatmul.mubr.bf16.gmra.mxu0 %v1288
    %v1327 = vpop.f32.mrf.mxu0
    %v1328 = vadd.f32 0.0, %v1327
    %v1329 = vpop.f32.mrf.mxu0
    %v1330 = vpop.f32.mrf.mxu0
    %v1331 = vpop.f32.mrf.mxu0
    %1332 = vdwg.mxu0
    %1333 = vrot.lane.b32.xlu0 %v882, 64
    %v1334 = vpop.permute.xlu0 %1333
    %1335 = vrot.lane.b32.xlu0 %v884, 64
    %v1336 = vpop.permute.xlu0 %1335
    %v1338 = vsel %vm888, %v1334, 0
    %v1341 = vsel %vm888, %v1336, 0
    %1343 = vmatprep.subr.bf16.mxu0 0
    %1344 = vmatpush1.bf16.xpose.msra.mxu0 0
    %1345 = vmatprep.subr.bf16.mxu0 0
    %1346 = vmatpush1.bf16.xpose.msra.mxu0 0
    %1347 = vmatprep.subr.bf16.mxu0 0
    %1348 = vmatpush1.bf16.xpose.msra.mxu0 0
    %1349 = vmatprep.subr.bf16.mxu0 0
    %1350 = vmatpush1.bf16.xpose.msra.mxu0 0
    %1351 = vmatprep.subr.bf16.mxu0 0
    %1352 = vmatpush1.bf16.xpose.msra.mxu0 0
    %1353 = vmatprep.subr.bf16.mxu0 0
    %1354 = vmatpush1.bf16.xpose.msra.mxu0 0
    %1355 = vmatprep.subr.bf16.mxu0 0
    %1356 = vmatpush1.bf16.xpose.msra.mxu0 0
    %1357 = vmatprep.subr.bf16.mxu0 0
    %1358 = vmatpush1.bf16.xpose.msra.mxu0 %v1341
    %1359 = vmatprep.subr.bf16.mxu0 0
    %1360 = vmatpush2.bf16.xpose.msra.mxu0 0
    %1361 = vmatprep.subr.bf16.mxu0 0
    %1362 = vmatpush2.bf16.xpose.msra.mxu0 0
    %1363 = vmatprep.subr.bf16.mxu0 0
    %1364 = vmatpush2.bf16.xpose.msra.mxu0 0
    %1365 = vmatprep.subr.bf16.mxu0 0
    %1366 = vmatpush2.bf16.xpose.msra.mxu0 0
    %1367 = vmatprep.subr.bf16.mxu0 0
    %1368 = vmatpush2.bf16.xpose.msra.mxu0 0
    %1369 = vmatprep.subr.bf16.mxu0 0
    %1370 = vmatpush2.bf16.xpose.msra.mxu0 0
    %1371 = vmatprep.subr.bf16.mxu0 0
    %1372 = vmatpush2.bf16.xpose.msra.mxu0 0
    %1373 = vmatprep.subr.bf16.mxu0 0
    %1374 = vmatpush2.bf16.xpose.msra.mxu0 0
    %1375 = vmatprep.mubr.bf16.mxu0 0
    %1376 = vmatmul.mubr.bf16.gmra.mxu0 %v1338
    %v1377 = vpop.f32.mrf.mxu0
    %v1378 = vadd.f32 0.0, %v1377
    %v1379 = vpop.f32.mrf.mxu0
    %v1380 = vpop.f32.mrf.mxu0
    %v1381 = vpop.f32.mrf.mxu0
    %1382 = vdwg.mxu0
    %1383 = vrot.lane.b32.xlu0 %v883, 64
    %v1384 = vpop.permute.xlu0 %1383
    %1385 = vrot.lane.b32.xlu0 %v885, 64
    %v1386 = vpop.permute.xlu0 %1385
    %v1388 = vsel %vm888, %v1384, 0
    %v1391 = vsel %vm888, %v1386, 0
    %1393 = vmatprep.subr.bf16.mxu0 0
    %1394 = vmatpush1.bf16.xpose.msra.mxu0 0
    %1395 = vmatprep.subr.bf16.mxu0 0
    %1396 = vmatpush1.bf16.xpose.msra.mxu0 0
    %1397 = vmatprep.subr.bf16.mxu0 0
    %1398 = vmatpush1.bf16.xpose.msra.mxu0 0
    %1399 = vmatprep.subr.bf16.mxu0 0
    %1400 = vmatpush1.bf16.xpose.msra.mxu0 0
    %1401 = vmatprep.subr.bf16.mxu0 0
    %1402 = vmatpush1.bf16.xpose.msra.mxu0 0
    %1403 = vmatprep.subr.bf16.mxu0 0
    %1404 = vmatpush1.bf16.xpose.msra.mxu0 0
    %1405 = vmatprep.subr.bf16.mxu0 0
    %1406 = vmatpush1.bf16.xpose.msra.mxu0 0
    %1407 = vmatprep.subr.bf16.mxu0 0
    %1408 = vmatpush1.bf16.xpose.msra.mxu0 %v1391
    %1409 = vmatprep.subr.bf16.mxu0 0
    %1410 = vmatpush2.bf16.xpose.msra.mxu0 0
    %1411 = vmatprep.subr.bf16.mxu0 0
    %1412 = vmatpush2.bf16.xpose.msra.mxu0 0
    %1413 = vmatprep.subr.bf16.mxu0 0
    %1414 = vmatpush2.bf16.xpose.msra.mxu0 0
    %1415 = vmatprep.subr.bf16.mxu0 0
    %1416 = vmatpush2.bf16.xpose.msra.mxu0 0
    %1417 = vmatprep.subr.bf16.mxu0 0
    %1418 = vmatpush2.bf16.xpose.msra.mxu0 0
    %1419 = vmatprep.subr.bf16.mxu0 0
    %1420 = vmatpush2.bf16.xpose.msra.mxu0 0
    %1421 = vmatprep.subr.bf16.mxu0 0
    %1422 = vmatpush2.bf16.xpose.msra.mxu0 0
    %1423 = vmatprep.subr.bf16.mxu0 0
    %1424 = vmatpush2.bf16.xpose.msra.mxu0 0
    %1425 = vmatprep.mubr.bf16.mxu0 0
    %1426 = vmatmul.mubr.bf16.gmra.mxu0 %v1388
    %v1427 = vpop.f32.mrf.mxu0
    %v1428 = vadd.f32 0.0, %v1427
    %v1429 = vpop.f32.mrf.mxu0
    %v1430 = vpop.f32.mrf.mxu0
    %v1431 = vpop.f32.mrf.mxu0
    %1432 = vdwg.mxu0
    %v1433 = vmul.f32 %v1378, 0.17677669
    %v1434 = vmul.f32 %v1428, 0.17677669
    %v1435 = vadd.f32 %v1433, %v583
    %v1436 = vadd.f32 %v1434, %v583
    %v1437 = vsel %vm985, %v1435, -inf
    %1438 = vmax.xlane.f32.xlu0 %v1437
    %v1439 = vpop.xlane.xlu0 %1438
    %v1440 = vsel %vm985, %v1436, -inf
    %1441 = vmax.xlane.f32.xlu0 %v1440
    %v1442 = vpop.xlane.xlu0 %1441
    %v1443 = vsub.f32 %v1435, %v1439
    %v1444 = vsub.f32 %v1436, %v1442
    %v1445 = vmul.f32 %v1443, 1.442695
    %v1446 = vpow.pop %v1445
    %v1447 = vmul.f32 %v1444, 1.442695
    %v1448 = vpow.pop %v1447
    %v1449 = vsel %vm985, %v1446, 0.0
    %1450 = vadd.xlane.f32.xlu0 %v1449
    %v1451 = vpop.xlane.xlu0 %1450
    %v1452 = vsel %vm985, %v1448, 0.0
    %1453 = vadd.xlane.f32.xlu0 %v1452
    %v1454 = vpop.xlane.xlu0 %1453
    %v1455 = vrcp.pop %v1451
    %v1456 = vrcp.pop %v1454
    %v1457 = vmul.f32 %v1446, %v1455
    %v1458 = vmul.f32 %v1448, %v1456
    %v1459 = vpack.c.bf16 %v1457, %v1457
    %v1460 = vpack.c.bf16 %v1458, %v1458
    %1461 = vrot.lane.b32.xlu0 %v886, 64
    %v1462 = vpop.permute.xlu0 %1461
    %v1464 = vsel %vm985, %v1459, 0
    %v1467 = vsel %vm1013, %v1462, 0
    %1469 = vmatprep.subr.bf16.mxu0 0
    %1470 = vmatpush1.bf16.msra.mxu0 0
    %1471 = vmatprep.subr.bf16.mxu0 0
    %1472 = vmatpush1.bf16.msra.mxu0 0
    %1473 = vmatprep.subr.bf16.mxu0 0
    %1474 = vmatpush1.bf16.msra.mxu0 0
    %1475 = vmatprep.subr.bf16.mxu0 0
    %1476 = vmatpush1.bf16.msra.mxu0 0
    %1477 = vmatprep.subr.bf16.mxu0 0
    %1478 = vmatpush1.bf16.msra.mxu0 0
    %1479 = vmatprep.subr.bf16.mxu0 0
    %1480 = vmatpush1.bf16.msra.mxu0 0
    %1481 = vmatprep.subr.bf16.mxu0 0
    %1482 = vmatpush1.bf16.msra.mxu0 0
    %1483 = vmatprep.subr.bf16.mxu0 0
    %1484 = vmatpush1.bf16.msra.mxu0 %v1467
    %1485 = vmatprep.subr.bf16.mxu0 0
    %1486 = vmatpush2.bf16.msra.mxu0 0
    %1487 = vmatprep.subr.bf16.mxu0 0
    %1488 = vmatpush2.bf16.msra.mxu0 0
    %1489 = vmatprep.subr.bf16.mxu0 0
    %1490 = vmatpush2.bf16.msra.mxu0 0
    %1491 = vmatprep.subr.bf16.mxu0 0
    %1492 = vmatpush2.bf16.msra.mxu0 0
    %1493 = vmatprep.subr.bf16.mxu0 0
    %1494 = vmatpush2.bf16.msra.mxu0 0
    %1495 = vmatprep.subr.bf16.mxu0 0
    %1496 = vmatpush2.bf16.msra.mxu0 0
    %1497 = vmatprep.subr.bf16.mxu0 0
    %1498 = vmatpush2.bf16.msra.mxu0 0
    %1499 = vmatprep.subr.bf16.mxu0 0
    %1500 = vmatpush2.bf16.msra.mxu0 0
    %1501 = vmatprep.mubr.bf16.mxu0 0
    %1502 = vmatmul.mubr.bf16.gmra.mxu0 %v1464
    %v1503 = vpop.f32.mrf.mxu0
    %v1504 = vadd.f32 0.0, %v1503
    %v1505 = vpop.f32.mrf.mxu0
    %v1506 = vpop.f32.mrf.mxu0
    %v1507 = vpop.f32.mrf.mxu0
    %1508 = vdwg.mxu0
    %1509 = vrot.lane.b32.xlu0 %v887, 64
    %v1510 = vpop.permute.xlu0 %1509
    %v1512 = vsel %vm985, %v1460, 0
    %v1515 = vsel %vm1013, %v1510, 0
    %1517 = vmatprep.subr.bf16.mxu0 0
    %1518 = vmatpush1.bf16.msra.mxu0 0
    %1519 = vmatprep.subr.bf16.mxu0 0
    %1520 = vmatpush1.bf16.msra.mxu0 0
    %1521 = vmatprep.subr.bf16.mxu0 0
    %1522 = vmatpush1.bf16.msra.mxu0 0
    %1523 = vmatprep.subr.bf16.mxu0 0
    %1524 = vmatpush1.bf16.msra.mxu0 0
    %1525 = vmatprep.subr.bf16.mxu0 0
    %1526 = vmatpush1.bf16.msra.mxu0 0
    %1527 = vmatprep.subr.bf16.mxu0 0
    %1528 = vmatpush1.bf16.msra.mxu0 0
    %1529 = vmatprep.subr.bf16.mxu0 0
    %1530 = vmatpush1.bf16.msra.mxu0 0
    %1531 = vmatprep.subr.bf16.mxu0 0
    %1532 = vmatpush1.bf16.msra.mxu0 %v1515
    %1533 = vmatprep.subr.bf16.mxu0 0
    %1534 = vmatpush2.bf16.msra.mxu0 0
    %1535 = vmatprep.subr.bf16.mxu0 0
    %1536 = vmatpush2.bf16.msra.mxu0 0
    %1537 = vmatprep.subr.bf16.mxu0 0
    %1538 = vmatpush2.bf16.msra.mxu0 0
    %1539 = vmatprep.subr.bf16.mxu0 0
    %1540 = vmatpush2.bf16.msra.mxu0 0
    %1541 = vmatprep.subr.bf16.mxu0 0
    %1542 = vmatpush2.bf16.msra.mxu0 0
    %1543 = vmatprep.subr.bf16.mxu0 0
    %1544 = vmatpush2.bf16.msra.mxu0 0
    %1545 = vmatprep.subr.bf16.mxu0 0
    %1546 = vmatpush2.bf16.msra.mxu0 0
    %1547 = vmatprep.subr.bf16.mxu0 0
    %1548 = vmatpush2.bf16.msra.mxu0 0
    %1549 = vmatprep.mubr.bf16.mxu0 0
    %1550 = vmatmul.mubr.bf16.gmra.mxu0 %v1512
    %v1551 = vpop.f32.mrf.mxu0
    %v1552 = vadd.f32 0.0, %v1551
    %v1553 = vpop.f32.mrf.mxu0
    %v1554 = vpop.f32.mrf.mxu0
    %v1555 = vpop.f32.mrf.mxu0
    %1556 = vdwg.mxu0
    %1557 = vrot.lane.b32.xlu0 %v882, 32
    %v1558 = vpop.permute.xlu0 %1557
    %1559 = vrot.lane.b32.xlu0 %v884, 32
    %v1560 = vpop.permute.xlu0 %1559
    %v1562 = vsel %vm888, %v1558, 0
    %v1565 = vsel %vm888, %v1560, 0
    %1567 = vmatprep.subr.bf16.mxu0 0
    %1568 = vmatpush1.bf16.xpose.msra.mxu0 0
    %1569 = vmatprep.subr.bf16.mxu0 0
    %1570 = vmatpush1.bf16.xpose.msra.mxu0 0
    %1571 = vmatprep.subr.bf16.mxu0 0
    %1572 = vmatpush1.bf16.xpose.msra.mxu0 0
    %1573 = vmatprep.subr.bf16.mxu0 0
    %1574 = vmatpush1.bf16.xpose.msra.mxu0 0
    %1575 = vmatprep.subr.bf16.mxu0 0
    %1576 = vmatpush1.bf16.xpose.msra.mxu0 0
    %1577 = vmatprep.subr.bf16.mxu0 0
    %1578 = vmatpush1.bf16.xpose.msra.mxu0 0
    %1579 = vmatprep.subr.bf16.mxu0 0
    %1580 = vmatpush1.bf16.xpose.msra.mxu0 0
    %1581 = vmatprep.subr.bf16.mxu0 0
    %1582 = vmatpush1.bf16.xpose.msra.mxu0 %v1565
    %1583 = vmatprep.subr.bf16.mxu0 0
    %1584 = vmatpush2.bf16.xpose.msra.mxu0 0
    %1585 = vmatprep.subr.bf16.mxu0 0
    %1586 = vmatpush2.bf16.xpose.msra.mxu0 0
    %1587 = vmatprep.subr.bf16.mxu0 0
    %1588 = vmatpush2.bf16.xpose.msra.mxu0 0
    %1589 = vmatprep.subr.bf16.mxu0 0
    %1590 = vmatpush2.bf16.xpose.msra.mxu0 0
    %1591 = vmatprep.subr.bf16.mxu0 0
    %1592 = vmatpush2.bf16.xpose.msra.mxu0 0
    %1593 = vmatprep.subr.bf16.mxu0 0
    %1594 = vmatpush2.bf16.xpose.msra.mxu0 0
    %1595 = vmatprep.subr.bf16.mxu0 0
    %1596 = vmatpush2.bf16.xpose.msra.mxu0 0
    %1597 = vmatprep.subr.bf16.mxu0 0
    %1598 = vmatpush2.bf16.xpose.msra.mxu0 0
    %1599 = vmatprep.mubr.bf16.mxu0 0
    %1600 = vmatmul.mubr.bf16.gmra.mxu0 %v1562
    %v1601 = vpop.f32.mrf.mxu0
    %v1602 = vadd.f32 0.0, %v1601
    %v1603 = vpop.f32.mrf.mxu0
    %v1604 = vpop.f32.mrf.mxu0
    %v1605 = vpop.f32.mrf.mxu0
    %1606 = vdwg.mxu0
    %1607 = vrot.lane.b32.xlu0 %v883, 32
    %v1608 = vpop.permute.xlu0 %1607
    %1609 = vrot.lane.b32.xlu0 %v885, 32
    %v1610 = vpop.permute.xlu0 %1609
    %v1612 = vsel %vm888, %v1608, 0
    %v1615 = vsel %vm888, %v1610, 0
    %1617 = vmatprep.subr.bf16.mxu0 0
    %1618 = vmatpush1.bf16.xpose.msra.mxu0 0
    %1619 = vmatprep.subr.bf16.mxu0 0
    %1620 = vmatpush1.bf16.xpose.msra.mxu0 0
    %1621 = vmatprep.subr.bf16.mxu0 0
    %1622 = vmatpush1.bf16.xpose.msra.mxu0 0
    %1623 = vmatprep.subr.bf16.mxu0 0
    %1624 = vmatpush1.bf16.xpose.msra.mxu0 0
    %1625 = vmatprep.subr.bf16.mxu0 0
    %1626 = vmatpush1.bf16.xpose.msra.mxu0 0
    %1627 = vmatprep.subr.bf16.mxu0 0
    %1628 = vmatpush1.bf16.xpose.msra.mxu0 0
    %1629 = vmatprep.subr.bf16.mxu0 0
    %1630 = vmatpush1.bf16.xpose.msra.mxu0 0
    %1631 = vmatprep.subr.bf16.mxu0 0
    %1632 = vmatpush1.bf16.xpose.msra.mxu0 %v1615
    %1633 = vmatprep.subr.bf16.mxu0 0
    %1634 = vmatpush2.bf16.xpose.msra.mxu0 0
    %1635 = vmatprep.subr.bf16.mxu0 0
    %1636 = vmatpush2.bf16.xpose.msra.mxu0 0
    %1637 = vmatprep.subr.bf16.mxu0 0
    %1638 = vmatpush2.bf16.xpose.msra.mxu0 0
    %1639 = vmatprep.subr.bf16.mxu0 0
    %1640 = vmatpush2.bf16.xpose.msra.mxu0 0
    %1641 = vmatprep.subr.bf16.mxu0 0
    %1642 = vmatpush2.bf16.xpose.msra.mxu0 0
    %1643 = vmatprep.subr.bf16.mxu0 0
    %1644 = vmatpush2.bf16.xpose.msra.mxu0 0
    %1645 = vmatprep.subr.bf16.mxu0 0
    %1646 = vmatpush2.bf16.xpose.msra.mxu0 0
    %1647 = vmatprep.subr.bf16.mxu0 0
    %1648 = vmatpush2.bf16.xpose.msra.mxu0 0
    %1649 = vmatprep.mubr.bf16.mxu0 0
    %1650 = vmatmul.mubr.bf16.gmra.mxu0 %v1612
    %v1651 = vpop.f32.mrf.mxu0
    %v1652 = vadd.f32 0.0, %v1651
    %v1653 = vpop.f32.mrf.mxu0
    %v1654 = vpop.f32.mrf.mxu0
    %v1655 = vpop.f32.mrf.mxu0
    %1656 = vdwg.mxu0
    %v1657 = vmul.f32 %v1602, 0.17677669
    %v1658 = vmul.f32 %v1652, 0.17677669
    %v1659 = vadd.f32 %v1657, %v583
    %v1660 = vadd.f32 %v1658, %v583
    %v1661 = vsel %vm985, %v1659, -inf
    %1662 = vmax.xlane.f32.xlu0 %v1661
    %v1663 = vpop.xlane.xlu0 %1662
    %v1664 = vsel %vm985, %v1660, -inf
    %1665 = vmax.xlane.f32.xlu0 %v1664
    %v1666 = vpop.xlane.xlu0 %1665
    %v1667 = vsub.f32 %v1659, %v1663
    %v1668 = vsub.f32 %v1660, %v1666
    %v1669 = vmul.f32 %v1667, 1.442695
    %v1670 = vpow.pop %v1669
    %v1671 = vmul.f32 %v1668, 1.442695
    %v1672 = vpow.pop %v1671
    %v1673 = vsel %vm985, %v1670, 0.0
    %1674 = vadd.xlane.f32.xlu0 %v1673
    %v1675 = vpop.xlane.xlu0 %1674
    %v1676 = vsel %vm985, %v1672, 0.0
    %1677 = vadd.xlane.f32.xlu0 %v1676
    %v1678 = vpop.xlane.xlu0 %1677
    %v1679 = vrcp.pop %v1675
    %v1680 = vrcp.pop %v1678
    %v1681 = vmul.f32 %v1670, %v1679
    %v1682 = vmul.f32 %v1672, %v1680
    %v1683 = vpack.c.bf16 %v1681, %v1681
    %v1684 = vpack.c.bf16 %v1682, %v1682
    %1685 = vrot.lane.b32.xlu0 %v886, 32
    %v1686 = vpop.permute.xlu0 %1685
    %v1688 = vsel %vm985, %v1683, 0
    %v1691 = vsel %vm1013, %v1686, 0
    %1693 = vmatprep.subr.bf16.mxu0 0
    %1694 = vmatpush1.bf16.msra.mxu0 0
    %1695 = vmatprep.subr.bf16.mxu0 0
    %1696 = vmatpush1.bf16.msra.mxu0 0
    %1697 = vmatprep.subr.bf16.mxu0 0
    %1698 = vmatpush1.bf16.msra.mxu0 0
    %1699 = vmatprep.subr.bf16.mxu0 0
    %1700 = vmatpush1.bf16.msra.mxu0 0
    %1701 = vmatprep.subr.bf16.mxu0 0
    %1702 = vmatpush1.bf16.msra.mxu0 0
    %1703 = vmatprep.subr.bf16.mxu0 0
    %1704 = vmatpush1.bf16.msra.mxu0 0
    %1705 = vmatprep.subr.bf16.mxu0 0
    %1706 = vmatpush1.bf16.msra.mxu0 0
    %1707 = vmatprep.subr.bf16.mxu0 0
    %1708 = vmatpush1.bf16.msra.mxu0 %v1691
    %1709 = vmatprep.subr.bf16.mxu0 0
    %1710 = vmatpush2.bf16.msra.mxu0 0
    %1711 = vmatprep.subr.bf16.mxu0 0
    %1712 = vmatpush2.bf16.msra.mxu0 0
    %1713 = vmatprep.subr.bf16.mxu0 0
    %1714 = vmatpush2.bf16.msra.mxu0 0
    %1715 = vmatprep.subr.bf16.mxu0 0
    %1716 = vmatpush2.bf16.msra.mxu0 0
    %1717 = vmatprep.subr.bf16.mxu0 0
    %1718 = vmatpush2.bf16.msra.mxu0 0
    %1719 = vmatprep.subr.bf16.mxu0 0
    %1720 = vmatpush2.bf16.msra.mxu0 0
    %1721 = vmatprep.subr.bf16.mxu0 0
    %1722 = vmatpush2.bf16.msra.mxu0 0
    %1723 = vmatprep.subr.bf16.mxu0 0
    %1724 = vmatpush2.bf16.msra.mxu0 0
    %1725 = vmatprep.mubr.bf16.mxu0 0
    %1726 = vmatmul.mubr.bf16.gmra.mxu0 %v1688
    %v1727 = vpop.f32.mrf.mxu0
    %v1728 = vadd.f32 0.0, %v1727
    %v1729 = vpop.f32.mrf.mxu0
    %v1730 = vpop.f32.mrf.mxu0
    %v1731 = vpop.f32.mrf.mxu0
    %1732 = vdwg.mxu0
    %1733 = vrot.lane.b32.xlu0 %v887, 32
    %v1734 = vpop.permute.xlu0 %1733
    %v1736 = vsel %vm985, %v1684, 0
    %v1739 = vsel %vm1013, %v1734, 0
    %1741 = vmatprep.subr.bf16.mxu0 0
    %1742 = vmatpush1.bf16.msra.mxu0 0
    %1743 = vmatprep.subr.bf16.mxu0 0
    %1744 = vmatpush1.bf16.msra.mxu0 0
    %1745 = vmatprep.subr.bf16.mxu0 0
    %1746 = vmatpush1.bf16.msra.mxu0 0
    %1747 = vmatprep.subr.bf16.mxu0 0
    %1748 = vmatpush1.bf16.msra.mxu0 0
    %1749 = vmatprep.subr.bf16.mxu0 0
    %1750 = vmatpush1.bf16.msra.mxu0 0
    %1751 = vmatprep.subr.bf16.mxu0 0
    %1752 = vmatpush1.bf16.msra.mxu0 0
    %1753 = vmatprep.subr.bf16.mxu0 0
    %1754 = vmatpush1.bf16.msra.mxu0 0
    %1755 = vmatprep.subr.bf16.mxu0 0
    %1756 = vmatpush1.bf16.msra.mxu0 %v1739
    %1757 = vmatprep.subr.bf16.mxu0 0
    %1758 = vmatpush2.bf16.msra.mxu0 0
    %1759 = vmatprep.subr.bf16.mxu0 0
    %1760 = vmatpush2.bf16.msra.mxu0 0
    %1761 = vmatprep.subr.bf16.mxu0 0
    %1762 = vmatpush2.bf16.msra.mxu0 0
    %1763 = vmatprep.subr.bf16.mxu0 0
    %1764 = vmatpush2.bf16.msra.mxu0 0
    %1765 = vmatprep.subr.bf16.mxu0 0
    %1766 = vmatpush2.bf16.msra.mxu0 0
    %1767 = vmatprep.subr.bf16.mxu0 0
    %1768 = vmatpush2.bf16.msra.mxu0 0
    %1769 = vmatprep.subr.bf16.mxu0 0
    %1770 = vmatpush2.bf16.msra.mxu0 0
    %1771 = vmatprep.subr.bf16.mxu0 0
    %1772 = vmatpush2.bf16.msra.mxu0 0
    %1773 = vmatprep.mubr.bf16.mxu0 0
    %1774 = vmatmul.mubr.bf16.gmra.mxu0 %v1736
    %v1775 = vpop.f32.mrf.mxu0
    %v1776 = vadd.f32 0.0, %v1775
    %v1777 = vpop.f32.mrf.mxu0
    %v1778 = vpop.f32.mrf.mxu0
    %v1779 = vpop.f32.mrf.mxu0
    %1780 = vdwg.mxu0
    %1783 = vrot.lane.b32.xlu0 %v1279, 32
    %v1784 = vpop.permute.xlu0 %1783
    %1785 = vrot.lane.b32.xlu0 %v1328, 32
    %v1786 = vpop.permute.xlu0 %1785
    %1791 = vrot.lane.b32.xlu0 %v1504, 64
    %v1792 = vpop.permute.xlu0 %1791
    %1793 = vrot.lane.b32.xlu0 %v1552, 64
    %v1794 = vpop.permute.xlu0 %1793
    %1799 = vrot.lane.b32.xlu0 %v1728, 96
    %v1800 = vpop.permute.xlu0 %1799
    %1801 = vrot.lane.b32.xlu0 %v1776, 96
    %v1802 = vpop.permute.xlu0 %1801
    %v1805 = vsel %vm888, %v1052, %v1784
    %v1806 = vsel %vm888, %v1098, %v1786
    %vm1807 = vcmask 523264
    %v1808 = vsel %vm1807, %v1805, %v1792
    %v1809 = vsel %vm1807, %v1806, %v1794
    %vm1810 = vcmask 785408
    %v1811 = vsel %vm1810, %v1808, %v1800
    %v1812 = vsel %vm1810, %v1809, %v1802
    %v1813 = vpack.c.bf16 %v1812, %v1811
    %v1814 = vld [vmem:[%s5] sm:$0xf]
    %v1815 = vld [vmem:[%s5 + $0x4] sm:$0xf]
    %v1816 = vld [vmem:[%s5 + $0x8] sm:$0xf]
    %v1817 = vld [vmem:[%s5 + $0xc] sm:$0xf]
    %v1818 = vld [vmem:[%s5 + $0x10] sm:$0xf]
    %v1819 = vld [vmem:[%s5 + $0x14] sm:$0xf]
    %v1820 = vld [vmem:[%s5 + $0x18] sm:$0xf]
    %v1821 = vld [vmem:[%s5 + $0x1c] sm:$0xf]
    %v1822 = vld [vmem:[%s5 + $0x20] sm:$0xf]
    %v1823 = vld [vmem:[%s5 + $0x24] sm:$0xf]
    %v1824 = vld [vmem:[%s5 + $0x28] sm:$0xf]
    %v1825 = vld [vmem:[%s5 + $0x2c] sm:$0xf]
    %v1826 = vld [vmem:[%s5 + $0x30] sm:$0xf]
    %v1827 = vld [vmem:[%s5 + $0x34] sm:$0xf]
    %v1828 = vld [vmem:[%s5 + $0x38] sm:$0xf]
    %v1829 = vld [vmem:[%s5 + $0x3c] sm:$0xf]
    %v1846 = vunpack.c.l.b16 %v1814
    %v1847 = vunpack.c.l.b16 %v1815
    %v1848 = vunpack.c.l.b16 %v1816
    %v1849 = vunpack.c.l.b16 %v1817
    %v1850 = vunpack.c.l.b16 %v1818
    %v1851 = vunpack.c.l.b16 %v1819
    %v1852 = vunpack.c.l.b16 %v1820
    %v1853 = vunpack.c.l.b16 %v1821
    %v1854 = vunpack.c.l.b16 %v1822
    %v1855 = vunpack.c.l.b16 %v1823
    %v1856 = vunpack.c.l.b16 %v1824
    %v1857 = vunpack.c.l.b16 %v1825
    %v1858 = vunpack.c.l.b16 %v1826
    %v1859 = vunpack.c.l.b16 %v1827
    %v1860 = vunpack.c.l.b16 %v1828
    %v1861 = vunpack.c.l.b16 %v1829
    %v1862 = vpack.c.b16 %v1847, %v1846
    %v1863 = vpack.c.b16 %v1849, %v1848
    %v1864 = vpack.c.b16 %v1851, %v1850
    %v1865 = vpack.c.b16 %v1853, %v1852
    %v1866 = vpack.c.b16 %v1855, %v1854
    %v1867 = vpack.c.b16 %v1857, %v1856
    %v1868 = vpack.c.b16 %v1859, %v1858
    %v1869 = vpack.c.b16 %v1861, %v1860
    %1878 = vmatprep.subr.bf16.mxu0 0
    %1879 = vmatpush1.bf16.msra.mxu0 %v1869
    %1880 = vmatprep.subr.bf16.mxu0 0
    %1881 = vmatpush1.bf16.msra.mxu0 %v1868
    %1882 = vmatprep.subr.bf16.mxu0 0
    %1883 = vmatpush1.bf16.msra.mxu0 %v1867
    %1884 = vmatprep.subr.bf16.mxu0 0
    %1885 = vmatpush1.bf16.msra.mxu0 %v1866
    %1886 = vmatprep.subr.bf16.mxu0 0
    %1887 = vmatpush1.bf16.msra.mxu0 %v1865
    %1888 = vmatprep.subr.bf16.mxu0 0
    %1889 = vmatpush1.bf16.msra.mxu0 %v1864
    %1890 = vmatprep.subr.bf16.mxu0 0
    %1891 = vmatpush1.bf16.msra.mxu0 %v1863
    %1892 = vmatprep.subr.bf16.mxu0 0
    %1893 = vmatpush1.bf16.msra.mxu0 %v1862
    %1894 = vmatprep.subr.bf16.mxu0 0
    %1895 = vmatpush2.bf16.msra.mxu0 0
    %1896 = vmatprep.subr.bf16.mxu0 0
    %1897 = vmatpush2.bf16.msra.mxu0 0
    %1898 = vmatprep.subr.bf16.mxu0 0
    %1899 = vmatpush2.bf16.msra.mxu0 0
    %1900 = vmatprep.subr.bf16.mxu0 0
    %1901 = vmatpush2.bf16.msra.mxu0 0
    %1902 = vmatprep.subr.bf16.mxu0 0
    %1903 = vmatpush2.bf16.msra.mxu0 0
    %1904 = vmatprep.subr.bf16.mxu0 0
    %1905 = vmatpush2.bf16.msra.mxu0 0
    %1906 = vmatprep.subr.bf16.mxu0 0
    %1907 = vmatpush2.bf16.msra.mxu0 0
    %1908 = vmatprep.subr.bf16.mxu0 0
    %1909 = vmatpush2.bf16.msra.mxu0 0
    %1910 = vmatprep.mubr.bf16.mxu0 0
    %1911 = vmatmul.mubr.bf16.gmra.mxu0 %v1813
    %v1912 = vpop.f32.mrf.mxu0
    %v1913 = vadd.f32 0.0, %v1912
    %v1914 = vpop.f32.mrf.mxu0
    %v1915 = vpop.f32.mrf.mxu0
    %v1916 = vadd.f32 0.0, %v1915
    %v1917 = vpop.f32.mrf.mxu0
    %1918 = vdwg.mxu0
    %v1919 = vadd.f32 %v578, %v1913
    %v1920 = vadd.f32 %v579, %v1916
    %v1921 = vlaneseq
    %v1922 = vshrl.u32 %v1921, 7
    %v1923 = vsub.s32 4, %v1922
    %v1924 = vrot.slane %v584, %v1923
    %v1925 = vadd.f32 %v1919, %v1924
    %v1926 = vadd.f32 %v1920, %v1924
    %1927 = vadd.xlane.f32.xlu0 %v1925
    %v1928 = vpop.xlane.xlu0 %1927
    %1929 = vadd.xlane.f32.xlu0 %v1926
    %v1930 = vpop.xlane.xlu0 %1929
    %v1931 = vmul.f32 %v1928, %v589
    %v1932 = vmul.f32 %v1930, %v589
    %v1933 = vsub.f32 %v1925, %v1931
    %v1934 = vsub.f32 %v1926, %v1932
    %v1935 = vmul.f32 %v1933, %v1933
    %v1936 = vmul.f32 %v1934, %v1934
    %1937 = vadd.xlane.f32.xlu0 %v1935
    %v1938 = vpop.xlane.xlu0 %1937
    %1939 = vadd.xlane.f32.xlu0 %v1936
    %v1940 = vpop.xlane.xlu0 %1939
    %v1941 = vmul.f32 %v1938, %v589
    %v1942 = vmul.f32 %v1940, %v589
    %v1943 = vadd.f32 %v1941, 1e-06
    %v1944 = vadd.f32 %v1942, 1e-06
    %v1945 = vrsqrt.pop %v1943
    %v1946 = vrsqrt.pop %v1944
    %v1947 = vmul.f32 %v1933, %v1945
    %v1948 = vmul.f32 %v1934, %v1946
    %v1949 = vlaneseq
    %v1950 = vshrl.u32 %v1949, 7
    %v1951 = vsub.s32 2, %v1950
    %v1952 = vrot.slane %v584, %v1951
    %v1953 = vmul.f32 %v1947, %v1952
    %v1954 = vmul.f32 %v1948, %v1952
    %v1955 = vlaneseq
    %v1956 = vshrl.u32 %v1955, 7
    %v1957 = vsub.s32 3, %v1956
    %v1958 = vrot.slane %v584, %v1957
    %v1959 = vadd.f32 %v1953, %v1958
    %v1960 = vadd.f32 %v1954, %v1958
    %v1961 = vpack.c.bf16 %v1960, %v1959
    %v1962 = vld [vmem:[%s6] sm:$0xff]
    %v1963 = vld [vmem:[%s6 + $0x8] sm:$0xff]
    %v1964 = vld [vmem:[%s6 + $0x10] sm:$0xff]
    %v1965 = vld [vmem:[%s6 + $0x18] sm:$0xff]
    %v1966 = vld [vmem:[%s6 + $0x20] sm:$0xff]
    %v1967 = vld [vmem:[%s6 + $0x28] sm:$0xff]
    %v1968 = vld [vmem:[%s6 + $0x30] sm:$0xff]
    %v1969 = vld [vmem:[%s6 + $0x38] sm:$0xff]
    %v1970 = vld [vmem:[%s6 + $0x40] sm:$0xff]
    %v1971 = vld [vmem:[%s6 + $0x48] sm:$0xff]
    %v1972 = vld [vmem:[%s6 + $0x50] sm:$0xff]
    %v1973 = vld [vmem:[%s6 + $0x58] sm:$0xff]
    %v1974 = vld [vmem:[%s6 + $0x60] sm:$0xff]
    %v1975 = vld [vmem:[%s6 + $0x68] sm:$0xff]
    %v1976 = vld [vmem:[%s6 + $0x70] sm:$0xff]
    %v1977 = vld [vmem:[%s6 + $0x78] sm:$0xff]
    %v1978 = vld [vmem:[%s7] sm:$0x3]
    %v1980 = vlaneseq
    %v1981 = vshrl.u32 %v1980, 7
    %v1982 = vsub.s32 0, %v1981
    %v1983 = vrot.slane %v1978, %v1982
    %v1984 = vlaneseq
    %v1985 = vshrl.u32 %v1984, 7
    %v1986 = vsub.s32 1, %v1985
    %v1987 = vrot.slane %v1978, %v1986
    %v2006 = vunpack.c.l.b16 %v1962
    %v2007 = vunpack.c.h.b16 %v1962
    %v2008 = vunpack.c.l.b16 %v1963
    %v2009 = vunpack.c.h.b16 %v1963
    %v2010 = vunpack.c.l.b16 %v1964
    %v2011 = vunpack.c.h.b16 %v1964
    %v2012 = vunpack.c.l.b16 %v1965
    %v2013 = vunpack.c.h.b16 %v1965
    %v2014 = vunpack.c.l.b16 %v1966
    %v2015 = vunpack.c.h.b16 %v1966
    %v2016 = vunpack.c.l.b16 %v1967
    %v2017 = vunpack.c.h.b16 %v1967
    %v2018 = vunpack.c.l.b16 %v1968
    %v2019 = vunpack.c.h.b16 %v1968
    %v2020 = vunpack.c.l.b16 %v1969
    %v2021 = vunpack.c.h.b16 %v1969
    %v2022 = vunpack.c.l.b16 %v1970
    %v2023 = vunpack.c.h.b16 %v1970
    %v2024 = vunpack.c.l.b16 %v1971
    %v2025 = vunpack.c.h.b16 %v1971
    %v2026 = vunpack.c.l.b16 %v1972
    %v2027 = vunpack.c.h.b16 %v1972
    %v2028 = vunpack.c.l.b16 %v1973
    %v2029 = vunpack.c.h.b16 %v1973
    %v2030 = vunpack.c.l.b16 %v1974
    %v2031 = vunpack.c.h.b16 %v1974
    %v2032 = vunpack.c.l.b16 %v1975
    %v2033 = vunpack.c.h.b16 %v1975
    %v2034 = vunpack.c.l.b16 %v1976
    %v2035 = vunpack.c.h.b16 %v1976
    %v2036 = vunpack.c.l.b16 %v1977
    %v2037 = vunpack.c.h.b16 %v1977
    %v2038 = vpack.c.b16 %v2008, %v2006
    %v2039 = vpack.c.b16 %v2009, %v2007
    %v2040 = vpack.c.b16 %v2012, %v2010
    %v2041 = vpack.c.b16 %v2013, %v2011
    %v2042 = vpack.c.b16 %v2016, %v2014
    %v2043 = vpack.c.b16 %v2017, %v2015
    %v2044 = vpack.c.b16 %v2020, %v2018
    %v2045 = vpack.c.b16 %v2021, %v2019
    %v2046 = vpack.c.b16 %v2024, %v2022
    %v2047 = vpack.c.b16 %v2025, %v2023
    %v2048 = vpack.c.b16 %v2028, %v2026
    %v2049 = vpack.c.b16 %v2029, %v2027
    %v2050 = vpack.c.b16 %v2032, %v2030
    %v2051 = vpack.c.b16 %v2033, %v2031
    %v2052 = vpack.c.b16 %v2036, %v2034
    %v2053 = vpack.c.b16 %v2037, %v2035
    %2070 = vmatprep.subr.bf16.mxu0 %v2053
    %2071 = vmatpush1.bf16.msra.mxu0 %v2052
    %2072 = vmatprep.subr.bf16.mxu0 %v2051
    %2073 = vmatpush1.bf16.msra.mxu0 %v2050
    %2074 = vmatprep.subr.bf16.mxu0 %v2049
    %2075 = vmatpush1.bf16.msra.mxu0 %v2048
    %2076 = vmatprep.subr.bf16.mxu0 %v2047
    %2077 = vmatpush1.bf16.msra.mxu0 %v2046
    %2078 = vmatprep.subr.bf16.mxu0 %v2045
    %2079 = vmatpush1.bf16.msra.mxu0 %v2044
    %2080 = vmatprep.subr.bf16.mxu0 %v2043
    %2081 = vmatpush1.bf16.msra.mxu0 %v2042
    %2082 = vmatprep.subr.bf16.mxu0 %v2041
    %2083 = vmatpush1.bf16.msra.mxu0 %v2040
    %2084 = vmatprep.subr.bf16.mxu0 %v2039
    %2085 = vmatpush1.bf16.msra.mxu0 %v2038
    %2086 = vmatprep.subr.bf16.mxu0 0
    %2087 = vmatpush2.bf16.msra.mxu0 0
    %2088 = vmatprep.subr.bf16.mxu0 0
    %2089 = vmatpush2.bf16.msra.mxu0 0
    %2090 = vmatprep.subr.bf16.mxu0 0
    %2091 = vmatpush2.bf16.msra.mxu0 0
    %2092 = vmatprep.subr.bf16.mxu0 0
    %2093 = vmatpush2.bf16.msra.mxu0 0
    %2094 = vmatprep.subr.bf16.mxu0 0
    %2095 = vmatpush2.bf16.msra.mxu0 0
    %2096 = vmatprep.subr.bf16.mxu0 0
    %2097 = vmatpush2.bf16.msra.mxu0 0
    %2098 = vmatprep.subr.bf16.mxu0 0
    %2099 = vmatpush2.bf16.msra.mxu0 0
    %2100 = vmatprep.subr.bf16.mxu0 0
    %2101 = vmatpush2.bf16.msra.mxu0 0
    %2102 = vmatprep.mubr.bf16.mxu0 0
    %2103 = vmatmul.mubr.bf16.gmra.mxu0 %v1961
    %v2104 = vpop.f32.mrf.mxu0
    %v2105 = vadd.f32 %v1983, %v2104
    %v2106 = vpop.f32.mrf.mxu0
    %v2107 = vadd.f32 %v1987, %v2106
    %v2108 = vpop.f32.mrf.mxu0
    %v2109 = vadd.f32 %v1983, %v2108
    %v2110 = vpop.f32.mrf.mxu0
    %v2111 = vadd.f32 %v1987, %v2110
    %2112 = vdwg.mxu0
    %v2113 = vmul.f32 %v2105, %v2105
    %v2114 = vmul.f32 %v2107, %v2107
    %v2115 = vmul.f32 %v2109, %v2109
    %v2116 = vmul.f32 %v2111, %v2111
    %v2117 = vmul.f32 %v2105, %v2113
    %v2118 = vmul.f32 %v2107, %v2114
    %v2119 = vmul.f32 %v2109, %v2115
    %v2120 = vmul.f32 %v2111, %v2116
    %v2121 = vmul.f32 %v2117, 0.044715
    %v2122 = vmul.f32 %v2118, 0.044715
    %v2123 = vmul.f32 %v2119, 0.044715
    %v2124 = vmul.f32 %v2120, 0.044715
    %v2125 = vadd.f32 %v2105, %v2121
    %v2126 = vadd.f32 %v2107, %v2122
    %v2127 = vadd.f32 %v2109, %v2123
    %v2128 = vadd.f32 %v2111, %v2124
    %v2129 = vmul.f32 %v2125, 0.7978846
    %v2130 = vmul.f32 %v2126, 0.7978846
    %v2131 = vmul.f32 %v2127, 0.7978846
    %v2132 = vmul.f32 %v2128, 0.7978846
    %v2133 = vtanh.pop %v2129
    %v2134 = vtanh.pop %v2130
    %v2135 = vtanh.pop %v2131
    %v2136 = vtanh.pop %v2132
    %v2137 = vadd.f32 %v2133, 1.0
    %v2138 = vadd.f32 %v2134, 1.0
    %v2139 = vadd.f32 %v2135, 1.0
    %v2140 = vadd.f32 %v2136, 1.0
    %v2141 = vmul.f32 %v2137, 0.5
    %v2142 = vmul.f32 %v2138, 0.5
    %v2143 = vmul.f32 %v2139, 0.5
    %v2144 = vmul.f32 %v2140, 0.5
    %v2145 = vmul.f32 %v2105, %v2141
    %v2146 = vmul.f32 %v2107, %v2142
    %v2147 = vmul.f32 %v2109, %v2143
    %v2148 = vmul.f32 %v2111, %v2144
    %v2149 = vpack.c.bf16 %v2147, %v2145
    %v2150 = vpack.c.bf16 %v2148, %v2146
    %v2151 = vld [vmem:[%s8] sm:$0xf]
    %v2152 = vld [vmem:[%s8 + $0x4] sm:$0xf]
    %v2153 = vld [vmem:[%s8 + $0x8] sm:$0xf]
    %v2154 = vld [vmem:[%s8 + $0xc] sm:$0xf]
    %v2155 = vld [vmem:[%s8 + $0x10] sm:$0xf]
    %v2156 = vld [vmem:[%s8 + $0x14] sm:$0xf]
    %v2157 = vld [vmem:[%s8 + $0x18] sm:$0xf]
    %v2158 = vld [vmem:[%s8 + $0x1c] sm:$0xf]
    %v2159 = vld [vmem:[%s8 + $0x20] sm:$0xf]
    %v2160 = vld [vmem:[%s8 + $0x24] sm:$0xf]
    %v2161 = vld [vmem:[%s8 + $0x28] sm:$0xf]
    %v2162 = vld [vmem:[%s8 + $0x2c] sm:$0xf]
    %v2163 = vld [vmem:[%s8 + $0x30] sm:$0xf]
    %v2164 = vld [vmem:[%s8 + $0x34] sm:$0xf]
    %v2165 = vld [vmem:[%s8 + $0x38] sm:$0xf]
    %v2166 = vld [vmem:[%s8 + $0x3c] sm:$0xf]
    %v2167 = vld [vmem:[%s8 + $0x40] sm:$0xf]
    %v2168 = vld [vmem:[%s8 + $0x44] sm:$0xf]
    %v2169 = vld [vmem:[%s8 + $0x48] sm:$0xf]
    %v2170 = vld [vmem:[%s8 + $0x4c] sm:$0xf]
    %v2171 = vld [vmem:[%s8 + $0x50] sm:$0xf]
    %v2172 = vld [vmem:[%s8 + $0x54] sm:$0xf]
    %v2173 = vld [vmem:[%s8 + $0x58] sm:$0xf]
    %v2174 = vld [vmem:[%s8 + $0x5c] sm:$0xf]
    %v2175 = vld [vmem:[%s8 + $0x60] sm:$0xf]
    %v2176 = vld [vmem:[%s8 + $0x64] sm:$0xf]
    %v2177 = vld [vmem:[%s8 + $0x68] sm:$0xf]
    %v2178 = vld [vmem:[%s8 + $0x6c] sm:$0xf]
    %v2179 = vld [vmem:[%s8 + $0x70] sm:$0xf]
    %v2180 = vld [vmem:[%s8 + $0x74] sm:$0xf]
    %v2181 = vld [vmem:[%s8 + $0x78] sm:$0xf]
    %v2182 = vld [vmem:[%s8 + $0x7c] sm:$0xf]
    %v2183 = vlaneseq
    %v2184 = vshrl.u32 %v2183, 7
    %v2185 = vsub.s32 5, %v2184
    %v2186 = vrot.slane %v584, %v2185
    %v2219 = vunpack.c.l.b16 %v2151
    %v2220 = vunpack.c.l.b16 %v2152
    %v2221 = vunpack.c.l.b16 %v2153
    %v2222 = vunpack.c.l.b16 %v2154
    %v2223 = vunpack.c.l.b16 %v2155
    %v2224 = vunpack.c.l.b16 %v2156
    %v2225 = vunpack.c.l.b16 %v2157
    %v2226 = vunpack.c.l.b16 %v2158
    %v2227 = vunpack.c.l.b16 %v2159
    %v2228 = vunpack.c.l.b16 %v2160
    %v2229 = vunpack.c.l.b16 %v2161
    %v2230 = vunpack.c.l.b16 %v2162
    %v2231 = vunpack.c.l.b16 %v2163
    %v2232 = vunpack.c.l.b16 %v2164
    %v2233 = vunpack.c.l.b16 %v2165
    %v2234 = vunpack.c.l.b16 %v2166
    %v2235 = vunpack.c.l.b16 %v2167
    %v2236 = vunpack.c.l.b16 %v2168
    %v2237 = vunpack.c.l.b16 %v2169
    %v2238 = vunpack.c.l.b16 %v2170
    %v2239 = vunpack.c.l.b16 %v2171
    %v2240 = vunpack.c.l.b16 %v2172
    %v2241 = vunpack.c.l.b16 %v2173
    %v2242 = vunpack.c.l.b16 %v2174
    %v2243 = vunpack.c.l.b16 %v2175
    %v2244 = vunpack.c.l.b16 %v2176
    %v2245 = vunpack.c.l.b16 %v2177
    %v2246 = vunpack.c.l.b16 %v2178
    %v2247 = vunpack.c.l.b16 %v2179
    %v2248 = vunpack.c.l.b16 %v2180
    %v2249 = vunpack.c.l.b16 %v2181
    %v2250 = vunpack.c.l.b16 %v2182
    %v2251 = vpack.c.b16 %v2220, %v2219
    %v2252 = vpack.c.b16 %v2222, %v2221
    %v2253 = vpack.c.b16 %v2224, %v2223
    %v2254 = vpack.c.b16 %v2226, %v2225
    %v2255 = vpack.c.b16 %v2228, %v2227
    %v2256 = vpack.c.b16 %v2230, %v2229
    %v2257 = vpack.c.b16 %v2232, %v2231
    %v2258 = vpack.c.b16 %v2234, %v2233
    %v2259 = vpack.c.b16 %v2236, %v2235
    %v2260 = vpack.c.b16 %v2238, %v2237
    %v2261 = vpack.c.b16 %v2240, %v2239
    %v2262 = vpack.c.b16 %v2242, %v2241
    %v2263 = vpack.c.b16 %v2244, %v2243
    %v2264 = vpack.c.b16 %v2246, %v2245
    %v2265 = vpack.c.b16 %v2248, %v2247
    %v2266 = vpack.c.b16 %v2250, %v2249
    %2283 = vmatprep.subr.bf16.mxu0 0
    %2284 = vmatpush1.bf16.msra.mxu0 %v2258
    %2285 = vmatprep.subr.bf16.mxu0 0
    %2286 = vmatpush1.bf16.msra.mxu0 %v2257
    %2287 = vmatprep.subr.bf16.mxu0 0
    %2288 = vmatpush1.bf16.msra.mxu0 %v2256
    %2289 = vmatprep.subr.bf16.mxu0 0
    %2290 = vmatpush1.bf16.msra.mxu0 %v2255
    %2291 = vmatprep.subr.bf16.mxu0 0
    %2292 = vmatpush1.bf16.msra.mxu0 %v2254
    %2293 = vmatprep.subr.bf16.mxu0 0
    %2294 = vmatpush1.bf16.msra.mxu0 %v2253
    %2295 = vmatprep.subr.bf16.mxu0 0
    %2296 = vmatpush1.bf16.msra.mxu0 %v2252
    %2297 = vmatprep.subr.bf16.mxu0 0
    %2298 = vmatpush1.bf16.msra.mxu0 %v2251
    %2299 = vmatprep.subr.bf16.mxu0 0
    %2300 = vmatpush2.bf16.msra.mxu0 %v2266
    %2301 = vmatprep.subr.bf16.mxu0 0
    %2302 = vmatpush2.bf16.msra.mxu0 %v2265
    %2303 = vmatprep.subr.bf16.mxu0 0
    %2304 = vmatpush2.bf16.msra.mxu0 %v2264
    %2305 = vmatprep.subr.bf16.mxu0 0
    %2306 = vmatpush2.bf16.msra.mxu0 %v2263
    %2307 = vmatprep.subr.bf16.mxu0 0
    %2308 = vmatpush2.bf16.msra.mxu0 %v2262
    %2309 = vmatprep.subr.bf16.mxu0 0
    %2310 = vmatpush2.bf16.msra.mxu0 %v2261
    %2311 = vmatprep.subr.bf16.mxu0 0
    %2312 = vmatpush2.bf16.msra.mxu0 %v2260
    %2313 = vmatprep.subr.bf16.mxu0 0
    %2314 = vmatpush2.bf16.msra.mxu0 %v2259
    %2315 = vmatprep.mubr.bf16.mxu0 %v2150
    %2316 = vmatmul.mubr.bf16.gmra.mxu0 %v2149
    %v2317 = vpop.f32.mrf.mxu0
    %v2318 = vadd.f32 %v2186, %v2317
    %v2319 = vpop.f32.mrf.mxu0
    %v2320 = vpop.f32.mrf.mxu0
    %v2321 = vadd.f32 %v2186, %v2320
    %v2322 = vpop.f32.mrf.mxu0
    %2323 = vdwg.mxu0
    %v2324 = vadd.f32 %v1925, %v2318
    %v2325 = vadd.f32 %v1926, %v2321
    %s2326 = scalar_lea.vmem %s9, 8
    %v2327 = vld [vmem:[%s2326] sm:$0x3f]
    %2328 = vadd.xlane.f32.xlu0 %v2324
    %v2329 = vpop.xlane.xlu0 %2328
    %2330 = vadd.xlane.f32.xlu0 %v2325
    %v2331 = vpop.xlane.xlu0 %2330
    %v2332 = vmul.f32 %v2329, %v589
    %v2333 = vmul.f32 %v2331, %v589
    %v2334 = vsub.f32 %v2324, %v2332
    %v2335 = vsub.f32 %v2325, %v2333
    %v2336 = vmul.f32 %v2334, %v2334
    %v2337 = vmul.f32 %v2335, %v2335
    %2338 = vadd.xlane.f32.xlu0 %v2336
    %v2339 = vpop.xlane.xlu0 %2338
    %2340 = vadd.xlane.f32.xlu0 %v2337
    %v2341 = vpop.xlane.xlu0 %2340
    %v2342 = vmul.f32 %v2339, %v589
    %v2343 = vmul.f32 %v2341, %v589
    %v2344 = vadd.f32 %v2342, 1e-06
    %v2345 = vadd.f32 %v2343, 1e-06
    %v2346 = vrsqrt.pop %v2344
    %v2347 = vrsqrt.pop %v2345
    %v2348 = vmul.f32 %v2334, %v2346
    %v2349 = vmul.f32 %v2335, %v2347
    %v2350 = vlaneseq
    %v2351 = vshrl.u32 %v2350, 7
    %v2352 = vsub.s32 0, %v2351
    %v2353 = vrot.slane %v2327, %v2352
    %v2354 = vmul.f32 %v2348, %v2353
    %v2355 = vmul.f32 %v2349, %v2353
    %v2356 = vlaneseq
    %v2357 = vshrl.u32 %v2356, 7
    %v2358 = vsub.s32 1, %v2357
    %v2359 = vrot.slane %v2327, %v2358
    %v2360 = vadd.f32 %v2354, %v2359
    %v2361 = vadd.f32 %v2355, %v2359
    %v2362 = vpack.c.bf16 %v2361, %v2360
    %s2363 = scalar_lea.vmem %s3, 192
    %v2364 = vld [vmem:[%s2363] sm:$0xff]
    %v2365 = vld [vmem:[%s2363 + $0x8] sm:$0xf]
    %v2366 = vld [vmem:[%s2363 + $0xc] sm:$0xff]
    %v2367 = vld [vmem:[%s2363 + $0x14] sm:$0xf]
    %v2368 = vld [vmem:[%s2363 + $0x18] sm:$0xff]
    %v2369 = vld [vmem:[%s2363 + $0x20] sm:$0xf]
    %v2370 = vld [vmem:[%s2363 + $0x24] sm:$0xff]
    %v2371 = vld [vmem:[%s2363 + $0x2c] sm:$0xf]
    %v2372 = vld [vmem:[%s2363 + $0x30] sm:$0xff]
    %v2373 = vld [vmem:[%s2363 + $0x38] sm:$0xf]
    %v2374 = vld [vmem:[%s2363 + $0x3c] sm:$0xff]
    %v2375 = vld [vmem:[%s2363 + $0x44] sm:$0xf]
    %v2376 = vld [vmem:[%s2363 + $0x48] sm:$0xff]
    %v2377 = vld [vmem:[%s2363 + $0x50] sm:$0xf]
    %v2378 = vld [vmem:[%s2363 + $0x54] sm:$0xff]
    %v2379 = vld [vmem:[%s2363 + $0x5c] sm:$0xf]
    %v2380 = vld [vmem:[%s2363 + $0x60] sm:$0xff]
    %v2381 = vld [vmem:[%s2363 + $0x68] sm:$0xf]
    %v2382 = vld [vmem:[%s2363 + $0x6c] sm:$0xff]
    %v2383 = vld [vmem:[%s2363 + $0x74] sm:$0xf]
    %v2384 = vld [vmem:[%s2363 + $0x78] sm:$0xff]
    %v2385 = vld [vmem:[%s2363 + $0x80] sm:$0xf]
    %v2386 = vld [vmem:[%s2363 + $0x84] sm:$0xff]
    %v2387 = vld [vmem:[%s2363 + $0x8c] sm:$0xf]
    %v2388 = vld [vmem:[%s2363 + $0x90] sm:$0xff]
    %v2389 = vld [vmem:[%s2363 + $0x98] sm:$0xf]
    %v2390 = vld [vmem:[%s2363 + $0x9c] sm:$0xff]
    %v2391 = vld [vmem:[%s2363 + $0xa4] sm:$0xf]
    %v2392 = vld [vmem:[%s2363 + $0xa8] sm:$0xff]
    %v2393 = vld [vmem:[%s2363 + $0xb0] sm:$0xf]
    %v2394 = vld [vmem:[%s2363 + $0xb4] sm:$0xff]
    %v2395 = vld [vmem:[%s2363 + $0xbc] sm:$0xf]
    %s2396 = scalar_lea.vmem %s4, 3
    %v2397 = vld [vmem:[%s2396] sm:$0x7]
    %v2399 = vlaneseq
    %v2400 = vshrl.u32 %v2399, 7
    %v2401 = vsub.s32 0, %v2400
    %v2402 = vrot.slane %v2397, %v2401
    %v2403 = vlaneseq
    %v2404 = vshrl.u32 %v2403, 7
    %v2405 = vsub.s32 1, %v2404
    %v2406 = vrot.slane %v2397, %v2405
    %v2407 = vlaneseq
    %v2408 = vshrl.u32 %v2407, 7
    %v2409 = vsub.s32 2, %v2408
    %v2410 = vrot.slane %v2397, %v2409
    %v2446 = vunpack.c.l.b16 %v2364
    %v2447 = vunpack.c.h.b16 %v2364
    %v2448 = vunpack.c.l.b16 %v2365
    %v2449 = vunpack.c.l.b16 %v2366
    %v2450 = vunpack.c.h.b16 %v2366
    %v2451 = vunpack.c.l.b16 %v2367
    %v2452 = vunpack.c.l.b16 %v2368
    %v2453 = vunpack.c.h.b16 %v2368
    %v2454 = vunpack.c.l.b16 %v2369
    %v2455 = vunpack.c.l.b16 %v2370
    %v2456 = vunpack.c.h.b16 %v2370
    %v2457 = vunpack.c.l.b16 %v2371
    %v2458 = vunpack.c.l.b16 %v2372
    %v2459 = vunpack.c.h.b16 %v2372
    %v2460 = vunpack.c.l.b16 %v2373
    %v2461 = vunpack.c.l.b16 %v2374
    %v2462 = vunpack.c.h.b16 %v2374
    %v2463 = vunpack.c.l.b16 %v2375
    %v2464 = vunpack.c.l.b16 %v2376
    %v2465 = vunpack.c.h.b16 %v2376
    %v2466 = vunpack.c.l.b16 %v2377
    %v2467 = vunpack.c.l.b16 %v2378
    %v2468 = vunpack.c.h.b16 %v2378
    %v2469 = vunpack.c.l.b16 %v2379
    %v2470 = vunpack.c.l.b16 %v2380
    %v2471 = vunpack.c.h.b16 %v2380
    %v2472 = vunpack.c.l.b16 %v2381
    %v2473 = vunpack.c.l.b16 %v2382
    %v2474 = vunpack.c.h.b16 %v2382
    %v2475 = vunpack.c.l.b16 %v2383
    %v2476 = vunpack.c.l.b16 %v2384
    %v2477 = vunpack.c.h.b16 %v2384
    %v2478 = vunpack.c.l.b16 %v2385
    %v2479 = vunpack.c.l.b16 %v2386
    %v2480 = vunpack.c.h.b16 %v2386
    %v2481 = vunpack.c.l.b16 %v2387
    %v2482 = vunpack.c.l.b16 %v2388
    %v2483 = vunpack.c.h.b16 %v2388
    %v2484 = vunpack.c.l.b16 %v2389
    %v2485 = vunpack.c.l.b16 %v2390
    %v2486 = vunpack.c.h.b16 %v2390
    %v2487 = vunpack.c.l.b16 %v2391
    %v2488 = vunpack.c.l.b16 %v2392
    %v2489 = vunpack.c.h.b16 %v2392
    %v2490 = vunpack.c.l.b16 %v2393
    %v2491 = vunpack.c.l.b16 %v2394
    %v2492 = vunpack.c.h.b16 %v2394
    %v2493 = vunpack.c.l.b16 %v2395
    %v2494 = vpack.c.b16 %v2449, %v2446
    %v2495 = vpack.c.b16 %v2450, %v2447
    %v2496 = vpack.c.b16 %v2451, %v2448
    %v2497 = vpack.c.b16 %v2455, %v2452
    %v2498 = vpack.c.b16 %v2456, %v2453
    %v2499 = vpack.c.b16 %v2457, %v2454
    %v2500 = vpack.c.b16 %v2461, %v2458
    %v2501 = vpack.c.b16 %v2462, %v2459
    %v2502 = vpack.c.b16 %v2463, %v2460
    %v2503 = vpack.c.b16 %v2467, %v2464
    %v2504 = vpack.c.b16 %v2468, %v2465
    %v2505 = vpack.c.b16 %v2469, %v2466
    %v2506 = vpack.c.b16 %v2473, %v2470
    %v2507 = vpack.c.b16 %v2474, %v2471
    %v2508 = vpack.c.b16 %v2475, %v2472
    %v2509 = vpack.c.b16 %v2479, %v2476
    %v2510 = vpack.c.b16 %v2480, %v2477
    %v2511 = vpack.c.b16 %v2481, %v2478
    %v2512 = vpack.c.b16 %v2485, %v2482
    %v2513 = vpack.c.b16 %v2486, %v2483
    %v2514 = vpack.c.b16 %v2487, %v2484
    %v2515 = vpack.c.b16 %v2491, %v2488
    %v2516 = vpack.c.b16 %v2492, %v2489
    %v2517 = vpack.c.b16 %v2493, %v2490
    %2542 = vmatprep.subr.bf16.mxu0 %v2516
    %2543 = vmatpush1.bf16.msra.mxu0 %v2515
    %2544 = vmatprep.subr.bf16.mxu0 %v2513
    %2545 = vmatpush1.bf16.msra.mxu0 %v2512
    %2546 = vmatprep.subr.bf16.mxu0 %v2510
    %2547 = vmatpush1.bf16.msra.mxu0 %v2509
    %2548 = vmatprep.subr.bf16.mxu0 %v2507
    %2549 = vmatpush1.bf16.msra.mxu0 %v2506
    %2550 = vmatprep.subr.bf16.mxu0 %v2504
    %2551 = vmatpush1.bf16.msra.mxu0 %v2503
    %2552 = vmatprep.subr.bf16.mxu0 %v2501
    %2553 = vmatpush1.bf16.msra.mxu0 %v2500
    %2554 = vmatprep.subr.bf16.mxu0 %v2498
    %2555 = vmatpush1.bf16.msra.mxu0 %v2497
    %2556 = vmatprep.subr.bf16.mxu0 %v2495
    %2557 = vmatpush1.bf16.msra.mxu0 %v2494
    %2558 = vmatprep.subr.bf16.mxu0 0
    %2559 = vmatpush2.bf16.msra.mxu0 0
    %2560 = vmatprep.subr.bf16.mxu0 0
    %2561 = vmatpush2.bf16.msra.mxu0 0
    %2562 = vmatprep.subr.bf16.mxu0 0
    %2563 = vmatpush2.bf16.msra.mxu0 0
    %2564 = vmatprep.subr.bf16.mxu0 0
    %2565 = vmatpush2.bf16.msra.mxu0 0
    %2566 = vmatprep.subr.bf16.mxu0 0
    %2567 = vmatpush2.bf16.msra.mxu0 0
    %2568 = vmatprep.subr.bf16.mxu0 0
    %2569 = vmatpush2.bf16.msra.mxu0 0
    %2570 = vmatprep.subr.bf16.mxu0 0
    %2571 = vmatpush2.bf16.msra.mxu0 0
    %2572 = vmatprep.subr.bf16.mxu0 0
    %2573 = vmatpush2.bf16.msra.mxu0 0
    %2574 = vmatprep.mubr.bf16.mxu0 0
    %2575 = vmatmul.mubr.bf16.gmra.mxu0 %v2362
    %v2576 = vpop.f32.mrf.mxu0
    %v2577 = vadd.f32 %v2402, %v2576
    %v2578 = vpop.f32.mrf.mxu0
    %v2579 = vadd.f32 %v2406, %v2578
    %v2580 = vpop.f32.mrf.mxu0
    %v2581 = vadd.f32 %v2402, %v2580
    %v2582 = vpop.f32.mrf.mxu0
    %v2583 = vadd.f32 %v2406, %v2582
    %2584 = vdwg.mxu0
    %2585 = vmatprep.subr.bf16.mxu0 0
    %2586 = vmatpush1.bf16.msra.mxu0 %v2517
    %2587 = vmatprep.subr.bf16.mxu0 0
    %2588 = vmatpush1.bf16.msra.mxu0 %v2514
    %2589 = vmatprep.subr.bf16.mxu0 0
    %2590 = vmatpush1.bf16.msra.mxu0 %v2511
    %2591 = vmatprep.subr.bf16.mxu0 0
    %2592 = vmatpush1.bf16.msra.mxu0 %v2508
    %2593 = vmatprep.subr.bf16.mxu0 0
    %2594 = vmatpush1.bf16.msra.mxu0 %v2505
    %2595 = vmatprep.subr.bf16.mxu0 0
    %2596 = vmatpush1.bf16.msra.mxu0 %v2502
    %2597 = vmatprep.subr.bf16.mxu0 0
    %2598 = vmatpush1.bf16.msra.mxu0 %v2499
    %2599 = vmatprep.subr.bf16.mxu0 0
    %2600 = vmatpush1.bf16.msra.mxu0 %v2496
    %2601 = vmatprep.subr.bf16.mxu0 0
    %2602 = vmatpush2.bf16.msra.mxu0 0
    %2603 = vmatprep.subr.bf16.mxu0 0
    %2604 = vmatpush2.bf16.msra.mxu0 0
    %2605 = vmatprep.subr.bf16.mxu0 0
    %2606 = vmatpush2.bf16.msra.mxu0 0
    %2607 = vmatprep.subr.bf16.mxu0 0
    %2608 = vmatpush2.bf16.msra.mxu0 0
    %2609 = vmatprep.subr.bf16.mxu0 0
    %2610 = vmatpush2.bf16.msra.mxu0 0
    %2611 = vmatprep.subr.bf16.mxu0 0
    %2612 = vmatpush2.bf16.msra.mxu0 0
    %2613 = vmatprep.subr.bf16.mxu0 0
    %2614 = vmatpush2.bf16.msra.mxu0 0
    %2615 = vmatprep.subr.bf16.mxu0 0
    %2616 = vmatpush2.bf16.msra.mxu0 0
    %2617 = vmatprep.mubr.bf16.mxu0 0
    %2618 = vmatmul.mubr.bf16.gmra.mxu0 %v2362
    %v2619 = vpop.f32.mrf.mxu0
    %v2620 = vadd.f32 %v2410, %v2619
    %v2621 = vpop.f32.mrf.mxu0
    %v2622 = vpop.f32.mrf.mxu0
    %v2623 = vadd.f32 %v2410, %v2622
    %v2624 = vpop.f32.mrf.mxu0
    %2625 = vdwg.mxu0
    %v2626 = vpack.c.bf16 %v2577, %v2577
    %v2627 = vpack.c.bf16 %v2581, %v2581
    %v2628 = vpack.c.bf16 %v2579, %v2579
    %v2629 = vpack.c.bf16 %v2583, %v2583
    %v2630 = vpack.c.bf16 %v2620, %v2620
    %v2631 = vpack.c.bf16 %v2623, %v2623
    %v2633 = vsel %vm888, %v2626, 0
    %v2636 = vsel %vm888, %v2628, 0
    %2638 = vmatprep.subr.bf16.mxu0 0
    %2639 = vmatpush1.bf16.xpose.msra.mxu0 0
    %2640 = vmatprep.subr.bf16.mxu0 0
    %2641 = vmatpush1.bf16.xpose.msra.mxu0 0
    %2642 = vmatprep.subr.bf16.mxu0 0
    %2643 = vmatpush1.bf16.xpose.msra.mxu0 0
    %2644 = vmatprep.subr.bf16.mxu0 0
    %2645 = vmatpush1.bf16.xpose.msra.mxu0 0
    %2646 = vmatprep.subr.bf16.mxu0 0
    %2647 = vmatpush1.bf16.xpose.msra.mxu0 0
    %2648 = vmatprep.subr.bf16.mxu0 0
    %2649 = vmatpush1.bf16.xpose.msra.mxu0 0
    %2650 = vmatprep.subr.bf16.mxu0 0
    %2651 = vmatpush1.bf16.xpose.msra.mxu0 0
    %2652 = vmatprep.subr.bf16.mxu0 0
    %2653 = vmatpush1.bf16.xpose.msra.mxu0 %v2636
    %2654 = vmatprep.subr.bf16.mxu0 0
    %2655 = vmatpush2.bf16.xpose.msra.mxu0 0
    %2656 = vmatprep.subr.bf16.mxu0 0
    %2657 = vmatpush2.bf16.xpose.msra.mxu0 0
    %2658 = vmatprep.subr.bf16.mxu0 0
    %2659 = vmatpush2.bf16.xpose.msra.mxu0 0
    %2660 = vmatprep.subr.bf16.mxu0 0
    %2661 = vmatpush2.bf16.xpose.msra.mxu0 0
    %2662 = vmatprep.subr.bf16.mxu0 0
    %2663 = vmatpush2.bf16.xpose.msra.mxu0 0
    %2664 = vmatprep.subr.bf16.mxu0 0
    %2665 = vmatpush2.bf16.xpose.msra.mxu0 0
    %2666 = vmatprep.subr.bf16.mxu0 0
    %2667 = vmatpush2.bf16.xpose.msra.mxu0 0
    %2668 = vmatprep.subr.bf16.mxu0 0
    %2669 = vmatpush2.bf16.xpose.msra.mxu0 0
    %2670 = vmatprep.mubr.bf16.mxu0 0
    %2671 = vmatmul.mubr.bf16.gmra.mxu0 %v2633
    %v2672 = vpop.f32.mrf.mxu0
    %v2673 = vadd.f32 0.0, %v2672
    %v2674 = vpop.f32.mrf.mxu0
    %v2675 = vpop.f32.mrf.mxu0
    %v2676 = vpop.f32.mrf.mxu0
    %2677 = vdwg.mxu0
    %v2679 = vsel %vm888, %v2627, 0
    %v2682 = vsel %vm888, %v2629, 0
    %2684 = vmatprep.subr.bf16.mxu0 0
    %2685 = vmatpush1.bf16.xpose.msra.mxu0 0
    %2686 = vmatprep.subr.bf16.mxu0 0
    %2687 = vmatpush1.bf16.xpose.msra.mxu0 0
    %2688 = vmatprep.subr.bf16.mxu0 0
    %2689 = vmatpush1.bf16.xpose.msra.mxu0 0
    %2690 = vmatprep.subr.bf16.mxu0 0
    %2691 = vmatpush1.bf16.xpose.msra.mxu0 0
    %2692 = vmatprep.subr.bf16.mxu0 0
    %2693 = vmatpush1.bf16.xpose.msra.mxu0 0
    %2694 = vmatprep.subr.bf16.mxu0 0
    %2695 = vmatpush1.bf16.xpose.msra.mxu0 0
    %2696 = vmatprep.subr.bf16.mxu0 0
    %2697 = vmatpush1.bf16.xpose.msra.mxu0 0
    %2698 = vmatprep.subr.bf16.mxu0 0
    %2699 = vmatpush1.bf16.xpose.msra.mxu0 %v2682
    %2700 = vmatprep.subr.bf16.mxu0 0
    %2701 = vmatpush2.bf16.xpose.msra.mxu0 0
    %2702 = vmatprep.subr.bf16.mxu0 0
    %2703 = vmatpush2.bf16.xpose.msra.mxu0 0
    %2704 = vmatprep.subr.bf16.mxu0 0
    %2705 = vmatpush2.bf16.xpose.msra.mxu0 0
    %2706 = vmatprep.subr.bf16.mxu0 0
    %2707 = vmatpush2.bf16.xpose.msra.mxu0 0
    %2708 = vmatprep.subr.bf16.mxu0 0
    %2709 = vmatpush2.bf16.xpose.msra.mxu0 0
    %2710 = vmatprep.subr.bf16.mxu0 0
    %2711 = vmatpush2.bf16.xpose.msra.mxu0 0
    %2712 = vmatprep.subr.bf16.mxu0 0
    %2713 = vmatpush2.bf16.xpose.msra.mxu0 0
    %2714 = vmatprep.subr.bf16.mxu0 0
    %2715 = vmatpush2.bf16.xpose.msra.mxu0 0
    %2716 = vmatprep.mubr.bf16.mxu0 0
    %2717 = vmatmul.mubr.bf16.gmra.mxu0 %v2679
    %v2718 = vpop.f32.mrf.mxu0
    %v2719 = vadd.f32 0.0, %v2718
    %v2720 = vpop.f32.mrf.mxu0
    %v2721 = vpop.f32.mrf.mxu0
    %v2722 = vpop.f32.mrf.mxu0
    %2723 = vdwg.mxu0
    %v2724 = vmul.f32 %v2673, 0.17677669
    %v2725 = vmul.f32 %v2719, 0.17677669
    %v2726 = vadd.f32 %v2724, %v583
    %v2727 = vadd.f32 %v2725, %v583
    %v2728 = vsel %vm985, %v2726, -inf
    %2729 = vmax.xlane.f32.xlu0 %v2728
    %v2730 = vpop.xlane.xlu0 %2729
    %v2731 = vsel %vm985, %v2727, -inf
    %2732 = vmax.xlane.f32.xlu0 %v2731
    %v2733 = vpop.xlane.xlu0 %2732
    %v2734 = vsub.f32 %v2726, %v2730
    %v2735 = vsub.f32 %v2727, %v2733
    %v2736 = vmul.f32 %v2734, 1.442695
    %v2737 = vpow.pop %v2736
    %v2738 = vmul.f32 %v2735, 1.442695
    %v2739 = vpow.pop %v2738
    %v2740 = vsel %vm985, %v2737, 0.0
    %2741 = vadd.xlane.f32.xlu0 %v2740
    %v2742 = vpop.xlane.xlu0 %2741
    %v2743 = vsel %vm985, %v2739, 0.0
    %2744 = vadd.xlane.f32.xlu0 %v2743
    %v2745 = vpop.xlane.xlu0 %2744
    %v2746 = vrcp.pop %v2742
    %v2747 = vrcp.pop %v2745
    %v2748 = vmul.f32 %v2737, %v2746
    %v2749 = vmul.f32 %v2739, %v2747
    %v2750 = vpack.c.bf16 %v2748, %v2748
    %v2751 = vpack.c.bf16 %v2749, %v2749
    %v2753 = vsel %vm985, %v2750, 0
    %v2756 = vsel %vm1013, %v2630, 0
    %2758 = vmatprep.subr.bf16.mxu0 0
    %2759 = vmatpush1.bf16.msra.mxu0 0
    %2760 = vmatprep.subr.bf16.mxu0 0
    %2761 = vmatpush1.bf16.msra.mxu0 0
    %2762 = vmatprep.subr.bf16.mxu0 0
    %2763 = vmatpush1.bf16.msra.mxu0 0
    %2764 = vmatprep.subr.bf16.mxu0 0
    %2765 = vmatpush1.bf16.msra.mxu0 0
    %2766 = vmatprep.subr.bf16.mxu0 0
    %2767 = vmatpush1.bf16.msra.mxu0 0
    %2768 = vmatprep.subr.bf16.mxu0 0
    %2769 = vmatpush1.bf16.msra.mxu0 0
    %2770 = vmatprep.subr.bf16.mxu0 0
    %2771 = vmatpush1.bf16.msra.mxu0 0
    %2772 = vmatprep.subr.bf16.mxu0 0
    %2773 = vmatpush1.bf16.msra.mxu0 %v2756
    %2774 = vmatprep.subr.bf16.mxu0 0
    %2775 = vmatpush2.bf16.msra.mxu0 0
    %2776 = vmatprep.subr.bf16.mxu0 0
    %2777 = vmatpush2.bf16.msra.mxu0 0
    %2778 = vmatprep.subr.bf16.mxu0 0
    %2779 = vmatpush2.bf16.msra.mxu0 0
    %2780 = vmatprep.subr.bf16.mxu0 0
    %2781 = vmatpush2.bf16.msra.mxu0 0
    %2782 = vmatprep.subr.bf16.mxu0 0
    %2783 = vmatpush2.bf16.msra.mxu0 0
    %2784 = vmatprep.subr.bf16.mxu0 0
    %2785 = vmatpush2.bf16.msra.mxu0 0
    %2786 = vmatprep.subr.bf16.mxu0 0
    %2787 = vmatpush2.bf16.msra.mxu0 0
    %2788 = vmatprep.subr.bf16.mxu0 0
    %2789 = vmatpush2.bf16.msra.mxu0 0
    %2790 = vmatprep.mubr.bf16.mxu0 0
    %2791 = vmatmul.mubr.bf16.gmra.mxu0 %v2753
    %v2792 = vpop.f32.mrf.mxu0
    %v2793 = vadd.f32 0.0, %v2792
    %v2794 = vpop.f32.mrf.mxu0
    %v2795 = vpop.f32.mrf.mxu0
    %v2796 = vpop.f32.mrf.mxu0
    %2797 = vdwg.mxu0
    %v2799 = vsel %vm985, %v2751, 0
    %v2802 = vsel %vm1013, %v2631, 0
    %2804 = vmatprep.subr.bf16.mxu0 0
    %2805 = vmatpush1.bf16.msra.mxu0 0
    %2806 = vmatprep.subr.bf16.mxu0 0
    %2807 = vmatpush1.bf16.msra.mxu0 0
    %2808 = vmatprep.subr.bf16.mxu0 0
    %2809 = vmatpush1.bf16.msra.mxu0 0
    %2810 = vmatprep.subr.bf16.mxu0 0
    %2811 = vmatpush1.bf16.msra.mxu0 0
    %2812 = vmatprep.subr.bf16.mxu0 0
    %2813 = vmatpush1.bf16.msra.mxu0 0
    %2814 = vmatprep.subr.bf16.mxu0 0
    %2815 = vmatpush1.bf16.msra.mxu0 0
    %2816 = vmatprep.subr.bf16.mxu0 0
    %2817 = vmatpush1.bf16.msra.mxu0 0
    %2818 = vmatprep.subr.bf16.mxu0 0
    %2819 = vmatpush1.bf16.msra.mxu0 %v2802
    %2820 = vmatprep.subr.bf16.mxu0 0
    %2821 = vmatpush2.bf16.msra.mxu0 0
    %2822 = vmatprep.subr.bf16.mxu0 0
    %2823 = vmatpush2.bf16.msra.mxu0 0
    %2824 = vmatprep.subr.bf16.mxu0 0
    %2825 = vmatpush2.bf16.msra.mxu0 0
    %2826 = vmatprep.subr.bf16.mxu0 0
    %2827 = vmatpush2.bf16.msra.mxu0 0
    %2828 = vmatprep.subr.bf16.mxu0 0
    %2829 = vmatpush2.bf16.msra.mxu0 0
    %2830 = vmatprep.subr.bf16.mxu0 0
    %2831 = vmatpush2.bf16.msra.mxu0 0
    %2832 = vmatprep.subr.bf16.mxu0 0
    %2833 = vmatpush2.bf16.msra.mxu0 0
    %2834 = vmatprep.subr.bf16.mxu0 0
    %2835 = vmatpush2.bf16.msra.mxu0 0
    %2836 = vmatprep.mubr.bf16.mxu0 0
    %2837 = vmatmul.mubr.bf16.gmra.mxu0 %v2799
    %v2838 = vpop.f32.mrf.mxu0
    %v2839 = vadd.f32 0.0, %v2838
    %v2840 = vpop.f32.mrf.mxu0
    %v2841 = vpop.f32.mrf.mxu0
    %v2842 = vpop.f32.mrf.mxu0
    %2843 = vdwg.mxu0
    %2845 = vrot.lane.b32.xlu0 %v2626, 96
    %v2846 = vpop.permute.xlu0 %2845
    %2848 = vrot.lane.b32.xlu0 %v2628, 96
    %v2849 = vpop.permute.xlu0 %2848
    %v2851 = vsel %vm888, %v2846, 0
    %v2854 = vsel %vm888, %v2849, 0
    %2856 = vmatprep.subr.bf16.mxu0 0
    %2857 = vmatpush1.bf16.xpose.msra.mxu0 0
    %2858 = vmatprep.subr.bf16.mxu0 0
    %2859 = vmatpush1.bf16.xpose.msra.mxu0 0
    %2860 = vmatprep.subr.bf16.mxu0 0
    %2861 = vmatpush1.bf16.xpose.msra.mxu0 0
    %2862 = vmatprep.subr.bf16.mxu0 0
    %2863 = vmatpush1.bf16.xpose.msra.mxu0 0
    %2864 = vmatprep.subr.bf16.mxu0 0
    %2865 = vmatpush1.bf16.xpose.msra.mxu0 0
    %2866 = vmatprep.subr.bf16.mxu0 0
    %2867 = vmatpush1.bf16.xpose.msra.mxu0 0
    %2868 = vmatprep.subr.bf16.mxu0 0
    %2869 = vmatpush1.bf16.xpose.msra.mxu0 0
    %2870 = vmatprep.subr.bf16.mxu0 0
    %2871 = vmatpush1.bf16.xpose.msra.mxu0 %v2854
    %2872 = vmatprep.subr.bf16.mxu0 0
    %2873 = vmatpush2.bf16.xpose.msra.mxu0 0
    %2874 = vmatprep.subr.bf16.mxu0 0
    %2875 = vmatpush2.bf16.xpose.msra.mxu0 0
    %2876 = vmatprep.subr.bf16.mxu0 0
    %2877 = vmatpush2.bf16.xpose.msra.mxu0 0
    %2878 = vmatprep.subr.bf16.mxu0 0
    %2879 = vmatpush2.bf16.xpose.msra.mxu0 0
    %2880 = vmatprep.subr.bf16.mxu0 0
    %2881 = vmatpush2.bf16.xpose.msra.mxu0 0
    %2882 = vmatprep.subr.bf16.mxu0 0
    %2883 = vmatpush2.bf16.xpose.msra.mxu0 0
    %2884 = vmatprep.subr.bf16.mxu0 0
    %2885 = vmatpush2.bf16.xpose.msra.mxu0 0
    %2886 = vmatprep.subr.bf16.mxu0 0
    %2887 = vmatpush2.bf16.xpose.msra.mxu0 0
    %2888 = vmatprep.mubr.bf16.mxu0 0
    %2889 = vmatmul.mubr.bf16.gmra.mxu0 %v2851
    %v2890 = vpop.f32.mrf.mxu0
    %v2891 = vadd.f32 0.0, %v2890
    %v2892 = vpop.f32.mrf.mxu0
    %v2893 = vpop.f32.mrf.mxu0
    %v2894 = vpop.f32.mrf.mxu0
    %2895 = vdwg.mxu0
    %2897 = vrot.lane.b32.xlu0 %v2627, 96
    %v2898 = vpop.permute.xlu0 %2897
    %2900 = vrot.lane.b32.xlu0 %v2629, 96
    %v2901 = vpop.permute.xlu0 %2900
    %v2903 = vsel %vm888, %v2898, 0
    %v2906 = vsel %vm888, %v2901, 0
    %2908 = vmatprep.subr.bf16.mxu0 0
    %2909 = vmatpush1.bf16.xpose.msra.mxu0 0
    %2910 = vmatprep.subr.bf16.mxu0 0
    %2911 = vmatpush1.bf16.xpose.msra.mxu0 0
    %2912 = vmatprep.subr.bf16.mxu0 0
    %2913 = vmatpush1.bf16.xpose.msra.mxu0 0
    %2914 = vmatprep.subr.bf16.mxu0 0
    %2915 = vmatpush1.bf16.xpose.msra.mxu0 0
    %2916 = vmatprep.subr.bf16.mxu0 0
    %2917 = vmatpush1.bf16.xpose.msra.mxu0 0
    %2918 = vmatprep.subr.bf16.mxu0 0
    %2919 = vmatpush1.bf16.xpose.msra.mxu0 0
    %2920 = vmatprep.subr.bf16.mxu0 0
    %2921 = vmatpush1.bf16.xpose.msra.mxu0 0
    %2922 = vmatprep.subr.bf16.mxu0 0
    %2923 = vmatpush1.bf16.xpose.msra.mxu0 %v2906
    %2924 = vmatprep.subr.bf16.mxu0 0
    %2925 = vmatpush2.bf16.xpose.msra.mxu0 0
    %2926 = vmatprep.subr.bf16.mxu0 0
    %2927 = vmatpush2.bf16.xpose.msra.mxu0 0
    %2928 = vmatprep.subr.bf16.mxu0 0
    %2929 = vmatpush2.bf16.xpose.msra.mxu0 0
    %2930 = vmatprep.subr.bf16.mxu0 0
    %2931 = vmatpush2.bf16.xpose.msra.mxu0 0
    %2932 = vmatprep.subr.bf16.mxu0 0
    %2933 = vmatpush2.bf16.xpose.msra.mxu0 0
    %2934 = vmatprep.subr.bf16.mxu0 0
    %2935 = vmatpush2.bf16.xpose.msra.mxu0 0
    %2936 = vmatprep.subr.bf16.mxu0 0
    %2937 = vmatpush2.bf16.xpose.msra.mxu0 0
    %2938 = vmatprep.subr.bf16.mxu0 0
    %2939 = vmatpush2.bf16.xpose.msra.mxu0 0
    %2940 = vmatprep.mubr.bf16.mxu0 0
    %2941 = vmatmul.mubr.bf16.gmra.mxu0 %v2903
    %v2942 = vpop.f32.mrf.mxu0
    %v2943 = vadd.f32 0.0, %v2942
    %v2944 = vpop.f32.mrf.mxu0
    %v2945 = vpop.f32.mrf.mxu0
    %v2946 = vpop.f32.mrf.mxu0
    %2947 = vdwg.mxu0
    %v2948 = vmul.f32 %v2891, 0.17677669
    %v2949 = vmul.f32 %v2943, 0.17677669
    %v2950 = vadd.f32 %v2948, %v583
    %v2951 = vadd.f32 %v2949, %v583
    %v2952 = vsel %vm985, %v2950, -inf
    %2953 = vmax.xlane.f32.xlu0 %v2952
    %v2954 = vpop.xlane.xlu0 %2953
    %v2955 = vsel %vm985, %v2951, -inf
    %2956 = vmax.xlane.f32.xlu0 %v2955
    %v2957 = vpop.xlane.xlu0 %2956
    %v2958 = vsub.f32 %v2950, %v2954
    %v2959 = vsub.f32 %v2951, %v2957
    %v2960 = vmul.f32 %v2958, 1.442695
    %v2961 = vpow.pop %v2960
    %v2962 = vmul.f32 %v2959, 1.442695
    %v2963 = vpow.pop %v2962
    %v2964 = vsel %vm985, %v2961, 0.0
    %2965 = vadd.xlane.f32.xlu0 %v2964
    %v2966 = vpop.xlane.xlu0 %2965
    %v2967 = vsel %vm985, %v2963, 0.0
    %2968 = vadd.xlane.f32.xlu0 %v2967
    %v2969 = vpop.xlane.xlu0 %2968
    %v2970 = vrcp.pop %v2966
    %v2971 = vrcp.pop %v2969
    %v2972 = vmul.f32 %v2961, %v2970
    %v2973 = vmul.f32 %v2963, %v2971
    %v2974 = vpack.c.bf16 %v2972, %v2972
    %v2975 = vpack.c.bf16 %v2973, %v2973
    %2977 = vrot.lane.b32.xlu0 %v2630, 96
    %v2978 = vpop.permute.xlu0 %2977
    %v2980 = vsel %vm985, %v2974, 0
    %v2983 = vsel %vm1013, %v2978, 0
    %2985 = vmatprep.subr.bf16.mxu0 0
    %2986 = vmatpush1.bf16.msra.mxu0 0
    %2987 = vmatprep.subr.bf16.mxu0 0
    %2988 = vmatpush1.bf16.msra.mxu0 0
    %2989 = vmatprep.subr.bf16.mxu0 0
    %2990 = vmatpush1.bf16.msra.mxu0 0
    %2991 = vmatprep.subr.bf16.mxu0 0
    %2992 = vmatpush1.bf16.msra.mxu0 0
    %2993 = vmatprep.subr.bf16.mxu0 0
    %2994 = vmatpush1.bf16.msra.mxu0 0
    %2995 = vmatprep.subr.bf16.mxu0 0
    %2996 = vmatpush1.bf16.msra.mxu0 0
    %2997 = vmatprep.subr.bf16.mxu0 0
    %2998 = vmatpush1.bf16.msra.mxu0 0
    %2999 = vmatprep.subr.bf16.mxu0 0
    %3000 = vmatpush1.bf16.msra.mxu0 %v2983
    %3001 = vmatprep.subr.bf16.mxu0 0
    %3002 = vmatpush2.bf16.msra.mxu0 0
    %3003 = vmatprep.subr.bf16.mxu0 0
    %3004 = vmatpush2.bf16.msra.mxu0 0
    %3005 = vmatprep.subr.bf16.mxu0 0
    %3006 = vmatpush2.bf16.msra.mxu0 0
    %3007 = vmatprep.subr.bf16.mxu0 0
    %3008 = vmatpush2.bf16.msra.mxu0 0
    %3009 = vmatprep.subr.bf16.mxu0 0
    %3010 = vmatpush2.bf16.msra.mxu0 0
    %3011 = vmatprep.subr.bf16.mxu0 0
    %3012 = vmatpush2.bf16.msra.mxu0 0
    %3013 = vmatprep.subr.bf16.mxu0 0
    %3014 = vmatpush2.bf16.msra.mxu0 0
    %3015 = vmatprep.subr.bf16.mxu0 0
    %3016 = vmatpush2.bf16.msra.mxu0 0
    %3017 = vmatprep.mubr.bf16.mxu0 0
    %3018 = vmatmul.mubr.bf16.gmra.mxu0 %v2980
    %v3019 = vpop.f32.mrf.mxu0
    %v3020 = vadd.f32 0.0, %v3019
    %v3021 = vpop.f32.mrf.mxu0
    %v3022 = vpop.f32.mrf.mxu0
    %v3023 = vpop.f32.mrf.mxu0
    %3024 = vdwg.mxu0
    %3026 = vrot.lane.b32.xlu0 %v2631, 96
    %v3027 = vpop.permute.xlu0 %3026
    %v3029 = vsel %vm985, %v2975, 0
    %v3032 = vsel %vm1013, %v3027, 0
    %3034 = vmatprep.subr.bf16.mxu0 0
    %3035 = vmatpush1.bf16.msra.mxu0 0
    %3036 = vmatprep.subr.bf16.mxu0 0
    %3037 = vmatpush1.bf16.msra.mxu0 0
    %3038 = vmatprep.subr.bf16.mxu0 0
    %3039 = vmatpush1.bf16.msra.mxu0 0
    %3040 = vmatprep.subr.bf16.mxu0 0
    %3041 = vmatpush1.bf16.msra.mxu0 0
    %3042 = vmatprep.subr.bf16.mxu0 0
    %3043 = vmatpush1.bf16.msra.mxu0 0
    %3044 = vmatprep.subr.bf16.mxu0 0
    %3045 = vmatpush1.bf16.msra.mxu0 0
    %3046 = vmatprep.subr.bf16.mxu0 0
    %3047 = vmatpush1.bf16.msra.mxu0 0
    %3048 = vmatprep.subr.bf16.mxu0 0
    %3049 = vmatpush1.bf16.msra.mxu0 %v3032
    %3050 = vmatprep.subr.bf16.mxu0 0
    %3051 = vmatpush2.bf16.msra.mxu0 0
    %3052 = vmatprep.subr.bf16.mxu0 0
    %3053 = vmatpush2.bf16.msra.mxu0 0
    %3054 = vmatprep.subr.bf16.mxu0 0
    %3055 = vmatpush2.bf16.msra.mxu0 0
    %3056 = vmatprep.subr.bf16.mxu0 0
    %3057 = vmatpush2.bf16.msra.mxu0 0
    %3058 = vmatprep.subr.bf16.mxu0 0
    %3059 = vmatpush2.bf16.msra.mxu0 0
    %3060 = vmatprep.subr.bf16.mxu0 0
    %3061 = vmatpush2.bf16.msra.mxu0 0
    %3062 = vmatprep.subr.bf16.mxu0 0
    %3063 = vmatpush2.bf16.msra.mxu0 0
    %3064 = vmatprep.subr.bf16.mxu0 0
    %3065 = vmatpush2.bf16.msra.mxu0 0
    %3066 = vmatprep.mubr.bf16.mxu0 0
    %3067 = vmatmul.mubr.bf16.gmra.mxu0 %v3029
    %v3068 = vpop.f32.mrf.mxu0
    %v3069 = vadd.f32 0.0, %v3068
    %v3070 = vpop.f32.mrf.mxu0
    %v3071 = vpop.f32.mrf.mxu0
    %v3072 = vpop.f32.mrf.mxu0
    %3073 = vdwg.mxu0
    %3074 = vrot.lane.b32.xlu0 %v2626, 64
    %v3075 = vpop.permute.xlu0 %3074
    %3076 = vrot.lane.b32.xlu0 %v2628, 64
    %v3077 = vpop.permute.xlu0 %3076
    %v3079 = vsel %vm888, %v3075, 0
    %v3082 = vsel %vm888, %v3077, 0
    %3084 = vmatprep.subr.bf16.mxu0 0
    %3085 = vmatpush1.bf16.xpose.msra.mxu0 0
    %3086 = vmatprep.subr.bf16.mxu0 0
    %3087 = vmatpush1.bf16.xpose.msra.mxu0 0
    %3088 = vmatprep.subr.bf16.mxu0 0
    %3089 = vmatpush1.bf16.xpose.msra.mxu0 0
    %3090 = vmatprep.subr.bf16.mxu0 0
    %3091 = vmatpush1.bf16.xpose.msra.mxu0 0
    %3092 = vmatprep.subr.bf16.mxu0 0
    %3093 = vmatpush1.bf16.xpose.msra.mxu0 0
    %3094 = vmatprep.subr.bf16.mxu0 0
    %3095 = vmatpush1.bf16.xpose.msra.mxu0 0
    %3096 = vmatprep.subr.bf16.mxu0 0
    %3097 = vmatpush1.bf16.xpose.msra.mxu0 0
    %3098 = vmatprep.subr.bf16.mxu0 0
    %3099 = vmatpush1.bf16.xpose.msra.mxu0 %v3082
    %3100 = vmatprep.subr.bf16.mxu0 0
    %3101 = vmatpush2.bf16.xpose.msra.mxu0 0
    %3102 = vmatprep.subr.bf16.mxu0 0
    %3103 = vmatpush2.bf16.xpose.msra.mxu0 0
    %3104 = vmatprep.subr.bf16.mxu0 0
    %3105 = vmatpush2.bf16.xpose.msra.mxu0 0
    %3106 = vmatprep.subr.bf16.mxu0 0
    %3107 = vmatpush2.bf16.xpose.msra.mxu0 0
    %3108 = vmatprep.subr.bf16.mxu0 0
    %3109 = vmatpush2.bf16.xpose.msra.mxu0 0
    %3110 = vmatprep.subr.bf16.mxu0 0
    %3111 = vmatpush2.bf16.xpose.msra.mxu0 0
    %3112 = vmatprep.subr.bf16.mxu0 0
    %3113 = vmatpush2.bf16.xpose.msra.mxu0 0
    %3114 = vmatprep.subr.bf16.mxu0 0
    %3115 = vmatpush2.bf16.xpose.msra.mxu0 0
    %3116 = vmatprep.mubr.bf16.mxu0 0
    %3117 = vmatmul.mubr.bf16.gmra.mxu0 %v3079
    %v3118 = vpop.f32.mrf.mxu0
    %v3119 = vadd.f32 0.0, %v3118
    %v3120 = vpop.f32.mrf.mxu0
    %v3121 = vpop.f32.mrf.mxu0
    %v3122 = vpop.f32.mrf.mxu0
    %3123 = vdwg.mxu0
    %3124 = vrot.lane.b32.xlu0 %v2627, 64
    %v3125 = vpop.permute.xlu0 %3124
    %3126 = vrot.lane.b32.xlu0 %v2629, 64
    %v3127 = vpop.permute.xlu0 %3126
    %v3129 = vsel %vm888, %v3125, 0
    %v3132 = vsel %vm888, %v3127, 0
    %3134 = vmatprep.subr.bf16.mxu0 0
    %3135 = vmatpush1.bf16.xpose.msra.mxu0 0
    %3136 = vmatprep.subr.bf16.mxu0 0
    %3137 = vmatpush1.bf16.xpose.msra.mxu0 0
    %3138 = vmatprep.subr.bf16.mxu0 0
    %3139 = vmatpush1.bf16.xpose.msra.mxu0 0
    %3140 = vmatprep.subr.bf16.mxu0 0
    %3141 = vmatpush1.bf16.xpose.msra.mxu0 0
    %3142 = vmatprep.subr.bf16.mxu0 0
    %3143 = vmatpush1.bf16.xpose.msra.mxu0 0
    %3144 = vmatprep.subr.bf16.mxu0 0
    %3145 = vmatpush1.bf16.xpose.msra.mxu0 0
    %3146 = vmatprep.subr.bf16.mxu0 0
    %3147 = vmatpush1.bf16.xpose.msra.mxu0 0
    %3148 = vmatprep.subr.bf16.mxu0 0
    %3149 = vmatpush1.bf16.xpose.msra.mxu0 %v3132
    %3150 = vmatprep.subr.bf16.mxu0 0
    %3151 = vmatpush2.bf16.xpose.msra.mxu0 0
    %3152 = vmatprep.subr.bf16.mxu0 0
    %3153 = vmatpush2.bf16.xpose.msra.mxu0 0
    %3154 = vmatprep.subr.bf16.mxu0 0
    %3155 = vmatpush2.bf16.xpose.msra.mxu0 0
    %3156 = vmatprep.subr.bf16.mxu0 0
    %3157 = vmatpush2.bf16.xpose.msra.mxu0 0
    %3158 = vmatprep.subr.bf16.mxu0 0
    %3159 = vmatpush2.bf16.xpose.msra.mxu0 0
    %3160 = vmatprep.subr.bf16.mxu0 0
    %3161 = vmatpush2.bf16.xpose.msra.mxu0 0
    %3162 = vmatprep.subr.bf16.mxu0 0
    %3163 = vmatpush2.bf16.xpose.msra.mxu0 0
    %3164 = vmatprep.subr.bf16.mxu0 0
    %3165 = vmatpush2.bf16.xpose.msra.mxu0 0
    %3166 = vmatprep.mubr.bf16.mxu0 0
    %3167 = vmatmul.mubr.bf16.gmra.mxu0 %v3129
    %v3168 = vpop.f32.mrf.mxu0
    %v3169 = vadd.f32 0.0, %v3168
    %v3170 = vpop.f32.mrf.mxu0
    %v3171 = vpop.f32.mrf.mxu0
    %v3172 = vpop.f32.mrf.mxu0
    %3173 = vdwg.mxu0
    %v3174 = vmul.f32 %v3119, 0.17677669
    %v3175 = vmul.f32 %v3169, 0.17677669
    %v3176 = vadd.f32 %v3174, %v583
    %v3177 = vadd.f32 %v3175, %v583
    %v3178 = vsel %vm985, %v3176, -inf
    %3179 = vmax.xlane.f32.xlu0 %v3178
    %v3180 = vpop.xlane.xlu0 %3179
    %v3181 = vsel %vm985, %v3177, -inf
    %3182 = vmax.xlane.f32.xlu0 %v3181
    %v3183 = vpop.xlane.xlu0 %3182
    %v3184 = vsub.f32 %v3176, %v3180
    %v3185 = vsub.f32 %v3177, %v3183
    %v3186 = vmul.f32 %v3184, 1.442695
    %v3187 = vpow.pop %v3186
    %v3188 = vmul.f32 %v3185, 1.442695
    %v3189 = vpow.pop %v3188
    %v3190 = vsel %vm985, %v3187, 0.0
    %3191 = vadd.xlane.f32.xlu0 %v3190
    %v3192 = vpop.xlane.xlu0 %3191
    %v3193 = vsel %vm985, %v3189, 0.0
    %3194 = vadd.xlane.f32.xlu0 %v3193
    %v3195 = vpop.xlane.xlu0 %3194
    %v3196 = vrcp.pop %v3192
    %v3197 = vrcp.pop %v3195
    %v3198 = vmul.f32 %v3187, %v3196
    %v3199 = vmul.f32 %v3189, %v3197
    %v3200 = vpack.c.bf16 %v3198, %v3198
    %v3201 = vpack.c.bf16 %v3199, %v3199
    %3202 = vrot.lane.b32.xlu0 %v2630, 64
    %v3203 = vpop.permute.xlu0 %3202
    %v3205 = vsel %vm985, %v3200, 0
    %v3208 = vsel %vm1013, %v3203, 0
    %3210 = vmatprep.subr.bf16.mxu0 0
    %3211 = vmatpush1.bf16.msra.mxu0 0
    %3212 = vmatprep.subr.bf16.mxu0 0
    %3213 = vmatpush1.bf16.msra.mxu0 0
    %3214 = vmatprep.subr.bf16.mxu0 0
    %3215 = vmatpush1.bf16.msra.mxu0 0
    %3216 = vmatprep.subr.bf16.mxu0 0
    %3217 = vmatpush1.bf16.msra.mxu0 0
    %3218 = vmatprep.subr.bf16.mxu0 0
    %3219 = vmatpush1.bf16.msra.mxu0 0
    %3220 = vmatprep.subr.bf16.mxu0 0
    %3221 = vmatpush1.bf16.msra.mxu0 0
    %3222 = vmatprep.subr.bf16.mxu0 0
    %3223 = vmatpush1.bf16.msra.mxu0 0
    %3224 = vmatprep.subr.bf16.mxu0 0
    %3225 = vmatpush1.bf16.msra.mxu0 %v3208
    %3226 = vmatprep.subr.bf16.mxu0 0
    %3227 = vmatpush2.bf16.msra.mxu0 0
    %3228 = vmatprep.subr.bf16.mxu0 0
    %3229 = vmatpush2.bf16.msra.mxu0 0
    %3230 = vmatprep.subr.bf16.mxu0 0
    %3231 = vmatpush2.bf16.msra.mxu0 0
    %3232 = vmatprep.subr.bf16.mxu0 0
    %3233 = vmatpush2.bf16.msra.mxu0 0
    %3234 = vmatprep.subr.bf16.mxu0 0
    %3235 = vmatpush2.bf16.msra.mxu0 0
    %3236 = vmatprep.subr.bf16.mxu0 0
    %3237 = vmatpush2.bf16.msra.mxu0 0
    %3238 = vmatprep.subr.bf16.mxu0 0
    %3239 = vmatpush2.bf16.msra.mxu0 0
    %3240 = vmatprep.subr.bf16.mxu0 0
    %3241 = vmatpush2.bf16.msra.mxu0 0
    %3242 = vmatprep.mubr.bf16.mxu0 0
    %3243 = vmatmul.mubr.bf16.gmra.mxu0 %v3205
    %v3244 = vpop.f32.mrf.mxu0
    %v3245 = vadd.f32 0.0, %v3244
    %v3246 = vpop.f32.mrf.mxu0
    %v3247 = vpop.f32.mrf.mxu0
    %v3248 = vpop.f32.mrf.mxu0
    %3249 = vdwg.mxu0
    %3250 = vrot.lane.b32.xlu0 %v2631, 64
    %v3251 = vpop.permute.xlu0 %3250
    %v3253 = vsel %vm985, %v3201, 0
    %v3256 = vsel %vm1013, %v3251, 0
    %3258 = vmatprep.subr.bf16.mxu0 0
    %3259 = vmatpush1.bf16.msra.mxu0 0
    %3260 = vmatprep.subr.bf16.mxu0 0
    %3261 = vmatpush1.bf16.msra.mxu0 0
    %3262 = vmatprep.subr.bf16.mxu0 0
    %3263 = vmatpush1.bf16.msra.mxu0 0
    %3264 = vmatprep.subr.bf16.mxu0 0
    %3265 = vmatpush1.bf16.msra.mxu0 0
    %3266 = vmatprep.subr.bf16.mxu0 0
    %3267 = vmatpush1.bf16.msra.mxu0 0
    %3268 = vmatprep.subr.bf16.mxu0 0
    %3269 = vmatpush1.bf16.msra.mxu0 0
    %3270 = vmatprep.subr.bf16.mxu0 0
    %3271 = vmatpush1.bf16.msra.mxu0 0
    %3272 = vmatprep.subr.bf16.mxu0 0
    %3273 = vmatpush1.bf16.msra.mxu0 %v3256
    %3274 = vmatprep.subr.bf16.mxu0 0
    %3275 = vmatpush2.bf16.msra.mxu0 0
    %3276 = vmatprep.subr.bf16.mxu0 0
    %3277 = vmatpush2.bf16.msra.mxu0 0
    %3278 = vmatprep.subr.bf16.mxu0 0
    %3279 = vmatpush2.bf16.msra.mxu0 0
    %3280 = vmatprep.subr.bf16.mxu0 0
    %3281 = vmatpush2.bf16.msra.mxu0 0
    %3282 = vmatprep.subr.bf16.mxu0 0
    %3283 = vmatpush2.bf16.msra.mxu0 0
    %3284 = vmatprep.subr.bf16.mxu0 0
    %3285 = vmatpush2.bf16.msra.mxu0 0
    %3286 = vmatprep.subr.bf16.mxu0 0
    %3287 = vmatpush2.bf16.msra.mxu0 0
    %3288 = vmatprep.subr.bf16.mxu0 0
    %3289 = vmatpush2.bf16.msra.mxu0 0
    %3290 = vmatprep.mubr.bf16.mxu0 0
    %3291 = vmatmul.mubr.bf16.gmra.mxu0 %v3253
    %v3292 = vpop.f32.mrf.mxu0
    %v3293 = vadd.f32 0.0, %v3292
    %v3294 = vpop.f32.mrf.mxu0
    %v3295 = vpop.f32.mrf.mxu0
    %v3296 = vpop.f32.mrf.mxu0
    %3297 = vdwg.mxu0
    %3298 = vrot.lane.b32.xlu0 %v2626, 32
    %v3299 = vpop.permute.xlu0 %3298
    %3300 = vrot.lane.b32.xlu0 %v2628, 32
    %v3301 = vpop.permute.xlu0 %3300
    %v3303 = vsel %vm888, %v3299, 0
    %v3306 = vsel %vm888, %v3301, 0
    %3308 = vmatprep.subr.bf16.mxu0 0
    %3309 = vmatpush1.bf16.xpose.msra.mxu0 0
    %3310 = vmatprep.subr.bf16.mxu0 0
    %3311 = vmatpush1.bf16.xpose.msra.mxu0 0
    %3312 = vmatprep.subr.bf16.mxu0 0
    %3313 = vmatpush1.bf16.xpose.msra.mxu0 0
    %3314 = vmatprep.subr.bf16.mxu0 0
    %3315 = vmatpush1.bf16.xpose.msra.mxu0 0
    %3316 = vmatprep.subr.bf16.mxu0 0
    %3317 = vmatpush1.bf16.xpose.msra.mxu0 0
    %3318 = vmatprep.subr.bf16.mxu0 0
    %3319 = vmatpush1.bf16.xpose.msra.mxu0 0
    %3320 = vmatprep.subr.bf16.mxu0 0
    %3321 = vmatpush1.bf16.xpose.msra.mxu0 0
    %3322 = vmatprep.subr.bf16.mxu0 0
    %3323 = vmatpush1.bf16.xpose.msra.mxu0 %v3306
    %3324 = vmatprep.subr.bf16.mxu0 0
    %3325 = vmatpush2.bf16.xpose.msra.mxu0 0
    %3326 = vmatprep.subr.bf16.mxu0 0
    %3327 = vmatpush2.bf16.xpose.msra.mxu0 0
    %3328 = vmatprep.subr.bf16.mxu0 0
    %3329 = vmatpush2.bf16.xpose.msra.mxu0 0
    %3330 = vmatprep.subr.bf16.mxu0 0
    %3331 = vmatpush2.bf16.xpose.msra.mxu0 0
    %3332 = vmatprep.subr.bf16.mxu0 0
    %3333 = vmatpush2.bf16.xpose.msra.mxu0 0
    %3334 = vmatprep.subr.bf16.mxu0 0
    %3335 = vmatpush2.bf16.xpose.msra.mxu0 0
    %3336 = vmatprep.subr.bf16.mxu0 0
    %3337 = vmatpush2.bf16.xpose.msra.mxu0 0
    %3338 = vmatprep.subr.bf16.mxu0 0
    %3339 = vmatpush2.bf16.xpose.msra.mxu0 0
    %3340 = vmatprep.mubr.bf16.mxu0 0
    %3341 = vmatmul.mubr.bf16.gmra.mxu0 %v3303
    %v3342 = vpop.f32.mrf.mxu0
    %v3343 = vadd.f32 0.0, %v3342
    %v3344 = vpop.f32.mrf.mxu0
    %v3345 = vpop.f32.mrf.mxu0
    %v3346 = vpop.f32.mrf.mxu0
    %3347 = vdwg.mxu0
    %3348 = vrot.lane.b32.xlu0 %v2627, 32
    %v3349 = vpop.permute.xlu0 %3348
    %3350 = vrot.lane.b32.xlu0 %v2629, 32
    %v3351 = vpop.permute.xlu0 %3350
    %v3353 = vsel %vm888, %v3349, 0
    %v3356 = vsel %vm888, %v3351, 0
    %3358 = vmatprep.subr.bf16.mxu0 0
    %3359 = vmatpush1.bf16.xpose.msra.mxu0 0
    %3360 = vmatprep.subr.bf16.mxu0 0
    %3361 = vmatpush1.bf16.xpose.msra.mxu0 0
    %3362 = vmatprep.subr.bf16.mxu0 0
    %3363 = vmatpush1.bf16.xpose.msra.mxu0 0
    %3364 = vmatprep.subr.bf16.mxu0 0
    %3365 = vmatpush1.bf16.xpose.msra.mxu0 0
    %3366 = vmatprep.subr.bf16.mxu0 0
    %3367 = vmatpush1.bf16.xpose.msra.mxu0 0
    %3368 = vmatprep.subr.bf16.mxu0 0
    %3369 = vmatpush1.bf16.xpose.msra.mxu0 0
    %3370 = vmatprep.subr.bf16.mxu0 0
    %3371 = vmatpush1.bf16.xpose.msra.mxu0 0
    %3372 = vmatprep.subr.bf16.mxu0 0
    %3373 = vmatpush1.bf16.xpose.msra.mxu0 %v3356
    %3374 = vmatprep.subr.bf16.mxu0 0
    %3375 = vmatpush2.bf16.xpose.msra.mxu0 0
    %3376 = vmatprep.subr.bf16.mxu0 0
    %3377 = vmatpush2.bf16.xpose.msra.mxu0 0
    %3378 = vmatprep.subr.bf16.mxu0 0
    %3379 = vmatpush2.bf16.xpose.msra.mxu0 0
    %3380 = vmatprep.subr.bf16.mxu0 0
    %3381 = vmatpush2.bf16.xpose.msra.mxu0 0
    %3382 = vmatprep.subr.bf16.mxu0 0
    %3383 = vmatpush2.bf16.xpose.msra.mxu0 0
    %3384 = vmatprep.subr.bf16.mxu0 0
    %3385 = vmatpush2.bf16.xpose.msra.mxu0 0
    %3386 = vmatprep.subr.bf16.mxu0 0
    %3387 = vmatpush2.bf16.xpose.msra.mxu0 0
    %3388 = vmatprep.subr.bf16.mxu0 0
    %3389 = vmatpush2.bf16.xpose.msra.mxu0 0
    %3390 = vmatprep.mubr.bf16.mxu0 0
    %3391 = vmatmul.mubr.bf16.gmra.mxu0 %v3353
    %v3392 = vpop.f32.mrf.mxu0
    %v3393 = vadd.f32 0.0, %v3392
    %v3394 = vpop.f32.mrf.mxu0
    %v3395 = vpop.f32.mrf.mxu0
    %v3396 = vpop.f32.mrf.mxu0
    %3397 = vdwg.mxu0
    %v3398 = vmul.f32 %v3343, 0.17677669
    %v3399 = vmul.f32 %v3393, 0.17677669
    %v3400 = vadd.f32 %v3398, %v583
    %v3401 = vadd.f32 %v3399, %v583
    %v3402 = vsel %vm985, %v3400, -inf
    %3403 = vmax.xlane.f32.xlu0 %v3402
    %v3404 = vpop.xlane.xlu0 %3403
    %v3405 = vsel %vm985, %v3401, -inf
    %3406 = vmax.xlane.f32.xlu0 %v3405
    %v3407 = vpop.xlane.xlu0 %3406
    %v3408 = vsub.f32 %v3400, %v3404
    %v3409 = vsub.f32 %v3401, %v3407
    %v3410 = vmul.f32 %v3408, 1.442695
    %v3411 = vpow.pop %v3410
    %v3412 = vmul.f32 %v3409, 1.442695
    %v3413 = vpow.pop %v3412
    %v3414 = vsel %vm985, %v3411, 0.0
    %3415 = vadd.xlane.f32.xlu0 %v3414
    %v3416 = vpop.xlane.xlu0 %3415
    %v3417 = vsel %vm985, %v3413, 0.0
    %3418 = vadd.xlane.f32.xlu0 %v3417
    %v3419 = vpop.xlane.xlu0 %3418
    %v3420 = vrcp.pop %v3416
    %v3421 = vrcp.pop %v3419
    %v3422 = vmul.f32 %v3411, %v3420
    %v3423 = vmul.f32 %v3413, %v3421
    %v3424 = vpack.c.bf16 %v3422, %v3422
    %v3425 = vpack.c.bf16 %v3423, %v3423
    %3426 = vrot.lane.b32.xlu0 %v2630, 32
    %v3427 = vpop.permute.xlu0 %3426
    %v3429 = vsel %vm985, %v3424, 0
    %v3432 = vsel %vm1013, %v3427, 0
    %3434 = vmatprep.subr.bf16.mxu0 0
    %3435 = vmatpush1.bf16.msra.mxu0 0
    %3436 = vmatprep.subr.bf16.mxu0 0
    %3437 = vmatpush1.bf16.msra.mxu0 0
    %3438 = vmatprep.subr.bf16.mxu0 0
    %3439 = vmatpush1.bf16.msra.mxu0 0
    %3440 = vmatprep.subr.bf16.mxu0 0
    %3441 = vmatpush1.bf16.msra.mxu0 0
    %3442 = vmatprep.subr.bf16.mxu0 0
    %3443 = vmatpush1.bf16.msra.mxu0 0
    %3444 = vmatprep.subr.bf16.mxu0 0
    %3445 = vmatpush1.bf16.msra.mxu0 0
    %3446 = vmatprep.subr.bf16.mxu0 0
    %3447 = vmatpush1.bf16.msra.mxu0 0
    %3448 = vmatprep.subr.bf16.mxu0 0
    %3449 = vmatpush1.bf16.msra.mxu0 %v3432
    %3450 = vmatprep.subr.bf16.mxu0 0
    %3451 = vmatpush2.bf16.msra.mxu0 0
    %3452 = vmatprep.subr.bf16.mxu0 0
    %3453 = vmatpush2.bf16.msra.mxu0 0
    %3454 = vmatprep.subr.bf16.mxu0 0
    %3455 = vmatpush2.bf16.msra.mxu0 0
    %3456 = vmatprep.subr.bf16.mxu0 0
    %3457 = vmatpush2.bf16.msra.mxu0 0
    %3458 = vmatprep.subr.bf16.mxu0 0
    %3459 = vmatpush2.bf16.msra.mxu0 0
    %3460 = vmatprep.subr.bf16.mxu0 0
    %3461 = vmatpush2.bf16.msra.mxu0 0
    %3462 = vmatprep.subr.bf16.mxu0 0
    %3463 = vmatpush2.bf16.msra.mxu0 0
    %3464 = vmatprep.subr.bf16.mxu0 0
    %3465 = vmatpush2.bf16.msra.mxu0 0
    %3466 = vmatprep.mubr.bf16.mxu0 0
    %3467 = vmatmul.mubr.bf16.gmra.mxu0 %v3429
    %v3468 = vpop.f32.mrf.mxu0
    %v3469 = vadd.f32 0.0, %v3468
    %v3470 = vpop.f32.mrf.mxu0
    %v3471 = vpop.f32.mrf.mxu0
    %v3472 = vpop.f32.mrf.mxu0
    %3473 = vdwg.mxu0
    %3474 = vrot.lane.b32.xlu0 %v2631, 32
    %v3475 = vpop.permute.xlu0 %3474
    %v3477 = vsel %vm985, %v3425, 0
    %v3480 = vsel %vm1013, %v3475, 0
    %3482 = vmatprep.subr.bf16.mxu0 0
    %3483 = vmatpush1.bf16.msra.mxu0 0
    %3484 = vmatprep.subr.bf16.mxu0 0
    %3485 = vmatpush1.bf16.msra.mxu0 0
    %3486 = vmatprep.subr.bf16.mxu0 0
    %3487 = vmatpush1.bf16.msra.mxu0 0
    %3488 = vmatprep.subr.bf16.mxu0 0
    %3489 = vmatpush1.bf16.msra.mxu0 0
    %3490 = vmatprep.subr.bf16.mxu0 0
    %3491 = vmatpush1.bf16.msra.mxu0 0
    %3492 = vmatprep.subr.bf16.mxu0 0
    %3493 = vmatpush1.bf16.msra.mxu0 0
    %3494 = vmatprep.subr.bf16.mxu0 0
    %3495 = vmatpush1.bf16.msra.mxu0 0
    %3496 = vmatprep.subr.bf16.mxu0 0
    %3497 = vmatpush1.bf16.msra.mxu0 %v3480
    %3498 = vmatprep.subr.bf16.mxu0 0
    %3499 = vmatpush2.bf16.msra.mxu0 0
    %3500 = vmatprep.subr.bf16.mxu0 0
    %3501 = vmatpush2.bf16.msra.mxu0 0
    %3502 = vmatprep.subr.bf16.mxu0 0
    %3503 = vmatpush2.bf16.msra.mxu0 0
    %3504 = vmatprep.subr.bf16.mxu0 0
    %3505 = vmatpush2.bf16.msra.mxu0 0
    %3506 = vmatprep.subr.bf16.mxu0 0
    %3507 = vmatpush2.bf16.msra.mxu0 0
    %3508 = vmatprep.subr.bf16.mxu0 0
    %3509 = vmatpush2.bf16.msra.mxu0 0
    %3510 = vmatprep.subr.bf16.mxu0 0
    %3511 = vmatpush2.bf16.msra.mxu0 0
    %3512 = vmatprep.subr.bf16.mxu0 0
    %3513 = vmatpush2.bf16.msra.mxu0 0
    %3514 = vmatprep.mubr.bf16.mxu0 0
    %3515 = vmatmul.mubr.bf16.gmra.mxu0 %v3477
    %v3516 = vpop.f32.mrf.mxu0
    %v3517 = vadd.f32 0.0, %v3516
    %v3518 = vpop.f32.mrf.mxu0
    %v3519 = vpop.f32.mrf.mxu0
    %v3520 = vpop.f32.mrf.mxu0
    %3521 = vdwg.mxu0
    %3524 = vrot.lane.b32.xlu0 %v3020, 32
    %v3525 = vpop.permute.xlu0 %3524
    %3526 = vrot.lane.b32.xlu0 %v3069, 32
    %v3527 = vpop.permute.xlu0 %3526
    %3532 = vrot.lane.b32.xlu0 %v3245, 64
    %v3533 = vpop.permute.xlu0 %3532
    %3534 = vrot.lane.b32.xlu0 %v3293, 64
    %v3535 = vpop.permute.xlu0 %3534
    %3540 = vrot.lane.b32.xlu0 %v3469, 96
    %v3541 = vpop.permute.xlu0 %3540
    %3542 = vrot.lane.b32.xlu0 %v3517, 96
    %v3543 = vpop.permute.xlu0 %3542
    %v3546 = vsel %vm888, %v2793, %v3525
    %v3547 = vsel %vm888, %v2839, %v3527
    %v3548 = vsel %vm1807, %v3546, %v3533
    %v3549 = vsel %vm1807, %v3547, %v3535
    %v3550 = vsel %vm1810, %v3548, %v3541
    %v3551 = vsel %vm1810, %v3549, %v3543
    %v3552 = vpack.c.bf16 %v3551, %v3550
    %s3553 = scalar_lea.vmem %s5, 64
    %v3554 = vld [vmem:[%s3553] sm:$0xf]
    %v3555 = vld [vmem:[%s3553 + $0x4] sm:$0xf]
    %v3556 = vld [vmem:[%s3553 + $0x8] sm:$0xf]
    %v3557 = vld [vmem:[%s3553 + $0xc] sm:$0xf]
    %v3558 = vld [vmem:[%s3553 + $0x10] sm:$0xf]
    %v3559 = vld [vmem:[%s3553 + $0x14] sm:$0xf]
    %v3560 = vld [vmem:[%s3553 + $0x18] sm:$0xf]
    %v3561 = vld [vmem:[%s3553 + $0x1c] sm:$0xf]
    %v3562 = vld [vmem:[%s3553 + $0x20] sm:$0xf]
    %v3563 = vld [vmem:[%s3553 + $0x24] sm:$0xf]
    %v3564 = vld [vmem:[%s3553 + $0x28] sm:$0xf]
    %v3565 = vld [vmem:[%s3553 + $0x2c] sm:$0xf]
    %v3566 = vld [vmem:[%s3553 + $0x30] sm:$0xf]
    %v3567 = vld [vmem:[%s3553 + $0x34] sm:$0xf]
    %v3568 = vld [vmem:[%s3553 + $0x38] sm:$0xf]
    %v3569 = vld [vmem:[%s3553 + $0x3c] sm:$0xf]
    %v3586 = vunpack.c.l.b16 %v3554
    %v3587 = vunpack.c.l.b16 %v3555
    %v3588 = vunpack.c.l.b16 %v3556
    %v3589 = vunpack.c.l.b16 %v3557
    %v3590 = vunpack.c.l.b16 %v3558
    %v3591 = vunpack.c.l.b16 %v3559
    %v3592 = vunpack.c.l.b16 %v3560
    %v3593 = vunpack.c.l.b16 %v3561
    %v3594 = vunpack.c.l.b16 %v3562
    %v3595 = vunpack.c.l.b16 %v3563
    %v3596 = vunpack.c.l.b16 %v3564
    %v3597 = vunpack.c.l.b16 %v3565
    %v3598 = vunpack.c.l.b16 %v3566
    %v3599 = vunpack.c.l.b16 %v3567
    %v3600 = vunpack.c.l.b16 %v3568
    %v3601 = vunpack.c.l.b16 %v3569
    %v3602 = vpack.c.b16 %v3587, %v3586
    %v3603 = vpack.c.b16 %v3589, %v3588
    %v3604 = vpack.c.b16 %v3591, %v3590
    %v3605 = vpack.c.b16 %v3593, %v3592
    %v3606 = vpack.c.b16 %v3595, %v3594
    %v3607 = vpack.c.b16 %v3597, %v3596
    %v3608 = vpack.c.b16 %v3599, %v3598
    %v3609 = vpack.c.b16 %v3601, %v3600
    %3618 = vmatprep.subr.bf16.mxu0 0
    %3619 = vmatpush1.bf16.msra.mxu0 %v3609
    %3620 = vmatprep.subr.bf16.mxu0 0
    %3621 = vmatpush1.bf16.msra.mxu0 %v3608
    %3622 = vmatprep.subr.bf16.mxu0 0
    %3623 = vmatpush1.bf16.msra.mxu0 %v3607
    %3624 = vmatprep.subr.bf16.mxu0 0
    %3625 = vmatpush1.bf16.msra.mxu0 %v3606
    %3626 = vmatprep.subr.bf16.mxu0 0
    %3627 = vmatpush1.bf16.msra.mxu0 %v3605
    %3628 = vmatprep.subr.bf16.mxu0 0
    %3629 = vmatpush1.bf16.msra.mxu0 %v3604
    %3630 = vmatprep.subr.bf16.mxu0 0
    %3631 = vmatpush1.bf16.msra.mxu0 %v3603
    %3632 = vmatprep.subr.bf16.mxu0 0
    %3633 = vmatpush1.bf16.msra.mxu0 %v3602
    %3634 = vmatprep.subr.bf16.mxu0 0
    %3635 = vmatpush2.bf16.msra.mxu0 0
    %3636 = vmatprep.subr.bf16.mxu0 0
    %3637 = vmatpush2.bf16.msra.mxu0 0
    %3638 = vmatprep.subr.bf16.mxu0 0
    %3639 = vmatpush2.bf16.msra.mxu0 0
    %3640 = vmatprep.subr.bf16.mxu0 0
    %3641 = vmatpush2.bf16.msra.mxu0 0
    %3642 = vmatprep.subr.bf16.mxu0 0
    %3643 = vmatpush2.bf16.msra.mxu0 0
    %3644 = vmatprep.subr.bf16.mxu0 0
    %3645 = vmatpush2.bf16.msra.mxu0 0
    %3646 = vmatprep.subr.bf16.mxu0 0
    %3647 = vmatpush2.bf16.msra.mxu0 0
    %3648 = vmatprep.subr.bf16.mxu0 0
    %3649 = vmatpush2.bf16.msra.mxu0 0
    %3650 = vmatprep.mubr.bf16.mxu0 0
    %3651 = vmatmul.mubr.bf16.gmra.mxu0 %v3552
    %v3652 = vpop.f32.mrf.mxu0
    %v3653 = vadd.f32 0.0, %v3652
    %v3654 = vpop.f32.mrf.mxu0
    %v3655 = vpop.f32.mrf.mxu0
    %v3656 = vadd.f32 0.0, %v3655
    %v3657 = vpop.f32.mrf.mxu0
    %3658 = vdwg.mxu0
    %v3659 = vadd.f32 %v2324, %v3653
    %v3660 = vadd.f32 %v2325, %v3656
    %v3661 = vlaneseq
    %v3662 = vshrl.u32 %v3661, 7
    %v3663 = vsub.s32 4, %v3662
    %v3664 = vrot.slane %v2327, %v3663
    %v3665 = vadd.f32 %v3659, %v3664
    %v3666 = vadd.f32 %v3660, %v3664
    %3667 = vadd.xlane.f32.xlu0 %v3665
    %v3668 = vpop.xlane.xlu0 %3667
    %3669 = vadd.xlane.f32.xlu0 %v3666
    %v3670 = vpop.xlane.xlu0 %3669
    %v3671 = vmul.f32 %v3668, %v589
    %v3672 = vmul.f32 %v3670, %v589
    %v3673 = vsub.f32 %v3665, %v3671
    %v3674 = vsub.f32 %v3666, %v3672
    %v3675 = vmul.f32 %v3673, %v3673
    %v3676 = vmul.f32 %v3674, %v3674
    %3677 = vadd.xlane.f32.xlu0 %v3675
    %v3678 = vpop.xlane.xlu0 %3677
    %3679 = vadd.xlane.f32.xlu0 %v3676
    %v3680 = vpop.xlane.xlu0 %3679
    %v3681 = vmul.f32 %v3678, %v589
    %v3682 = vmul.f32 %v3680, %v589
    %v3683 = vadd.f32 %v3681, 1e-06
    %v3684 = vadd.f32 %v3682, 1e-06
    %v3685 = vrsqrt.pop %v3683
    %v3686 = vrsqrt.pop %v3684
    %v3687 = vmul.f32 %v3673, %v3685
    %v3688 = vmul.f32 %v3674, %v3686
    %v3689 = vlaneseq
    %v3690 = vshrl.u32 %v3689, 7
    %v3691 = vsub.s32 2, %v3690
    %v3692 = vrot.slane %v2327, %v3691
    %v3693 = vmul.f32 %v3687, %v3692
    %v3694 = vmul.f32 %v3688, %v3692
    %v3695 = vlaneseq
    %v3696 = vshrl.u32 %v3695, 7
    %v3697 = vsub.s32 3, %v3696
    %v3698 = vrot.slane %v2327, %v3697
    %v3699 = vadd.f32 %v3693, %v3698
    %v3700 = vadd.f32 %v3694, %v3698
    %v3701 = vpack.c.bf16 %v3700, %v3699
    %s3702 = scalar_lea.vmem %s6, 128
    %v3703 = vld [vmem:[%s3702] sm:$0xff]
    %v3704 = vld [vmem:[%s3702 + $0x8] sm:$0xff]
    %v3705 = vld [vmem:[%s3702 + $0x10] sm:$0xff]
    %v3706 = vld [vmem:[%s3702 + $0x18] sm:$0xff]
    %v3707 = vld [vmem:[%s3702 + $0x20] sm:$0xff]
    %v3708 = vld [vmem:[%s3702 + $0x28] sm:$0xff]
    %v3709 = vld [vmem:[%s3702 + $0x30] sm:$0xff]
    %v3710 = vld [vmem:[%s3702 + $0x38] sm:$0xff]
    %v3711 = vld [vmem:[%s3702 + $0x40] sm:$0xff]
    %v3712 = vld [vmem:[%s3702 + $0x48] sm:$0xff]
    %v3713 = vld [vmem:[%s3702 + $0x50] sm:$0xff]
    %v3714 = vld [vmem:[%s3702 + $0x58] sm:$0xff]
    %v3715 = vld [vmem:[%s3702 + $0x60] sm:$0xff]
    %v3716 = vld [vmem:[%s3702 + $0x68] sm:$0xff]
    %v3717 = vld [vmem:[%s3702 + $0x70] sm:$0xff]
    %v3718 = vld [vmem:[%s3702 + $0x78] sm:$0xff]
    %s3719 = scalar_lea.vmem %s7, 2
    %v3720 = vld [vmem:[%s3719] sm:$0x3]
    %v3722 = vlaneseq
    %v3723 = vshrl.u32 %v3722, 7
    %v3724 = vsub.s32 0, %v3723
    %v3725 = vrot.slane %v3720, %v3724
    %v3726 = vlaneseq
    %v3727 = vshrl.u32 %v3726, 7
    %v3728 = vsub.s32 1, %v3727
    %v3729 = vrot.slane %v3720, %v3728
    %v3748 = vunpack.c.l.b16 %v3703
    %v3749 = vunpack.c.h.b16 %v3703
    %v3750 = vunpack.c.l.b16 %v3704
    %v3751 = vunpack.c.h.b16 %v3704
    %v3752 = vunpack.c.l.b16 %v3705
    %v3753 = vunpack.c.h.b16 %v3705
    %v3754 = vunpack.c.l.b16 %v3706
    %v3755 = vunpack.c.h.b16 %v3706
    %v3756 = vunpack.c.l.b16 %v3707
    %v3757 = vunpack.c.h.b16 %v3707
    %v3758 = vunpack.c.l.b16 %v3708
    %v3759 = vunpack.c.h.b16 %v3708
    %v3760 = vunpack.c.l.b16 %v3709
    %v3761 = vunpack.c.h.b16 %v3709
    %v3762 = vunpack.c.l.b16 %v3710
    %v3763 = vunpack.c.h.b16 %v3710
    %v3764 = vunpack.c.l.b16 %v3711
    %v3765 = vunpack.c.h.b16 %v3711
    %v3766 = vunpack.c.l.b16 %v3712
    %v3767 = vunpack.c.h.b16 %v3712
    %v3768 = vunpack.c.l.b16 %v3713
    %v3769 = vunpack.c.h.b16 %v3713
    %v3770 = vunpack.c.l.b16 %v3714
    %v3771 = vunpack.c.h.b16 %v3714
    %v3772 = vunpack.c.l.b16 %v3715
    %v3773 = vunpack.c.h.b16 %v3715
    %v3774 = vunpack.c.l.b16 %v3716
    %v3775 = vunpack.c.h.b16 %v3716
    %v3776 = vunpack.c.l.b16 %v3717
    %v3777 = vunpack.c.h.b16 %v3717
    %v3778 = vunpack.c.l.b16 %v3718
    %v3779 = vunpack.c.h.b16 %v3718
    %v3780 = vpack.c.b16 %v3750, %v3748
    %v3781 = vpack.c.b16 %v3751, %v3749
    %v3782 = vpack.c.b16 %v3754, %v3752
    %v3783 = vpack.c.b16 %v3755, %v3753
    %v3784 = vpack.c.b16 %v3758, %v3756
    %v3785 = vpack.c.b16 %v3759, %v3757
    %v3786 = vpack.c.b16 %v3762, %v3760
    %v3787 = vpack.c.b16 %v3763, %v3761
    %v3788 = vpack.c.b16 %v3766, %v3764
    %v3789 = vpack.c.b16 %v3767, %v3765
    %v3790 = vpack.c.b16 %v3770, %v3768
    %v3791 = vpack.c.b16 %v3771, %v3769
    %v3792 = vpack.c.b16 %v3774, %v3772
    %v3793 = vpack.c.b16 %v3775, %v3773
    %v3794 = vpack.c.b16 %v3778, %v3776
    %v3795 = vpack.c.b16 %v3779, %v3777
    %3812 = vmatprep.subr.bf16.mxu0 %v3795
    %3813 = vmatpush1.bf16.msra.mxu0 %v3794
    %3814 = vmatprep.subr.bf16.mxu0 %v3793
    %3815 = vmatpush1.bf16.msra.mxu0 %v3792
    %3816 = vmatprep.subr.bf16.mxu0 %v3791
    %3817 = vmatpush1.bf16.msra.mxu0 %v3790
    %3818 = vmatprep.subr.bf16.mxu0 %v3789
    %3819 = vmatpush1.bf16.msra.mxu0 %v3788
    %3820 = vmatprep.subr.bf16.mxu0 %v3787
    %3821 = vmatpush1.bf16.msra.mxu0 %v3786
    %3822 = vmatprep.subr.bf16.mxu0 %v3785
    %3823 = vmatpush1.bf16.msra.mxu0 %v3784
    %3824 = vmatprep.subr.bf16.mxu0 %v3783
    %3825 = vmatpush1.bf16.msra.mxu0 %v3782
    %3826 = vmatprep.subr.bf16.mxu0 %v3781
    %3827 = vmatpush1.bf16.msra.mxu0 %v3780
    %3828 = vmatprep.subr.bf16.mxu0 0
    %3829 = vmatpush2.bf16.msra.mxu0 0
    %3830 = vmatprep.subr.bf16.mxu0 0
    %3831 = vmatpush2.bf16.msra.mxu0 0
    %3832 = vmatprep.subr.bf16.mxu0 0
    %3833 = vmatpush2.bf16.msra.mxu0 0
    %3834 = vmatprep.subr.bf16.mxu0 0
    %3835 = vmatpush2.bf16.msra.mxu0 0
    %3836 = vmatprep.subr.bf16.mxu0 0
    %3837 = vmatpush2.bf16.msra.mxu0 0
    %3838 = vmatprep.subr.bf16.mxu0 0
    %3839 = vmatpush2.bf16.msra.mxu0 0
    %3840 = vmatprep.subr.bf16.mxu0 0
    %3841 = vmatpush2.bf16.msra.mxu0 0
    %3842 = vmatprep.subr.bf16.mxu0 0
    %3843 = vmatpush2.bf16.msra.mxu0 0
    %3844 = vmatprep.mubr.bf16.mxu0 0
    %3845 = vmatmul.mubr.bf16.gmra.mxu0 %v3701
    %v3846 = vpop.f32.mrf.mxu0
    %v3847 = vadd.f32 %v3725, %v3846
    %v3848 = vpop.f32.mrf.mxu0
    %v3849 = vadd.f32 %v3729, %v3848
    %v3850 = vpop.f32.mrf.mxu0
    %v3851 = vadd.f32 %v3725, %v3850
    %v3852 = vpop.f32.mrf.mxu0
    %v3853 = vadd.f32 %v3729, %v3852
    %3854 = vdwg.mxu0
    %v3855 = vmul.f32 %v3847, %v3847
    %v3856 = vmul.f32 %v3849, %v3849
    %v3857 = vmul.f32 %v3851, %v3851
    %v3858 = vmul.f32 %v3853, %v3853
    %v3859 = vmul.f32 %v3847, %v3855
    %v3860 = vmul.f32 %v3849, %v3856
    %v3861 = vmul.f32 %v3851, %v3857
    %v3862 = vmul.f32 %v3853, %v3858
    %v3863 = vmul.f32 %v3859, 0.044715
    %v3864 = vmul.f32 %v3860, 0.044715
    %v3865 = vmul.f32 %v3861, 0.044715
    %v3866 = vmul.f32 %v3862, 0.044715
    %v3867 = vadd.f32 %v3847, %v3863
    %v3868 = vadd.f32 %v3849, %v3864
    %v3869 = vadd.f32 %v3851, %v3865
    %v3870 = vadd.f32 %v3853, %v3866
    %v3871 = vmul.f32 %v3867, 0.7978846
    %v3872 = vmul.f32 %v3868, 0.7978846
    %v3873 = vmul.f32 %v3869, 0.7978846
    %v3874 = vmul.f32 %v3870, 0.7978846
    %v3875 = vtanh.pop %v3871
    %v3876 = vtanh.pop %v3872
    %v3877 = vtanh.pop %v3873
    %v3878 = vtanh.pop %v3874
    %v3879 = vadd.f32 %v3875, 1.0
    %v3880 = vadd.f32 %v3876, 1.0
    %v3881 = vadd.f32 %v3877, 1.0
    %v3882 = vadd.f32 %v3878, 1.0
    %v3883 = vmul.f32 %v3879, 0.5
    %v3884 = vmul.f32 %v3880, 0.5
    %v3885 = vmul.f32 %v3881, 0.5
    %v3886 = vmul.f32 %v3882, 0.5
    %v3887 = vmul.f32 %v3847, %v3883
    %v3888 = vmul.f32 %v3849, %v3884
    %v3889 = vmul.f32 %v3851, %v3885
    %v3890 = vmul.f32 %v3853, %v3886
    %v3891 = vpack.c.bf16 %v3889, %v3887
    %v3892 = vpack.c.bf16 %v3890, %v3888
    %s3893 = scalar_lea.vmem %s8, 128
    %v3894 = vld [vmem:[%s3893] sm:$0xf]
    %v3895 = vld [vmem:[%s3893 + $0x4] sm:$0xf]
    %v3896 = vld [vmem:[%s3893 + $0x8] sm:$0xf]
    %v3897 = vld [vmem:[%s3893 + $0xc] sm:$0xf]
    %v3898 = vld [vmem:[%s3893 + $0x10] sm:$0xf]
    %v3899 = vld [vmem:[%s3893 + $0x14] sm:$0xf]
    %v3900 = vld [vmem:[%s3893 + $0x18] sm:$0xf]
    %v3901 = vld [vmem:[%s3893 + $0x1c] sm:$0xf]
    %v3902 = vld [vmem:[%s3893 + $0x20] sm:$0xf]
    %v3903 = vld [vmem:[%s3893 + $0x24] sm:$0xf]
    %v3904 = vld [vmem:[%s3893 + $0x28] sm:$0xf]
    %v3905 = vld [vmem:[%s3893 + $0x2c] sm:$0xf]
    %v3906 = vld [vmem:[%s3893 + $0x30] sm:$0xf]
    %v3907 = vld [vmem:[%s3893 + $0x34] sm:$0xf]
    %v3908 = vld [vmem:[%s3893 + $0x38] sm:$0xf]
    %v3909 = vld [vmem:[%s3893 + $0x3c] sm:$0xf]
    %v3910 = vld [vmem:[%s3893 + $0x40] sm:$0xf]
    %v3911 = vld [vmem:[%s3893 + $0x44] sm:$0xf]
    %v3912 = vld [vmem:[%s3893 + $0x48] sm:$0xf]
    %v3913 = vld [vmem:[%s3893 + $0x4c] sm:$0xf]
    %v3914 = vld [vmem:[%s3893 + $0x50] sm:$0xf]
    %v3915 = vld [vmem:[%s3893 + $0x54] sm:$0xf]
    %v3916 = vld [vmem:[%s3893 + $0x58] sm:$0xf]
    %v3917 = vld [vmem:[%s3893 + $0x5c] sm:$0xf]
    %v3918 = vld [vmem:[%s3893 + $0x60] sm:$0xf]
    %v3919 = vld [vmem:[%s3893 + $0x64] sm:$0xf]
    %v3920 = vld [vmem:[%s3893 + $0x68] sm:$0xf]
    %v3921 = vld [vmem:[%s3893 + $0x6c] sm:$0xf]
    %v3922 = vld [vmem:[%s3893 + $0x70] sm:$0xf]
    %v3923 = vld [vmem:[%s3893 + $0x74] sm:$0xf]
    %v3924 = vld [vmem:[%s3893 + $0x78] sm:$0xf]
    %v3925 = vld [vmem:[%s3893 + $0x7c] sm:$0xf]
    %v3926 = vlaneseq
    %v3927 = vshrl.u32 %v3926, 7
    %v3928 = vsub.s32 5, %v3927
    %v3929 = vrot.slane %v2327, %v3928
    %v3962 = vunpack.c.l.b16 %v3894
    %v3963 = vunpack.c.l.b16 %v3895
    %v3964 = vunpack.c.l.b16 %v3896
    %v3965 = vunpack.c.l.b16 %v3897
    %v3966 = vunpack.c.l.b16 %v3898
    %v3967 = vunpack.c.l.b16 %v3899
    %v3968 = vunpack.c.l.b16 %v3900
    %v3969 = vunpack.c.l.b16 %v3901
    %v3970 = vunpack.c.l.b16 %v3902
    %v3971 = vunpack.c.l.b16 %v3903
    %v3972 = vunpack.c.l.b16 %v3904
    %v3973 = vunpack.c.l.b16 %v3905
    %v3974 = vunpack.c.l.b16 %v3906
    %v3975 = vunpack.c.l.b16 %v3907
    %v3976 = vunpack.c.l.b16 %v3908
    %v3977 = vunpack.c.l.b16 %v3909
    %v3978 = vunpack.c.l.b16 %v3910
    %v3979 = vunpack.c.l.b16 %v3911
    %v3980 = vunpack.c.l.b16 %v3912
    %v3981 = vunpack.c.l.b16 %v3913
    %v3982 = vunpack.c.l.b16 %v3914
    %v3983 = vunpack.c.l.b16 %v3915
    %v3984 = vunpack.c.l.b16 %v3916
    %v3985 = vunpack.c.l.b16 %v3917
    %v3986 = vunpack.c.l.b16 %v3918
    %v3987 = vunpack.c.l.b16 %v3919
    %v3988 = vunpack.c.l.b16 %v3920
    %v3989 = vunpack.c.l.b16 %v3921
    %v3990 = vunpack.c.l.b16 %v3922
    %v3991 = vunpack.c.l.b16 %v3923
    %v3992 = vunpack.c.l.b16 %v3924
    %v3993 = vunpack.c.l.b16 %v3925
    %v3994 = vpack.c.b16 %v3963, %v3962
    %v3995 = vpack.c.b16 %v3965, %v3964
    %v3996 = vpack.c.b16 %v3967, %v3966
    %v3997 = vpack.c.b16 %v3969, %v3968
    %v3998 = vpack.c.b16 %v3971, %v3970
    %v3999 = vpack.c.b16 %v3973, %v3972
    %v4000 = vpack.c.b16 %v3975, %v3974
    %v4001 = vpack.c.b16 %v3977, %v3976
    %v4002 = vpack.c.b16 %v3979, %v3978
    %v4003 = vpack.c.b16 %v3981, %v3980
    %v4004 = vpack.c.b16 %v3983, %v3982
    %v4005 = vpack.c.b16 %v3985, %v3984
    %v4006 = vpack.c.b16 %v3987, %v3986
    %v4007 = vpack.c.b16 %v3989, %v3988
    %v4008 = vpack.c.b16 %v3991, %v3990
    %v4009 = vpack.c.b16 %v3993, %v3992
    %4026 = vmatprep.subr.bf16.mxu0 0
    %4027 = vmatpush1.bf16.msra.mxu0 %v4001
    %4028 = vmatprep.subr.bf16.mxu0 0
    %4029 = vmatpush1.bf16.msra.mxu0 %v4000
    %4030 = vmatprep.subr.bf16.mxu0 0
    %4031 = vmatpush1.bf16.msra.mxu0 %v3999
    %4032 = vmatprep.subr.bf16.mxu0 0
    %4033 = vmatpush1.bf16.msra.mxu0 %v3998
    %4034 = vmatprep.subr.bf16.mxu0 0
    %4035 = vmatpush1.bf16.msra.mxu0 %v3997
    %4036 = vmatprep.subr.bf16.mxu0 0
    %4037 = vmatpush1.bf16.msra.mxu0 %v3996
    %4038 = vmatprep.subr.bf16.mxu0 0
    %4039 = vmatpush1.bf16.msra.mxu0 %v3995
    %4040 = vmatprep.subr.bf16.mxu0 0
    %4041 = vmatpush1.bf16.msra.mxu0 %v3994
    %4042 = vmatprep.subr.bf16.mxu0 0
    %4043 = vmatpush2.bf16.msra.mxu0 %v4009
    %4044 = vmatprep.subr.bf16.mxu0 0
    %4045 = vmatpush2.bf16.msra.mxu0 %v4008
    %4046 = vmatprep.subr.bf16.mxu0 0
    %4047 = vmatpush2.bf16.msra.mxu0 %v4007
    %4048 = vmatprep.subr.bf16.mxu0 0
    %4049 = vmatpush2.bf16.msra.mxu0 %v4006
    %4050 = vmatprep.subr.bf16.mxu0 0
    %4051 = vmatpush2.bf16.msra.mxu0 %v4005
    %4052 = vmatprep.subr.bf16.mxu0 0
    %4053 = vmatpush2.bf16.msra.mxu0 %v4004
    %4054 = vmatprep.subr.bf16.mxu0 0
    %4055 = vmatpush2.bf16.msra.mxu0 %v4003
    %4056 = vmatprep.subr.bf16.mxu0 0
    %4057 = vmatpush2.bf16.msra.mxu0 %v4002
    %4058 = vmatprep.mubr.bf16.mxu0 %v3892
    %4059 = vmatmul.mubr.bf16.gmra.mxu0 %v3891
    %v4060 = vpop.f32.mrf.mxu0
    %v4061 = vadd.f32 %v3929, %v4060
    %v4062 = vpop.f32.mrf.mxu0
    %v4063 = vpop.f32.mrf.mxu0
    %v4064 = vadd.f32 %v3929, %v4063
    %v4065 = vpop.f32.mrf.mxu0
    %4066 = vdwg.mxu0
    %v4067 = vadd.f32 %v3665, %v4061
    %v4068 = vadd.f32 %v3666, %v4064
    %v4069 = vld [vmem:[%s10] sm:$0x1]
    %v4070 = vld [vmem:[%s10 + $0x1] sm:$0x1]
    %v4073 = vrot.slane %v4068, 7
    %vm4074 = vcmask 1041409
    %v4075 = vsel %vm4074, %v4073, %v4067
    %vm4077 = vcmask 1041408
    %v4078 = vsel %vm4077, %v4075, 0.0
    %4079 = vadd.xlane.f32.xlu0 %v4078
    %v4080 = vpop.xlane.xlu0 %4079
    %v4081 = vmul.f32 %v4080, %v589
    %v4083 = vrot.slane %v4081, 1
    %v4086 = vsub.f32 %v4067, %v4081
    %v4087 = vsub.f32 %v4068, %v4083
    %v4088 = vmul.f32 %v4086, %v4086
    %v4089 = vmul.f32 %v4087, %v4087
    %v4092 = vrot.slane %v4089, 7
    %v4093 = vsel %vm4074, %v4092, %v4088
    %v4095 = vsel %vm4077, %v4093, 0.0
    %4096 = vadd.xlane.f32.xlu0 %v4095
    %v4097 = vpop.xlane.xlu0 %4096
    %v4098 = vmul.f32 %v4097, %v589
    %v4099 = vadd.f32 %v4098, 1e-06
    %v4100 = vrsqrt.pop %v4099
    %v4102 = vrot.slane %v4100, 1
    %v4105 = vmul.f32 %v4086, %v4100
    %v4106 = vmul.f32 %v4087, %v4102
    %v4107 = vlaneseq
    %v4108 = vshrl.u32 %v4107, 7
    %v4109 = vsub.s32 0, %v4108
    %v4110 = vrot.slane %v4069, %v4109
    %v4111 = vmul.f32 %v4105, %v4110
    %v4112 = vmul.f32 %v4106, %v4110
    %v4113 = vlaneseq
    %v4114 = vshrl.u32 %v4113, 7
    %v4115 = vsub.s32 0, %v4114
    %v4116 = vrot.slane %v4070, %v4115
    %v4117 = vadd.f32 %v4111, %v4116
    %v4118 = vadd.f32 %v4112, %v4116
    %v4119 = vpack.c.bf16 %v4117, %v4117
    %v4120 = vpack.c.bf16 %v4118, %v4118
    %v4121 = vld [vmem:[%s11] sm:$0xf]
    %v4122 = vld [vmem:[%s11 + $0x4] sm:$0xf]
    %v4123 = vld [vmem:[%s11 + $0x8] sm:$0xf]
    %v4124 = vld [vmem:[%s11 + $0xc] sm:$0xf]
    %v4125 = vld [vmem:[%s11 + $0x10] sm:$0xf]
    %v4126 = vld [vmem:[%s11 + $0x14] sm:$0xf]
    %v4127 = vld [vmem:[%s11 + $0x18] sm:$0xf]
    %v4128 = vld [vmem:[%s11 + $0x1c] sm:$0xf]
    %v4129 = vld [vmem:[%s11 + $0x20] sm:$0xf]
    %v4130 = vld [vmem:[%s11 + $0x24] sm:$0xf]
    %v4131 = vld [vmem:[%s11 + $0x28] sm:$0xf]
    %v4132 = vld [vmem:[%s11 + $0x2c] sm:$0xf]
    %v4133 = vld [vmem:[%s11 + $0x30] sm:$0xf]
    %v4134 = vld [vmem:[%s11 + $0x34] sm:$0xf]
    %v4135 = vld [vmem:[%s11 + $0x38] sm:$0xf]
    %v4136 = vld [vmem:[%s11 + $0x3c] sm:$0xf]
    %v4137 = vld [vmem:[%s12] sm:$0x1]
    %v4139 = vlaneseq
    %v4140 = vshrl.u32 %v4139, 7
    %v4141 = vsub.s32 0, %v4140
    %v4142 = vrot.slane %v4137, %v4141
    %v4146 = vunpack.c.l.b16 %v4119
    %v4147 = vunpack.c.l.b16 %v4120
    %v4148 = vrot.slane %v4147, 7
    %v4149 = vsel %vm4074, %v4148, %v4146
    %v4150 = vpack.c.b16 %v4149, %v4149
    %v4168 = vunpack.c.l.b16 %v4121
    %v4169 = vunpack.c.l.b16 %v4122
    %v4170 = vunpack.c.l.b16 %v4123
    %v4171 = vunpack.c.l.b16 %v4124
    %v4172 = vunpack.c.l.b16 %v4125
    %v4173 = vunpack.c.l.b16 %v4126
    %v4174 = vunpack.c.l.b16 %v4127
    %v4175 = vunpack.c.l.b16 %v4128
    %v4176 = vunpack.c.l.b16 %v4129
    %v4177 = vunpack.c.l.b16 %v4130
    %v4178 = vunpack.c.l.b16 %v4131
    %v4179 = vunpack.c.l.b16 %v4132
    %v4180 = vunpack.c.l.b16 %v4133
    %v4181 = vunpack.c.l.b16 %v4134
    %v4182 = vunpack.c.l.b16 %v4135
    %v4183 = vunpack.c.l.b16 %v4136
    %v4184 = vpack.c.b16 %v4169, %v4168
    %v4185 = vpack.c.b16 %v4171, %v4170
    %v4186 = vpack.c.b16 %v4173, %v4172
    %v4187 = vpack.c.b16 %v4175, %v4174
    %v4188 = vpack.c.b16 %v4177, %v4176
    %v4189 = vpack.c.b16 %v4179, %v4178
    %v4190 = vpack.c.b16 %v4181, %v4180
    %v4191 = vpack.c.b16 %v4183, %v4182
    %4200 = vmatprep.subr.bf16.mxu0 0
    %4201 = vmatpush1.bf16.msra.mxu0 %v4191
    %4202 = vmatprep.subr.bf16.mxu0 0
    %4203 = vmatpush1.bf16.msra.mxu0 %v4190
    %4204 = vmatprep.subr.bf16.mxu0 0
    %4205 = vmatpush1.bf16.msra.mxu0 %v4189
    %4206 = vmatprep.subr.bf16.mxu0 0
    %4207 = vmatpush1.bf16.msra.mxu0 %v4188
    %4208 = vmatprep.subr.bf16.mxu0 0
    %4209 = vmatpush1.bf16.msra.mxu0 %v4187
    %4210 = vmatprep.subr.bf16.mxu0 0
    %4211 = vmatpush1.bf16.msra.mxu0 %v4186
    %4212 = vmatprep.subr.bf16.mxu0 0
    %4213 = vmatpush1.bf16.msra.mxu0 %v4185
    %4214 = vmatprep.subr.bf16.mxu0 0
    %4215 = vmatpush1.bf16.msra.mxu0 %v4184
    %4216 = vmatprep.subr.bf16.mxu0 0
    %4217 = vmatpush2.bf16.msra.mxu0 0
    %4218 = vmatprep.subr.bf16.mxu0 0
    %4219 = vmatpush2.bf16.msra.mxu0 0
    %4220 = vmatprep.subr.bf16.mxu0 0
    %4221 = vmatpush2.bf16.msra.mxu0 0
    %4222 = vmatprep.subr.bf16.mxu0 0
    %4223 = vmatpush2.bf16.msra.mxu0 0
    %4224 = vmatprep.subr.bf16.mxu0 0
    %4225 = vmatpush2.bf16.msra.mxu0 0
    %4226 = vmatprep.subr.bf16.mxu0 0
    %4227 = vmatpush2.bf16.msra.mxu0 0
    %4228 = vmatprep.subr.bf16.mxu0 0
    %4229 = vmatpush2.bf16.msra.mxu0 0
    %4230 = vmatprep.subr.bf16.mxu0 0
    %4231 = vmatpush2.bf16.msra.mxu0 0
    %4232 = vmatprep.mubr.bf16.mxu0 0
    %4233 = vmatmul.mubr.bf16.gmra.mxu0 %v4150
    %v4234 = vpop.f32.mrf.mxu0
    %v4235 = vadd.f32 %v4142, %v4234
    %v4236 = vpop.f32.mrf.mxu0
    %v4237 = vpop.f32.mrf.mxu0
    %v4238 = vpop.f32.mrf.mxu0
    %4239 = vdwg.mxu0
    %v4240 = vtanh.pop %v4235
    %v4241 = vpack.c.bf16 %v4240, %v4240
    %v4242 = vld [vmem:[%s13] sm:$0xf]
    %v4243 = vld [vmem:[%s13 + $0x4] sm:$0xf]
    %v4244 = vld [vmem:[%s13 + $0x8] sm:$0xf]
    %v4245 = vld [vmem:[%s13 + $0xc] sm:$0xf]
    %v4246 = vld [vmem:[%s13 + $0x10] sm:$0xf]
    %v4247 = vld [vmem:[%s13 + $0x14] sm:$0xf]
    %v4248 = vld [vmem:[%s13 + $0x18] sm:$0xf]
    %v4249 = vld [vmem:[%s13 + $0x1c] sm:$0xf]
    %v4250 = vld [vmem:[%s14] sm:$0x1]
    %v4252 = vlaneseq
    %v4253 = vshrl.u32 %v4252, 7
    %v4254 = vsub.s32 0, %v4253
    %v4255 = vrot.slane %v4250, %v4254
    %v4265 = vunpack.c.l.b16 %v4242
    %v4266 = vunpack.c.l.b16 %v4243
    %v4267 = vunpack.c.l.b16 %v4244
    %v4268 = vunpack.c.l.b16 %v4245
    %v4269 = vunpack.c.l.b16 %v4246
    %v4270 = vunpack.c.l.b16 %v4247
    %v4271 = vunpack.c.l.b16 %v4248
    %v4272 = vunpack.c.l.b16 %v4249
    %v4273 = vpack.c.b16 %v4266, %v4265
    %v4274 = vpack.c.b16 %v4268, %v4267
    %v4275 = vpack.c.b16 %v4270, %v4269
    %v4276 = vpack.c.b16 %v4272, %v4271
    %v4282 = vsel %vm1807, %v4241, 0
    %4284 = vmatprep.subr.bf16.mxu0 0
    %4285 = vmatpush1.bf16.msra.mxu0 0
    %4286 = vmatprep.subr.bf16.mxu0 0
    %4287 = vmatpush1.bf16.msra.mxu0 0
    %4288 = vmatprep.subr.bf16.mxu0 0
    %4289 = vmatpush1.bf16.msra.mxu0 0
    %4290 = vmatprep.subr.bf16.mxu0 0
    %4291 = vmatpush1.bf16.msra.mxu0 0
    %4292 = vmatprep.subr.bf16.mxu0 0
    %4293 = vmatpush1.bf16.msra.mxu0 %v4276
    %4294 = vmatprep.subr.bf16.mxu0 0
    %4295 = vmatpush1.bf16.msra.mxu0 %v4275
    %4296 = vmatprep.subr.bf16.mxu0 0
    %4297 = vmatpush1.bf16.msra.mxu0 %v4274
    %4298 = vmatprep.subr.bf16.mxu0 0
    %4299 = vmatpush1.bf16.msra.mxu0 %v4273
    %4300 = vmatprep.subr.bf16.mxu0 0
    %4301 = vmatpush2.bf16.msra.mxu0 0
    %4302 = vmatprep.subr.bf16.mxu0 0
    %4303 = vmatpush2.bf16.msra.mxu0 0
    %4304 = vmatprep.subr.bf16.mxu0 0
    %4305 = vmatpush2.bf16.msra.mxu0 0
    %4306 = vmatprep.subr.bf16.mxu0 0
    %4307 = vmatpush2.bf16.msra.mxu0 0
    %4308 = vmatprep.subr.bf16.mxu0 0
    %4309 = vmatpush2.bf16.msra.mxu0 0
    %4310 = vmatprep.subr.bf16.mxu0 0
    %4311 = vmatpush2.bf16.msra.mxu0 0
    %4312 = vmatprep.subr.bf16.mxu0 0
    %4313 = vmatpush2.bf16.msra.mxu0 0
    %4314 = vmatprep.subr.bf16.mxu0 0
    %4315 = vmatpush2.bf16.msra.mxu0 0
    %4316 = vmatprep.mubr.bf16.mxu0 0
    %4317 = vmatmul.mubr.bf16.gmra.mxu0 %v4282
    %v4318 = vpop.f32.mrf.mxu0
    %v4319 = vadd.f32 %v4255, %v4318
    %v4320 = vpop.f32.mrf.mxu0
    %v4321 = vpop.f32.mrf.mxu0
    %v4322 = vpop.f32.mrf.mxu0
    %4323 = vdwg.mxu0
    %v4326 = vunpack.c.l.s4 1966171168
    %v4327 = vunpack.c.0.s8 %v4326
    %v4328 = vlaneseq
    %v4329 = vshrl.u32 %v4328, 7
    %v4330 = vsub.s32 %v4327, %v4329
    %v4331 = vrot.slane %v4319, %v4330
    %v4332 = vcombine.high %v4331, %v4331
    %v4334 = vunpack.c.l.s4 1966171168
    %v4335 = vunpack.c.0.s8 %v4334
    %v4336 = vlaneseq
    %v4337 = vshrl.u32 %v4336, 7
    %v4338 = vsub.s32 %v4335, %v4337
    %v4339 = vrot.slane %v4331, %v4338
    %v4341 = vunpack.c.l.s4 1966171168
    %v4342 = vunpack.c.0.s8 %v4341
    %v4343 = vlaneseq
    %v4344 = vshrl.u32 %v4343, 7
    %v4345 = vsub.s32 %v4342, %v4344
    %v4346 = vrot.slane %v4332, %v4345
    %4349 = vst [vmem:[#allocation2] sm:$0x1] %v4339
    %4350 = vst [vmem:[#allocation2 + $0x1] sm:$0x1] %v4346
    // Predicated region
    $region62: #{saxs_vit_forward.1} parent=1 // pred_check
      _
    $region63: #{saxs_vit_forward.1} parent=1 // pred_check_branch
      %4352 = sbr.rel (0) target = $region65
    $region64: #{saxs_vit_forward.1} parent=1 // pred_region
      %s4354 = ssub.s32 32, 32
      %4355 = vsyncadd [#allocation3], %s4354
      %s4356 = sshll.u32 [#allocation2], 4
      %s4357 = int_to_ptr.vmem [resolvable:$true] %s4356
      %4362 = dma.vmem_to_hbm [thread:$0]  %s4357, 32, %s15, [#allocation3], 16, 16, 1
    $region65: #{saxs_vit_forward.1} parent=1 // pred_fallthru
      _
    // Predicated region
    $region66: #{saxs_vit_forward.1} parent=1 // pred_check
      _
    $region67: #{saxs_vit_forward.1} parent=1 // pred_check_branch
      %4364 = sbr.rel (0) target = $region69
    $region68: #{saxs_vit_forward.1} parent=1 // pred_region
      %4365 = dma.done [#allocation3], 32
    $region69: #{saxs_vit_forward.1} parent=1 // pred_fallthru
      _
    %4366 = vsyncpa [#allocation3], 1

</llo_original>
